<compile_context>
chip_gen: v7x
topology: tpu7x:2x2x1
jax: 0.10.0
libtpu: 0.0.40
codegen_flags: <defaults>
</compile_context>

<pallas_src>
import functools

import jax
import jax.numpy as jnp
from jax.experimental import pallas as pl
from jax.experimental.pallas import tpu as pltpu

BN_EPS = 1e-5


# ------------------------------ fused kernel --------------------------------

def _bottleneck_kernel(x_mid_ref, x_top_ref, x_bot_ref,
                       w1_ref, b1_ref, w2_ref, b2_ref, w3_ref, b3_ref,
                       o_ref, pad_ref, *, th, w, planes, matmul_dtype):
    """One (batch, row-tile) block of the fused Bottleneck forward.

    x_mid: (1, th, w, cin) f32     input row tile (also the residual)
    x_top/x_bot: (1, 1, w, cin)    clamped halo rows (row above / below tile)
    w1: (cin, P) w2: (3, 3P, P) w3: (P, cout)   bn-scale-folded, matmul dtype
    b1/b2: (1, P)  b3: (1, cout)   f32 folded-BN biases
    pad_ref: VMEM scratch (th+2, w+2, P) for the zero-padded stage-1 output.
    """
    h_idx = pl.program_id(1)
    is_top = h_idx == 0
    is_bot = h_idx == pl.num_programs(1) - 1

    cin = x_mid_ref.shape[-1]
    cout = w3_ref.shape[-1]

    # ---- gather the halo-extended input tile: (th+2, w, cin) ---------------
    x_mid = x_mid_ref[0]                          # (th, w, cin)  f32
    x_top = x_top_ref[0]                          # (1,  w, cin)
    x_bot = x_bot_ref[0]                          # (1,  w, cin)
    x_halo = jnp.concatenate([x_top, x_mid, x_bot], axis=0)

    # ---- stage 1: 1x1 conv (bn1 scale folded into w1) + bias + ReLU --------
    out1 = jnp.dot(
        x_halo.reshape((th + 2) * w, cin).astype(matmul_dtype),
        w1_ref[...], preferred_element_type=jnp.float32)
    out1 = jnp.maximum(out1 + b1_ref[...], 0.0)
    out1 = out1.reshape(th + 2, w, planes).astype(matmul_dtype)

    # conv2 zero-padding applies to out1: halo rows that fall outside the
    # image and the two boundary columns must be zero in the padded scratch.
    # Only the W-boundary columns need an explicit zero store; everything else
    # in the scratch is overwritten below.
    top_row = jnp.where(is_top, jnp.zeros_like(out1[0]), out1[0])
    bot_row = jnp.where(is_bot, jnp.zeros_like(out1[th + 1]), out1[th + 1])
    zero_col = jnp.zeros((th + 2, 1, planes), pad_ref.dtype)
    pad_ref[:, 0:1, :] = zero_col
    pad_ref[:, w + 1:w + 2, :] = zero_col
    pad_ref[0, 1:w + 1, :] = top_row
    pad_ref[1:th + 1, 1:w + 1, :] = out1[1:th + 1]
    pad_ref[th + 1, 1:w + 1, :] = bot_row

    # ---- stage 2: 3x3 conv as 3 per-dy matmuls with K = 3*planes -----------
    acc = jnp.zeros((th * w, planes), jnp.float32)
    for dy in range(3):                           # static unrolled loop
        rows = pad_ref[dy:dy + th]                # (th, w+2, P)
        patch = jnp.concatenate(
            [rows[:, dx:dx + w, :] for dx in range(3)], axis=-1)  # (th, w, 3P)
        acc = acc + jnp.dot(patch.reshape(th * w, 3 * planes), w2_ref[dy],
                            preferred_element_type=jnp.float32)
    out2 = jnp.maximum(acc + b2_ref[...], 0.0)    # (th*w, P) f32

    # ---- stage 3: 1x1 conv + bias + residual add + ReLU ---------------------
    out3 = jnp.dot(out2.astype(matmul_dtype), w3_ref[...],
                   preferred_element_type=jnp.float32)
    out3 = out3 + b3_ref[...] + x_mid.reshape(th * w, cin)
    o_ref[0] = jnp.maximum(out3, 0.0).reshape(th, w, cout).astype(o_ref.dtype)


# -------------------------------- wrapper ------------------------------------

def fold_bn(gamma, beta, mean, var):
    """Fold eval-mode BatchNorm into per-channel scale/bias, shaped (1, C)."""
    scale = gamma / jnp.sqrt(var + BN_EPS)
    bias = beta - mean * scale
    return scale.reshape(1, -1), bias.reshape(1, -1)


def _pick_tile_rows(h, w, cin, cout, planes, mm_itemsize, max_tile_rows,
                    vmem_budget_bytes):
    """Largest divisor of H <= max_tile_rows whose per-step footprint fits."""
    best = 1
    for th in range(1, min(h, max_tile_rows) + 1):
        if h % th:
            continue
        # double-buffered input tile (+halo rows) and output tile, + scratch.
        per_step = 2 * ((th + 4) * w * cin * 4 + th * w * cout * 4)
        per_step += (th + 2) * (w + 2) * planes * mm_itemsize
        if per_step <= vmem_budget_bytes:
            best = th
    return best


def bottleneck_forward(x_nchw, params, *, matmul_dtype=jnp.bfloat16,
                       max_tile_rows=16):
    """Fused Pallas Bottleneck.forward (downsample=None, stride=1)."""
    # PyTorch boundary is NCHW; convert once here.
    # TODO(synk): if the surrounding model is NHWC, drop these two transposes.
    x = jnp.transpose(x_nchw, (0, 2, 3, 1)).astype(jnp.float32)   # NCHW->NHWC
    n, h, w, cin = x.shape
    planes = params["w1"].shape[1]
    cout = params["w3"].shape[1]
    assert cin == cout, "identity residual requires inplanes == 4 * planes"

    mm_itemsize = jnp.finfo(matmul_dtype).bits // 8
    th = _pick_tile_rows(h, w, cin, cout, planes, mm_itemsize, max_tile_rows,
                         vmem_budget_bytes=8 * 1024 * 1024)

    # Fold BN scale into the conv weights (in f32), keep bias separate; then
    # cast the weights to the matmul dtype.
    s1, b1 = fold_bn(*params["bn1"])
    s2, b2 = fold_bn(*params["bn2"])
    s3, b3 = fold_bn(*params["bn3"])
    w1 = (params["w1"] * s1).astype(matmul_dtype)                     # (cin,P)
    w2 = (params["w2"] * s2).reshape(3, 3 * planes, planes).astype(matmul_dtype)
    w3 = (params["w3"] * s3).astype(matmul_dtype)                     # (P,cout)

    kernel = functools.partial(_bottleneck_kernel, th=th, w=w, planes=planes,
                               matmul_dtype=matmul_dtype)

    flops = 2 * n * h * w * (cin * planes + 9 * planes * planes + planes * cout)
    bytes_accessed = ((x.size + n * h * w * cout) * 4
                      + (w1.size + w2.size + w3.size) * mm_itemsize)

    out = pl.pallas_call(
        kernel,
        out_shape=jax.ShapeDtypeStruct((n, h, w, cout), jnp.float32),
        grid=(n, h // th),
        in_specs=[
            # row tile (also the residual)
            pl.BlockSpec((1, th, w, cin), lambda i, j: (i, j, 0, 0)),
            # 1-row halo above / below, clamped at the image boundary (the
            # out-of-image case is zeroed inside the kernel after stage 1).
            pl.BlockSpec((1, 1, w, cin),
                         lambda i, j: (i, jnp.maximum(j * th - 1, 0), 0, 0)),
            pl.BlockSpec((1, 1, w, cin),
                         lambda i, j: (i, jnp.minimum(j * th + th, h - 1), 0, 0)),
            # weights / biases: resident across the whole grid.
            pl.BlockSpec((cin, planes), lambda i, j: (0, 0)),
            pl.BlockSpec((1, planes), lambda i, j: (0, 0)),
            pl.BlockSpec((3, 3 * planes, planes), lambda i, j: (0, 0, 0)),
            pl.BlockSpec((1, planes), lambda i, j: (0, 0)),
            pl.BlockSpec((planes, cout), lambda i, j: (0, 0)),
            pl.BlockSpec((1, cout), lambda i, j: (0, 0)),
        ],
        out_specs=pl.BlockSpec((1, th, w, cout), lambda i, j: (i, j, 0, 0)),
        scratch_shapes=[pltpu.VMEM((th + 2, w + 2, planes), matmul_dtype)],
        compiler_params=pltpu.CompilerParams(
            dimension_semantics=("parallel", "parallel"),
            vmem_limit_bytes=32 * 1024 * 1024),
        cost_estimate=pl.CostEstimate(flops=int(flops), transcendentals=0,
                                      bytes_accessed=int(bytes_accessed)),
    )(x, x, x, w1, b1, w2, b2, w3, b3)

    # TODO(synk): downsample branch / stride != 1 not implemented; the module
    # is used here with the default downsample=None, stride=1 ctor args.
    return jnp.transpose(out, (0, 3, 1, 2))                       # NHWC->NCHW


# --------------------------- pure-JAX reference ------------------------------

def ref_bottleneck(x_nchw, p):
    x = jnp.transpose(x_nchw, (0, 2, 3, 1)).astype(jnp.float32)

    def bn(y, g, b, m, v):
        return (y - m) / jnp.sqrt(v + BN_EPS) * g + b

    dn = ("NHWC", "HWIO", "NHWC")
    out = jax.lax.conv_general_dilated(
        x, p["w1"].reshape(1, 1, *p["w1"].shape), (1, 1), "VALID",
        dimension_numbers=dn)
    out = jax.nn.relu(bn(out, *p["bn1"]))
    out = jax.lax.conv_general_dilated(out, p["w2"], (1, 1), "SAME",
                                       dimension_numbers=dn)
    out = jax.nn.relu(bn(out, *p["bn2"]))
    out = jax.lax.conv_general_dilated(
        out, p["w3"].reshape(1, 1, *p["w3"].shape), (1, 1), "VALID",
        dimension_numbers=dn)
    out = bn(out, *p["bn3"])
    out = jax.nn.relu(out + x)
    return jnp.transpose(out, (0, 3, 1, 2))


# ------------------------------- main ----------------------------------------

def make_params(key, inplanes, planes):
    ks = jax.random.split(key, 15)
    exp = 4

    def bn_params(k0, k1, k2, k3, c):
        gamma = 1.0 + 0.1 * jax.random.normal(k0, (c,), jnp.float32)
        beta = 0.1 * jax.random.normal(k1, (c,), jnp.float32)
        mean = 0.1 * jax.random.normal(k2, (c,), jnp.float32)
        var = jax.random.uniform(k3, (c,), jnp.float32, 0.5, 1.5)
        return (gamma, beta, mean, var)

    return {
        # conv weights stored channels-last: 1x1 as (Cin, Cout), 3x3 as HWIO.
        "w1": 0.1 * jax.random.normal(ks[0], (inplanes, planes), jnp.float32),
        "w2": 0.1 * jax.random.normal(ks[1], (3, 3, planes, planes), jnp.float32),
        "w3": 0.1 * jax.random.normal(ks[2], (planes, planes * exp), jnp.float32),
        "bn1": bn_params(ks[3], ks[4], ks[5], ks[6], planes),
        "bn2": bn_params(ks[7], ks[8], ks[9], ks[10], planes),
        "bn3": bn_params(ks[11], ks[12], ks[13], ks[14], planes * exp),
    }


if __name__ == "__main__":
    planes = 4
    inplanes = planes * 4          # identity residual requires inplanes == 4*planes
    n, h, w = 2, 16, 16

    key = jax.random.PRNGKey(0)
    kx, kp = jax.random.split(key)
    x = jax.random.normal(kx, (n, inplanes, h, w), jnp.float32)  # NCHW like PyTorch
    params = make_params(kp, inplanes, planes)

    ref = jax.block_until_ready(ref_bottleneck(x, params))

    # Exact-structure check: f32 matmuls must match the XLA-conv reference.
    out_f32 = jax.block_until_ready(
        bottleneck_forward(x, params, matmul_dtype=jnp.float32))
    assert out_f32.shape == (n, inplanes, h, w), out_f32.shape
    assert jnp.allclose(out_f32, ref, rtol=1e-4, atol=1e-4), (
        float(jnp.max(jnp.abs(out_f32 - ref))))

    # Performance path: bf16 matmul inputs, f32 accumulation / epilogue.
    out_bf16 = jax.block_until_ready(bottleneck_forward(x, params))
    assert out_bf16.shape == (n, inplanes, h, w), out_bf16.shape
    assert jnp.allclose(out_bf16, ref, rtol=5e-2, atol=5e-2), (
        float(jnp.max(jnp.abs(out_bf16 - ref))))

    print("KERNEL_OK")
</pallas_src>

<mosaic_0001>
module attributes {stable_mosaic.version = 11 : i64} {
  func.func @_bottleneck_kernel(%arg0: i32, %arg1: i32, %arg2: memref<1x16x16x16xf32, #tpu.memory_space<vmem>>, %arg3: memref<1x1x16x16xf32, #tpu.memory_space<vmem>>, %arg4: memref<1x1x16x16xf32, #tpu.memory_space<vmem>>, %arg5: memref<16x4xf32, #tpu.memory_space<vmem>>, %arg6: memref<1x4xf32, #tpu.memory_space<vmem>>, %arg7: memref<3x12x4xf32, #tpu.memory_space<vmem>>, %arg8: memref<1x4xf32, #tpu.memory_space<vmem>>, %arg9: memref<4x16xf32, #tpu.memory_space<vmem>>, %arg10: memref<1x16xf32, #tpu.memory_space<vmem>>, %arg11: memref<1x16x16x16xf32, #tpu.memory_space<vmem>>, %arg12: memref<18x18x4xf32, #tpu.memory_space<vmem>>) attributes {dimension_semantics = [#tpu.dimension_semantics<parallel>, #tpu.dimension_semantics<parallel>], iteration_bounds = array<i64: 2, 1>, scalar_prefetch = 0 : i64, scratch_operands = 1 : i64, tpu.core_type = #tpu.core_type<tc>, window_params = [{transform_indices = @transform_0, window_bounds = array<i64: 1, 16, 16, 16>}, {transform_indices = @transform_1, window_bounds = array<i64: 1, 1, 16, 16>}, {transform_indices = @transform_2, window_bounds = array<i64: 1, 1, 16, 16>}, {pipeline_mode = #tpu.pipeline_mode<synchronous>, transform_indices = @transform_3, window_bounds = array<i64: 16, 4>}, {pipeline_mode = #tpu.pipeline_mode<synchronous>, transform_indices = @transform_4, window_bounds = array<i64: 1, 4>}, {pipeline_mode = #tpu.pipeline_mode<synchronous>, transform_indices = @transform_5, window_bounds = array<i64: 3, 12, 4>}, {pipeline_mode = #tpu.pipeline_mode<synchronous>, transform_indices = @transform_6, window_bounds = array<i64: 1, 4>}, {pipeline_mode = #tpu.pipeline_mode<synchronous>, transform_indices = @transform_7, window_bounds = array<i64: 4, 16>}, {pipeline_mode = #tpu.pipeline_mode<synchronous>, transform_indices = @transform_8, window_bounds = array<i64: 1, 16>}, {transform_indices = @transform_9, window_bounds = array<i64: 1, 16, 16, 16>}]} {
    %c0_i32 = arith.constant 0 : i32
    %0 = arith.cmpi eq, %arg1, %c0_i32 : i32
    %c0_i32_0 = arith.constant 0 : i32
    %1 = arith.cmpi eq, %arg1, %c0_i32_0 : i32
    %c0 = arith.constant 0 : index
    %c0_1 = arith.constant 0 : index
    %c0_2 = arith.constant 0 : index
    %c0_3 = arith.constant 0 : index
    %2 = vector.load %arg2[%c0, %c0_1, %c0_2, %c0_3] : memref<1x16x16x16xf32, #tpu.memory_space<vmem>>, vector<1x16x16x16xf32>
    %3 = vector.shape_cast %2 : vector<1x16x16x16xf32> to vector<16x16x16xf32>
    %c0_4 = arith.constant 0 : index
    %c0_5 = arith.constant 0 : index
    %c0_6 = arith.constant 0 : index
    %c0_7 = arith.constant 0 : index
    %4 = vector.load %arg3[%c0_4, %c0_5, %c0_6, %c0_7] : memref<1x1x16x16xf32, #tpu.memory_space<vmem>>, vector<1x1x16x16xf32>
    %5 = vector.shape_cast %4 : vector<1x1x16x16xf32> to vector<1x16x16xf32>
    %c0_8 = arith.constant 0 : index
    %c0_9 = arith.constant 0 : index
    %c0_10 = arith.constant 0 : index
    %c0_11 = arith.constant 0 : index
    %6 = vector.load %arg4[%c0_8, %c0_9, %c0_10, %c0_11] : memref<1x1x16x16xf32, #tpu.memory_space<vmem>>, vector<1x1x16x16xf32>
    %7 = vector.shape_cast %6 : vector<1x1x16x16xf32> to vector<1x16x16xf32>
    %8 = tpu.concatenate %5, %3, %7 in 0 : vector<1x16x16xf32>, vector<16x16x16xf32>, vector<1x16x16xf32> -> vector<18x16x16xf32>
    %9 = vector.shape_cast %8 : vector<18x16x16xf32> to vector<288x16xf32>
    %c0_12 = arith.constant 0 : index
    %c0_13 = arith.constant 0 : index
    %10 = vector.load %arg5[%c0_12, %c0_13] : memref<16x4xf32, #tpu.memory_space<vmem>>, vector<16x4xf32>
    %cst = arith.constant dense<0.000000e+00> : vector<288x4xf32>
    %11 = tpu.matmul %9, %10, %cst {dimension_numbers = #tpu.dot_dimension_numbers<[1], [0], [0], [1], [0, 0, 1, 1], [], []>} : vector<288x16xf32>, vector<16x4xf32>, vector<288x4xf32> -> vector<288x4xf32>
    %c0_14 = arith.constant 0 : index
    %c0_15 = arith.constant 0 : index
    %12 = vector.load %arg6[%c0_14, %c0_15] : memref<1x4xf32, #tpu.memory_space<vmem>>, vector<1x4xf32>
    %13 = vector.broadcast %12 : vector<1x4xf32> to vector<288x4xf32>
    %14 = arith.addf %11, %13 : vector<288x4xf32>
    %cst_16 = arith.constant 0.000000e+00 : f32
    %15 = vector.broadcast %cst_16 : f32 to vector<288x4xf32>
    %16 = arith.maximumf %14, %15 : vector<288x4xf32>
    %17 = vector.shape_cast %16 : vector<288x4xf32> to vector<18x16x4xf32>
    %cst_17 = arith.constant 0.000000e+00 : f32
    %18 = vector.broadcast %cst_17 : f32 to vector<16x4xf32>
    %19 = vector.extract_strided_slice %17 {offsets = [0, 0, 0], sizes = [1, 16, 4], strides = [1, 1, 1]} : vector<18x16x4xf32> to vector<1x16x4xf32>
    %20 = vector.shape_cast %19 : vector<1x16x4xf32> to vector<16x4xf32>
    %21 = arith.select %0, %18, %20 : vector<16x4xf32>
    %cst_18 = arith.constant 0.000000e+00 : f32
    %22 = vector.broadcast %cst_18 : f32 to vector<16x4xf32>
    %23 = vector.extract_strided_slice %17 {offsets = [17, 0, 0], sizes = [1, 16, 4], strides = [1, 1, 1]} : vector<18x16x4xf32> to vector<1x16x4xf32>
    %24 = vector.shape_cast %23 : vector<1x16x4xf32> to vector<16x4xf32>
    %25 = arith.select %1, %22, %24 : vector<16x4xf32>
    %cst_19 = arith.constant 0.000000e+00 : f32
    %26 = vector.broadcast %cst_19 : f32 to vector<18x1x4xf32>
    %c0_20 = arith.constant 0 : index
    %c0_21 = arith.constant 0 : index
    %c0_22 = arith.constant 0 : index
    %27 = vector.load %arg12[%c0_20, %c0_21, %c0_22] : memref<18x18x4xf32, #tpu.memory_space<vmem>>, vector<18x1x4xf32>
    tpu.vector_store %arg12[%c0_20, %c0_21, %c0_22], %26 {strides = array<i32>} : memref<18x18x4xf32, #tpu.memory_space<vmem>>, vector<18x1x4xf32>,
    %c0_23 = arith.constant 0 : index
    %c17 = arith.constant 17 : index
    %c0_24 = arith.constant 0 : index
    %28 = vector.load %arg12[%c0_23, %c17, %c0_24] : memref<18x18x4xf32, #tpu.memory_space<vmem>>, vector<18x1x4xf32>
    tpu.vector_store %arg12[%c0_23, %c17, %c0_24], %26 {strides = array<i32>} : memref<18x18x4xf32, #tpu.memory_space<vmem>>, vector<18x1x4xf32>,
    %c0_25 = arith.constant 0 : index
    %c1 = arith.constant 1 : index
    %c0_26 = arith.constant 0 : index
    %29 = vector.load %arg12[%c0_25, %c1, %c0_26] : memref<18x18x4xf32, #tpu.memory_space<vmem>>, vector<1x16x4xf32>
    %30 = vector.shape_cast %29 : vector<1x16x4xf32> to vector<16x4xf32>
    %31 = vector.shape_cast %21 : vector<16x4xf32> to vector<1x16x4xf32>
    tpu.vector_store %arg12[%c0_25, %c1, %c0_26], %31 {strides = array<i32>} : memref<18x18x4xf32, #tpu.memory_space<vmem>>, vector<1x16x4xf32>,
    %32 = vector.extract_strided_slice %17 {offsets = [1, 0, 0], sizes = [16, 16, 4], strides = [1, 1, 1]} : vector<18x16x4xf32> to vector<16x16x4xf32>
    %c1_27 = arith.constant 1 : index
    %c1_28 = arith.constant 1 : index
    %c0_29 = arith.constant 0 : index
    %33 = vector.load %arg12[%c1_27, %c1_28, %c0_29] : memref<18x18x4xf32, #tpu.memory_space<vmem>>, vector<16x16x4xf32>
    tpu.vector_store %arg12[%c1_27, %c1_28, %c0_29], %32 {strides = array<i32>} : memref<18x18x4xf32, #tpu.memory_space<vmem>>, vector<16x16x4xf32>,
    %c17_30 = arith.constant 17 : index
    %c1_31 = arith.constant 1 : index
    %c0_32 = arith.constant 0 : index
    %34 = vector.load %arg12[%c17_30, %c1_31, %c0_32] : memref<18x18x4xf32, #tpu.memory_space<vmem>>, vector<1x16x4xf32>
    %35 = vector.shape_cast %34 : vector<1x16x4xf32> to vector<16x4xf32>
    %36 = vector.shape_cast %25 : vector<16x4xf32> to vector<1x16x4xf32>
    tpu.vector_store %arg12[%c17_30, %c1_31, %c0_32], %36 {strides = array<i32>} : memref<18x18x4xf32, #tpu.memory_space<vmem>>, vector<1x16x4xf32>,
    %cst_33 = arith.constant 0.000000e+00 : f32
    %37 = vector.broadcast %cst_33 : f32 to vector<256x4xf32>
    %c0_34 = arith.constant 0 : index
    %c0_35 = arith.constant 0 : index
    %c0_36 = arith.constant 0 : index
    %38 = vector.load %arg12[%c0_34, %c0_35, %c0_36] : memref<18x18x4xf32, #tpu.memory_space<vmem>>, vector<16x18x4xf32>
    %39 = vector.extract_strided_slice %38 {offsets = [0, 0, 0], sizes = [16, 16, 4], strides = [1, 1, 1]} : vector<16x18x4xf32> to vector<16x16x4xf32>
    %40 = vector.extract_strided_slice %38 {offsets = [0, 1, 0], sizes = [16, 16, 4], strides = [1, 1, 1]} : vector<16x18x4xf32> to vector<16x16x4xf32>
    %41 = vector.extract_strided_slice %38 {offsets = [0, 2, 0], sizes = [16, 16, 4], strides = [1, 1, 1]} : vector<16x18x4xf32> to vector<16x16x4xf32>
    %42 = tpu.concatenate %39, %40, %41 in 2 : vector<16x16x4xf32>, vector<16x16x4xf32>, vector<16x16x4xf32> -> vector<16x16x12xf32>
    %43 = vector.shape_cast %42 : vector<16x16x12xf32> to vector<256x12xf32>
    %c0_37 = arith.constant 0 : index
    %c0_38 = arith.constant 0 : index
    %c0_39 = arith.constant 0 : index
    %44 = vector.load %arg7[%c0_37, %c0_38, %c0_39] : memref<3x12x4xf32, #tpu.memory_space<vmem>>, vector<1x12x4xf32>
    %45 = vector.shape_cast %44 : vector<1x12x4xf32> to vector<12x4xf32>
    %cst_40 = arith.constant dense<0.000000e+00> : vector<256x4xf32>
    %46 = tpu.matmul %43, %45, %cst_40 {dimension_numbers = #tpu.dot_dimension_numbers<[1], [0], [0], [1], [0, 0, 1, 1], [], []>} : vector<256x12xf32>, vector<12x4xf32>, vector<256x4xf32> -> vector<256x4xf32>
    %47 = arith.addf %37, %46 : vector<256x4xf32>
    %c1_41 = arith.constant 1 : index
    %c0_42 = arith.constant 0 : index
    %c0_43 = arith.constant 0 : index
    %48 = vector.load %arg12[%c1_41, %c0_42, %c0_43] : memref<18x18x4xf32, #tpu.memory_space<vmem>>, vector<16x18x4xf32>
    %49 = vector.extract_strided_slice %48 {offsets = [0, 0, 0], sizes = [16, 16, 4], strides = [1, 1, 1]} : vector<16x18x4xf32> to vector<16x16x4xf32>
    %50 = vector.extract_strided_slice %48 {offsets = [0, 1, 0], sizes = [16, 16, 4], strides = [1, 1, 1]} : vector<16x18x4xf32> to vector<16x16x4xf32>
    %51 = vector.extract_strided_slice %48 {offsets = [0, 2, 0], sizes = [16, 16, 4], strides = [1, 1, 1]} : vector<16x18x4xf32> to vector<16x16x4xf32>
    %52 = tpu.concatenate %49, %50, %51 in 2 : vector<16x16x4xf32>, vector<16x16x4xf32>, vector<16x16x4xf32> -> vector<16x16x12xf32>
    %53 = vector.shape_cast %52 : vector<16x16x12xf32> to vector<256x12xf32>
    %c1_44 = arith.constant 1 : index
    %c0_45 = arith.constant 0 : index
    %c0_46 = arith.constant 0 : index
    %54 = vector.load %arg7[%c1_44, %c0_45, %c0_46] : memref<3x12x4xf32, #tpu.memory_space<vmem>>, vector<1x12x4xf32>
    %55 = vector.shape_cast %54 : vector<1x12x4xf32> to vector<12x4xf32>
    %cst_47 = arith.constant dense<0.000000e+00> : vector<256x4xf32>
    %56 = tpu.matmul %53, %55, %cst_47 {dimension_numbers = #tpu.dot_dimension_numbers<[1], [0], [0], [1], [0, 0, 1, 1], [], []>} : vector<256x12xf32>, vector<12x4xf32>, vector<256x4xf32> -> vector<256x4xf32>
    %57 = arith.addf %47, %56 : vector<256x4xf32>
    %c2 = arith.constant 2 : index
    %c0_48 = arith.constant 0 : index
    %c0_49 = arith.constant 0 : index
    %58 = vector.load %arg12[%c2, %c0_48, %c0_49] : memref<18x18x4xf32, #tpu.memory_space<vmem>>, vector<16x18x4xf32>
    %59 = vector.extract_strided_slice %58 {offsets = [0, 0, 0], sizes = [16, 16, 4], strides = [1, 1, 1]} : vector<16x18x4xf32> to vector<16x16x4xf32>
    %60 = vector.extract_strided_slice %58 {offsets = [0, 1, 0], sizes = [16, 16, 4], strides = [1, 1, 1]} : vector<16x18x4xf32> to vector<16x16x4xf32>
    %61 = vector.extract_strided_slice %58 {offsets = [0, 2, 0], sizes = [16, 16, 4], strides = [1, 1, 1]} : vector<16x18x4xf32> to vector<16x16x4xf32>
    %62 = tpu.concatenate %59, %60, %61 in 2 : vector<16x16x4xf32>, vector<16x16x4xf32>, vector<16x16x4xf32> -> vector<16x16x12xf32>
    %63 = vector.shape_cast %62 : vector<16x16x12xf32> to vector<256x12xf32>
    %c2_50 = arith.constant 2 : index
    %c0_51 = arith.constant 0 : index
    %c0_52 = arith.constant 0 : index
    %64 = vector.load %arg7[%c2_50, %c0_51, %c0_52] : memref<3x12x4xf32, #tpu.memory_space<vmem>>, vector<1x12x4xf32>
    %65 = vector.shape_cast %64 : vector<1x12x4xf32> to vector<12x4xf32>
    %cst_53 = arith.constant dense<0.000000e+00> : vector<256x4xf32>
    %66 = tpu.matmul %63, %65, %cst_53 {dimension_numbers = #tpu.dot_dimension_numbers<[1], [0], [0], [1], [0, 0, 1, 1], [], []>} : vector<256x12xf32>, vector<12x4xf32>, vector<256x4xf32> -> vector<256x4xf32>
    %67 = arith.addf %57, %66 : vector<256x4xf32>
    %c0_54 = arith.constant 0 : index
    %c0_55 = arith.constant 0 : index
    %68 = vector.load %arg8[%c0_54, %c0_55] : memref<1x4xf32, #tpu.memory_space<vmem>>, vector<1x4xf32>
    %69 = vector.broadcast %68 : vector<1x4xf32> to vector<256x4xf32>
    %70 = arith.addf %67, %69 : vector<256x4xf32>
    %cst_56 = arith.constant 0.000000e+00 : f32
    %71 = vector.broadcast %cst_56 : f32 to vector<256x4xf32>
    %72 = arith.maximumf %70, %71 : vector<256x4xf32>
    %c0_57 = arith.constant 0 : index
    %c0_58 = arith.constant 0 : index
    %73 = vector.load %arg9[%c0_57, %c0_58] : memref<4x16xf32, #tpu.memory_space<vmem>>, vector<4x16xf32>
    %cst_59 = arith.constant dense<0.000000e+00> : vector<256x16xf32>
    %74 = tpu.matmul %72, %73, %cst_59 {dimension_numbers = #tpu.dot_dimension_numbers<[1], [0], [0], [1], [0, 0, 1, 1], [], []>} : vector<256x4xf32>, vector<4x16xf32>, vector<256x16xf32> -> vector<256x16xf32>
    %c0_60 = arith.constant 0 : index
    %c0_61 = arith.constant 0 : index
    %75 = vector.load %arg10[%c0_60, %c0_61] : memref<1x16xf32, #tpu.memory_space<vmem>>, vector<1x16xf32>
    %76 = vector.broadcast %75 : vector<1x16xf32> to vector<256x16xf32>
    %77 = arith.addf %74, %76 : vector<256x16xf32>
    %78 = vector.shape_cast %3 : vector<16x16x16xf32> to vector<256x16xf32>
    %79 = arith.addf %77, %78 : vector<256x16xf32>
    %cst_62 = arith.constant 0.000000e+00 : f32
    %80 = vector.broadcast %cst_62 : f32 to vector<256x16xf32>
    %81 = arith.maximumf %79, %80 : vector<256x16xf32>
    %82 = vector.shape_cast %81 : vector<256x16xf32> to vector<16x16x16xf32>
    %c0_63 = arith.constant 0 : index
    %c0_64 = arith.constant 0 : index
    %c0_65 = arith.constant 0 : index
    %c0_66 = arith.constant 0 : index
    %83 = vector.load %arg11[%c0_63, %c0_64, %c0_65, %c0_66] : memref<1x16x16x16xf32, #tpu.memory_space<vmem>>, vector<1x16x16x16xf32>
    %84 = vector.shape_cast %83 : vector<1x16x16x16xf32> to vector<16x16x16xf32>
    %85 = vector.shape_cast %82 : vector<16x16x16xf32> to vector<1x16x16x16xf32>
    tpu.vector_store %arg11[%c0_63, %c0_64, %c0_65, %c0_66], %85 {strides = array<i32>} : memref<1x16x16x16xf32, #tpu.memory_space<vmem>>, vector<1x16x16x16xf32>,
    return
  }
  func.func @transform_0(%arg0: i32, %arg1: i32) -> (i32, i32, i32, i32) {
    %c0_i32 = arith.constant 0 : i32
    %c0_i32_0 = arith.constant 0 : i32
    %c0_i32_1 = arith.constant 0 : i32
    return %arg0, %arg1, %c0_i32, %c0_i32_0 : i32, i32, i32, i32
  }
  func.func @transform_1(%arg0: i32, %arg1: i32) -> (i32, i32, i32, i32) {
    %c16_i32 = arith.constant 16 : i32
    %0 = arith.muli %arg1, %c16_i32 : i32
    %c1_i32 = arith.constant 1 : i32
    %1 = arith.subi %0, %c1_i32 : i32
    %c0_i32 = arith.constant 0 : i32
    %2 = arith.maxsi %1, %c0_i32 : i32
    %c0_i32_0 = arith.constant 0 : i32
    %c0_i32_1 = arith.constant 0 : i32
    %c0_i32_2 = arith.constant 0 : i32
    return %arg0, %2, %c0_i32_0, %c0_i32_1 : i32, i32, i32, i32
  }
  func.func @transform_2(%arg0: i32, %arg1: i32) -> (i32, i32, i32, i32) {
    %c16_i32 = arith.constant 16 : i32
    %0 = arith.muli %arg1, %c16_i32 : i32
    %c16_i32_0 = arith.constant 16 : i32
    %1 = arith.addi %0, %c16_i32_0 : i32
    %c15_i32 = arith.constant 15 : i32
    %2 = arith.minsi %1, %c15_i32 : i32
    %c0_i32 = arith.constant 0 : i32
    %c0_i32_1 = arith.constant 0 : i32
    %c0_i32_2 = arith.constant 0 : i32
    return %arg0, %2, %c0_i32, %c0_i32_1 : i32, i32, i32, i32
  }
  func.func @transform_3(%arg0: i32, %arg1: i32) -> (i32, i32) {
    %c0_i32 = arith.constant 0 : i32
    %c0_i32_0 = arith.constant 0 : i32
    %c0_i32_1 = arith.constant 0 : i32
    return %c0_i32, %c0_i32_0 : i32, i32
  }
  func.func @transform_4(%arg0: i32, %arg1: i32) -> (i32, i32) {
    %c0_i32 = arith.constant 0 : i32
    %c0_i32_0 = arith.constant 0 : i32
    %c0_i32_1 = arith.constant 0 : i32
    return %c0_i32, %c0_i32_0 : i32, i32
  }
  func.func @transform_5(%arg0: i32, %arg1: i32) -> (i32, i32, i32) {
    %c0_i32 = arith.constant 0 : i32
    %c0_i32_0 = arith.constant 0 : i32
    %c0_i32_1 = arith.constant 0 : i32
    %c0_i32_2 = arith.constant 0 : i32
    return %c0_i32, %c0_i32_0, %c0_i32_1 : i32, i32, i32
  }
  func.func @transform_6(%arg0: i32, %arg1: i32) -> (i32, i32) {
    %c0_i32 = arith.constant 0 : i32
    %c0_i32_0 = arith.constant 0 : i32
    %c0_i32_1 = arith.constant 0 : i32
    return %c0_i32, %c0_i32_0 : i32, i32
  }
  func.func @transform_7(%arg0: i32, %arg1: i32) -> (i32, i32) {
    %c0_i32 = arith.constant 0 : i32
    %c0_i32_0 = arith.constant 0 : i32
    %c0_i32_1 = arith.constant 0 : i32
    return %c0_i32, %c0_i32_0 : i32, i32
  }
  func.func @transform_8(%arg0: i32, %arg1: i32) -> (i32, i32) {
    %c0_i32 = arith.constant 0 : i32
    %c0_i32_0 = arith.constant 0 : i32
    %c0_i32_1 = arith.constant 0 : i32
    return %c0_i32, %c0_i32_0 : i32, i32
  }
  func.func @transform_9(%arg0: i32, %arg1: i32) -> (i32, i32, i32, i32) {
    %c0_i32 = arith.constant 0 : i32
    %c0_i32_0 = arith.constant 0 : i32
    %c0_i32_1 = arith.constant 0 : i32
    return %arg0, %arg1, %c0_i32, %c0_i32_0 : i32, i32, i32, i32
  }
}

</mosaic_0001>

<llo_original>
// kernel: tpu_custom_call.1
$region0: #{tpu_custom_call.1}
  #allocation0 [shape = 'u32[]', space=smem, size = 0x4, offset = 0x4, fixed_abs, tag = 'smem constant byte address 0x4 - core index']
  #allocation1 [shape = 'u32[144,128]{1,0:T(1,128)}', space=vmem, size = 0x12000, scoped, tag = 'internal scratch']
  #allocation2 [shape = 'f32[18,18,4]{2,1,0:T(8,128)}', space=vmem, size = 0x36000, scoped, tag = 'scratch operand']
  %s0 = inlined_call_operand.hbm [shape: f32[2,16,16,16], index: 0, kind: input, shape index: {}]
  %s1 = inlined_call_operand.hbm [shape: f32[2,16,16,16], index: 1, kind: input, shape index: {}]
  %s2 = inlined_call_operand.hbm [shape: f32[2,16,16,16], index: 2, kind: input, shape index: {}]
  %s3 = inlined_call_operand.vmem [shape: f32[16,4], index: 3, kind: input, shape index: {}]
  %s4 = inlined_call_operand.vmem [shape: f32[1,4], index: 4, kind: input, shape index: {}]
  %s5 = inlined_call_operand.vmem [shape: f32[3,12,4], index: 5, kind: input, shape index: {}]
  %s6 = inlined_call_operand.vmem [shape: f32[1,4], index: 6, kind: input, shape index: {}]
  %s7 = inlined_call_operand.vmem [shape: f32[4,16], index: 7, kind: input, shape index: {}]
  %s8 = inlined_call_operand.vmem [shape: f32[1,16], index: 8, kind: input, shape index: {}]
  %s9 = inlined_call_operand.hbm [shape: f32[2,16,16,16], index: 9, kind: output, shape index: {}]
  %s10 = sld [smem:[#allocation0]]
  $region81: #{tpu_custom_call.1} parent=0
    _
  %s12 = ssub.s32 1, %s10
  %s13 = scalar_select 0, %s12, %s10
  $region1: #{tpu_custom_call.1} parent=0
    #allocation3 [shape = 'u8[262144]{0}', space=vmem, size = 0x40000, scoped, tag = 'input window, operand 0']
    #allocation4 [shape = 's32[2]{0}', space=sflag, size = 0x8, scoped, tag = 'scoped memory for tpu_custom_call.1']
    #allocation5 [shape = 's32[2]{0}', space=sflag, size = 0x8, scoped, tag = 'scoped memory for tpu_custom_call.1']
    #allocation6 [shape = 'u8[16384]{0}', space=vmem, size = 0x4000, scoped, tag = 'input window, operand 1']
    #allocation7 [shape = 's32[2]{0}', space=sflag, size = 0x8, scoped, tag = 'scoped memory for tpu_custom_call.1']
    #allocation8 [shape = 'u8[16384]{0}', space=vmem, size = 0x4000, scoped, tag = 'input window, operand 2']
    #allocation9 [shape = 'u8[262144]{0}', space=vmem, size = 0x40000, scoped, tag = 'output window, operand 0']
    %14 = vsyncpa [#allocation4], 0
    %s15 = scalar_lea.sflag [#allocation4], 1
    %16 = vsyncpa %s15, 0
    %17 = vsyncpa [#allocation7], 0
    %s18 = scalar_lea.sflag [#allocation7], 1
    %19 = vsyncpa %s18, 0
    %20 = vsyncpa [#allocation5], 0
    %s21 = scalar_lea.sflag [#allocation5], 1
    %22 = vsyncpa %s21, 0
    loop: start=0, step=1, limit=4
    $region2: #{tpu_custom_call.1} parent=1 // loop_pre_header
      _
    $region3: #{tpu_custom_call.1} parent=1 // loop_header
      %s24 = sphi 0, %s28
      %p25 = scmp.ge.s32.totalorder %s24, 4
      %s31 = sphi 0, %s43
      %s32 = sphi 0, %s39
      %s33 = sphi 0, %s31
      %s34 = sphi 0, %s32
      %s35 = sphi 0, %s33
      %s36 = sphi 0, %s34
      %s48 = sphi 0, %s50
      %s51 = sphi 0, %s48
      %s52 = sphi 0, %s51
      %s68 = sphi 0, %s52
      %s84 = sphi 0, %s86
      %s87 = sphi 0, %s84
      %s88 = sphi 0, %s87
      %s104 = sphi 0, %s88
      %s120 = sphi 0, %s122
      %s123 = sphi 0, %s120
      %s124 = sphi 0, %s123
      %s140 = sphi 0, %s124
      %s144 = sphi 0, %s144
      %s146 = sphi 0, %s144
      %s147 = sphi 0, %s146
      %s161 = sphi 0, %s147
      %s165 = sphi 0, %s165
      %s167 = sphi 0, %s165
      %s168 = sphi 0, %s167
      %s182 = sphi 0, %s168
      %s186 = sphi 0, %s186
      %s188 = sphi 0, %s186
      %s189 = sphi 0, %s188
      %s203 = sphi 0, %s189
      %s207 = sphi 0, %s207
      %s209 = sphi 0, %s207
      %s210 = sphi 0, %s209
      %s224 = sphi 0, %s210
      %s228 = sphi 0, %s228
      %s230 = sphi 0, %s228
      %s231 = sphi 0, %s230
      %s245 = sphi 0, %s231
      %s249 = sphi 0, %s249
      %s251 = sphi 0, %s249
      %s252 = sphi 0, %s251
      %s266 = sphi 0, %s252
      %s274 = sphi 0, %s276
      %s277 = sphi 0, %s274
      %s278 = sphi 0, %s277
      %s294 = sphi 0, %s278
    $region4: #{tpu_custom_call.1} parent=1 // loop_header_branch
      %27 = sbr.rel (%p25) target = $region8
    $region5: #{tpu_custom_call.1} parent=1 // loop_body
      %s29 = ssub.s32 %s24, 1
      %s30 = ssub.s32 %s24, 2
      %s37 = sadd.s32 1, %s32
      %p38 = scmp.ge.s32.totalorder %s37, 1
      %s39 = scalar_select %p38, 0, %s37
      %s40 = sadd.s32 1, %s31
      %s41 = scalar_select %p38, %s40, %s31
      %p42 = scmp.ge.s32.totalorder %s41, 2
      %s43 = scalar_select %p42, 0, %s41
      %s44 = ssub.s32 %s31, %s43
      %s45 = ssub.s32 %s32, %s39
      %s46 = sor.u32 %s44, %s45
      %p47 = scmp.eq.s32.totalorder %s46, 0
      %s49 = sadd.s32 %s48, 1
      %s50 = scalar_select %p47, %s48, %s49
      %p53 = pneg %p47
      %p54 = scmp.eq.s32.totalorder %s24, 1
      %p55 = por %p53, %p54
      %p56 = scmp.ne.s32.totalorder %s48, %s51
      %p57 = scmp.eq.s32.totalorder %s24, 0
      %p58 = por %p56, %p57
      %p59 = scmp.ne.s32.totalorder %s48, %s51
      %p60 = scmp.eq.s32.totalorder %s29, 1
      %p61 = por %p59, %p60
      %p62 = scmp.ne.s32.totalorder %s51, %s52
      %p63 = scmp.eq.s32.totalorder %s29, 0
      %p64 = por %p62, %p63
      %p65 = scmp.ne.s32.totalorder %s51, %s52
      %p66 = scmp.eq.s32.totalorder %s30, 1
      %p67 = por %p65, %p66
      %p69 = scmp.ne.s32.totalorder %s52, %s68
      %p70 = scmp.eq.s32.totalorder %s30, 0
      %p71 = por %p69, %p70
      %s72 = smul.u32 %s32, 16
      %s73 = ssub.s32 %s72, 1
      %p74 = scmp.gt.s32.totalorder %s73, 0
      %s75 = scalar_select %p74, %s73, 0
      %s76 = smul.u32 %s39, 16
      %s77 = ssub.s32 %s76, 1
      %p78 = scmp.gt.s32.totalorder %s77, 0
      %s79 = scalar_select %p78, %s77, 0
      %s80 = ssub.s32 %s31, %s43
      %s81 = ssub.s32 %s75, %s79
      %s82 = sor.u32 %s80, %s81
      %p83 = scmp.eq.s32.totalorder %s82, 0
      %s85 = sadd.s32 %s84, 1
      %s86 = scalar_select %p83, %s84, %s85
      %p89 = pneg %p83
      %p90 = scmp.eq.s32.totalorder %s24, 1
      %p91 = por %p89, %p90
      %p92 = scmp.ne.s32.totalorder %s84, %s87
      %p93 = scmp.eq.s32.totalorder %s24, 0
      %p94 = por %p92, %p93
      %p95 = scmp.ne.s32.totalorder %s84, %s87
      %p96 = scmp.eq.s32.totalorder %s29, 1
      %p97 = por %p95, %p96
      %p98 = scmp.ne.s32.totalorder %s87, %s88
      %p99 = scmp.eq.s32.totalorder %s29, 0
      %p100 = por %p98, %p99
      %p101 = scmp.ne.s32.totalorder %s87, %s88
      %p102 = scmp.eq.s32.totalorder %s30, 1
      %p103 = por %p101, %p102
      %p105 = scmp.ne.s32.totalorder %s88, %s104
      %p106 = scmp.eq.s32.totalorder %s30, 0
      %p107 = por %p105, %p106
      %s108 = smul.u32 %s32, 16
      %s109 = sadd.s32 %s108, 16
      %p110 = scmp.lt.s32.totalorder %s109, 15
      %s111 = scalar_select %p110, %s109, 15
      %s112 = smul.u32 %s39, 16
      %s113 = sadd.s32 %s112, 16
      %p114 = scmp.lt.s32.totalorder %s113, 15
      %s115 = scalar_select %p114, %s113, 15
      %s116 = ssub.s32 %s31, %s43
      %s117 = ssub.s32 %s111, %s115
      %s118 = sor.u32 %s116, %s117
      %p119 = scmp.eq.s32.totalorder %s118, 0
      %s121 = sadd.s32 %s120, 1
      %s122 = scalar_select %p119, %s120, %s121
      %p125 = pneg %p119
      %p126 = scmp.eq.s32.totalorder %s24, 1
      %p127 = por %p125, %p126
      %p128 = scmp.ne.s32.totalorder %s120, %s123
      %p129 = scmp.eq.s32.totalorder %s24, 0
      %p130 = por %p128, %p129
      %p131 = scmp.ne.s32.totalorder %s120, %s123
      %p132 = scmp.eq.s32.totalorder %s29, 1
      %p133 = por %p131, %p132
      %p134 = scmp.ne.s32.totalorder %s123, %s124
      %p135 = scmp.eq.s32.totalorder %s29, 0
      %p136 = por %p134, %p135
      %p137 = scmp.ne.s32.totalorder %s123, %s124
      %p138 = scmp.eq.s32.totalorder %s30, 1
      %p139 = por %p137, %p138
      %p141 = scmp.ne.s32.totalorder %s124, %s140
      %p142 = scmp.eq.s32.totalorder %s30, 0
      %p143 = por %p141, %p142
      %s145 = sadd.s32 %s144, 1
      %p148 = scmp.eq.s32.totalorder %s24, 1
      %p149 = scmp.ne.s32.totalorder %s144, %s146
      %p150 = scmp.eq.s32.totalorder %s24, 0
      %p151 = por %p149, %p150
      %p152 = scmp.ne.s32.totalorder %s144, %s146
      %p153 = scmp.eq.s32.totalorder %s29, 1
      %p154 = por %p152, %p153
      %p155 = scmp.ne.s32.totalorder %s146, %s147
      %p156 = scmp.eq.s32.totalorder %s29, 0
      %p157 = por %p155, %p156
      %p158 = scmp.ne.s32.totalorder %s146, %s147
      %p159 = scmp.eq.s32.totalorder %s30, 1
      %p160 = por %p158, %p159
      %p162 = scmp.ne.s32.totalorder %s147, %s161
      %p163 = scmp.eq.s32.totalorder %s30, 0
      %p164 = por %p162, %p163
      %s166 = sadd.s32 %s165, 1
      %p169 = scmp.eq.s32.totalorder %s24, 1
      %p170 = scmp.ne.s32.totalorder %s165, %s167
      %p171 = scmp.eq.s32.totalorder %s24, 0
      %p172 = por %p170, %p171
      %p173 = scmp.ne.s32.totalorder %s165, %s167
      %p174 = scmp.eq.s32.totalorder %s29, 1
      %p175 = por %p173, %p174
      %p176 = scmp.ne.s32.totalorder %s167, %s168
      %p177 = scmp.eq.s32.totalorder %s29, 0
      %p178 = por %p176, %p177
      %p179 = scmp.ne.s32.totalorder %s167, %s168
      %p180 = scmp.eq.s32.totalorder %s30, 1
      %p181 = por %p179, %p180
      %p183 = scmp.ne.s32.totalorder %s168, %s182
      %p184 = scmp.eq.s32.totalorder %s30, 0
      %p185 = por %p183, %p184
      %s187 = sadd.s32 %s186, 1
      %p190 = scmp.eq.s32.totalorder %s24, 1
      %p191 = scmp.ne.s32.totalorder %s186, %s188
      %p192 = scmp.eq.s32.totalorder %s24, 0
      %p193 = por %p191, %p192
      %p194 = scmp.ne.s32.totalorder %s186, %s188
      %p195 = scmp.eq.s32.totalorder %s29, 1
      %p196 = por %p194, %p195
      %p197 = scmp.ne.s32.totalorder %s188, %s189
      %p198 = scmp.eq.s32.totalorder %s29, 0
      %p199 = por %p197, %p198
      %p200 = scmp.ne.s32.totalorder %s188, %s189
      %p201 = scmp.eq.s32.totalorder %s30, 1
      %p202 = por %p200, %p201
      %p204 = scmp.ne.s32.totalorder %s189, %s203
      %p205 = scmp.eq.s32.totalorder %s30, 0
      %p206 = por %p204, %p205
      %s208 = sadd.s32 %s207, 1
      %p211 = scmp.eq.s32.totalorder %s24, 1
      %p212 = scmp.ne.s32.totalorder %s207, %s209
      %p213 = scmp.eq.s32.totalorder %s24, 0
      %p214 = por %p212, %p213
      %p215 = scmp.ne.s32.totalorder %s207, %s209
      %p216 = scmp.eq.s32.totalorder %s29, 1
      %p217 = por %p215, %p216
      %p218 = scmp.ne.s32.totalorder %s209, %s210
      %p219 = scmp.eq.s32.totalorder %s29, 0
      %p220 = por %p218, %p219
      %p221 = scmp.ne.s32.totalorder %s209, %s210
      %p222 = scmp.eq.s32.totalorder %s30, 1
      %p223 = por %p221, %p222
      %p225 = scmp.ne.s32.totalorder %s210, %s224
      %p226 = scmp.eq.s32.totalorder %s30, 0
      %p227 = por %p225, %p226
      %s229 = sadd.s32 %s228, 1
      %p232 = scmp.eq.s32.totalorder %s24, 1
      %p233 = scmp.ne.s32.totalorder %s228, %s230
      %p234 = scmp.eq.s32.totalorder %s24, 0
      %p235 = por %p233, %p234
      %p236 = scmp.ne.s32.totalorder %s228, %s230
      %p237 = scmp.eq.s32.totalorder %s29, 1
      %p238 = por %p236, %p237
      %p239 = scmp.ne.s32.totalorder %s230, %s231
      %p240 = scmp.eq.s32.totalorder %s29, 0
      %p241 = por %p239, %p240
      %p242 = scmp.ne.s32.totalorder %s230, %s231
      %p243 = scmp.eq.s32.totalorder %s30, 1
      %p244 = por %p242, %p243
      %p246 = scmp.ne.s32.totalorder %s231, %s245
      %p247 = scmp.eq.s32.totalorder %s30, 0
      %p248 = por %p246, %p247
      %s250 = sadd.s32 %s249, 1
      %p253 = scmp.eq.s32.totalorder %s24, 1
      %p254 = scmp.ne.s32.totalorder %s249, %s251
      %p255 = scmp.eq.s32.totalorder %s24, 0
      %p256 = por %p254, %p255
      %p257 = scmp.ne.s32.totalorder %s249, %s251
      %p258 = scmp.eq.s32.totalorder %s29, 1
      %p259 = por %p257, %p258
      %p260 = scmp.ne.s32.totalorder %s251, %s252
      %p261 = scmp.eq.s32.totalorder %s29, 0
      %p262 = por %p260, %p261
      %p263 = scmp.ne.s32.totalorder %s251, %s252
      %p264 = scmp.eq.s32.totalorder %s30, 1
      %p265 = por %p263, %p264
      %p267 = scmp.ne.s32.totalorder %s252, %s266
      %p268 = scmp.eq.s32.totalorder %s30, 0
      %p269 = por %p267, %p268
      %s270 = ssub.s32 %s31, %s43
      %s271 = ssub.s32 %s32, %s39
      %s272 = sor.u32 %s270, %s271
      %p273 = scmp.eq.s32.totalorder %s272, 0
      %s275 = sadd.s32 %s274, 1
      %s276 = scalar_select %p273, %s274, %s275
      %p279 = pneg %p273
      %p280 = scmp.eq.s32.totalorder %s24, 1
      %p281 = por %p279, %p280
      %p282 = scmp.ne.s32.totalorder %s274, %s277
      %p283 = scmp.eq.s32.totalorder %s24, 0
      %p284 = por %p282, %p283
      %p285 = scmp.ne.s32.totalorder %s274, %s277
      %p286 = scmp.eq.s32.totalorder %s29, 1
      %p287 = por %p285, %p286
      %p288 = scmp.ne.s32.totalorder %s277, %s278
      %p289 = scmp.eq.s32.totalorder %s29, 0
      %p290 = por %p288, %p289
      %p291 = scmp.ne.s32.totalorder %s277, %s278
      %p292 = scmp.eq.s32.totalorder %s30, 1
      %p293 = por %p291, %p292
      %p295 = scmp.ne.s32.totalorder %s278, %s294
      %p296 = scmp.eq.s32.totalorder %s30, 0
      %p297 = por %p295, %p296
      %p298 = scmp.le.s32.totalorder 1, %s24
      %p299 = scmp.lt.s32.totalorder %s24, 3
      %p300 = pnand %p298, %p299
      %p301 = pneg %p300
      // Predicated region
      $region9: #{tpu_custom_call.1} parent=5 // pred_check
        _
      $region10: #{tpu_custom_call.1} parent=5 // pred_check_branch
        %303 = sbr.rel (%p300) target = $region12
      $region11: #{tpu_custom_call.1} parent=5 // pred_region
        %s304 = ssub.s32 %s24, 1
        // Predicated region
        $region13: #{tpu_custom_call.1} parent=11 // pred_check
          %p305 = pneg %p157
        $region14: #{tpu_custom_call.1} parent=11 // pred_check_branch
          %307 = sbr.rel (%p305) target = $region16
        $region15: #{tpu_custom_call.1} parent=11 // pred_region
          _
        $region16: #{tpu_custom_call.1} parent=11 // pred_fallthru
          _
        // Predicated region
        $region17: #{tpu_custom_call.1} parent=11 // pred_check
          %p308 = pneg %p178
        $region18: #{tpu_custom_call.1} parent=11 // pred_check_branch
          %310 = sbr.rel (%p308) target = $region20
        $region19: #{tpu_custom_call.1} parent=11 // pred_region
          _
        $region20: #{tpu_custom_call.1} parent=11 // pred_fallthru
          _
        // Predicated region
        $region21: #{tpu_custom_call.1} parent=11 // pred_check
          %p311 = pneg %p199
        $region22: #{tpu_custom_call.1} parent=11 // pred_check_branch
          %313 = sbr.rel (%p311) target = $region24
        $region23: #{tpu_custom_call.1} parent=11 // pred_region
          _
        $region24: #{tpu_custom_call.1} parent=11 // pred_fallthru
          _
        // Predicated region
        $region25: #{tpu_custom_call.1} parent=11 // pred_check
          %p314 = pneg %p220
        $region26: #{tpu_custom_call.1} parent=11 // pred_check_branch
          %316 = sbr.rel (%p314) target = $region28
        $region27: #{tpu_custom_call.1} parent=11 // pred_region
          _
        $region28: #{tpu_custom_call.1} parent=11 // pred_fallthru
          _
        // Predicated region
        $region29: #{tpu_custom_call.1} parent=11 // pred_check
          %p317 = pneg %p241
        $region30: #{tpu_custom_call.1} parent=11 // pred_check_branch
          %319 = sbr.rel (%p317) target = $region32
        $region31: #{tpu_custom_call.1} parent=11 // pred_region
          _
        $region32: #{tpu_custom_call.1} parent=11 // pred_fallthru
          _
        // Predicated region
        $region33: #{tpu_custom_call.1} parent=11 // pred_check
          %p320 = pneg %p262
        $region34: #{tpu_custom_call.1} parent=11 // pred_check_branch
          %322 = sbr.rel (%p320) target = $region36
        $region35: #{tpu_custom_call.1} parent=11 // pred_region
          _
        $region36: #{tpu_custom_call.1} parent=11 // pred_fallthru
          _
      $region12: #{tpu_custom_call.1} parent=5 // pred_fallthru
        _
      %p323 = scmp.lt.s32.totalorder %s24, 2
      // Predicated region
      $region37: #{tpu_custom_call.1} parent=5 // pred_check
        %p324 = pneg %p323
      $region38: #{tpu_custom_call.1} parent=5 // pred_check_branch
        %326 = sbr.rel (%p324) target = $region40
      $region39: #{tpu_custom_call.1} parent=5 // pred_region
        // Predicated region
        $region41: #{tpu_custom_call.1} parent=39 // pred_check
          %p327 = pneg %p58
        $region42: #{tpu_custom_call.1} parent=39 // pred_check_branch
          %329 = sbr.rel (%p327) target = $region44
        $region43: #{tpu_custom_call.1} parent=39 // pred_region
          %s330 = sand.u32 %s48, 1
          %s331 = scalar_lea.sflag [#allocation4], %s330
          %s332 = sand.u32 %s48, 1
          %s333 = smul.addr %s332, 256
          %s334 = scalar_lea.vmem [#allocation3], %s333
          %s335 = smul.u32 16, %s32
          %s337 = ssub.s32 4096, 4096
          %338 = vsyncadd %s331, %s337
          %s339 = smul.addr %s335, 2
          %s340 = smul.addr %s31, 32
          %s341 = sadd.s32 %s339, %s340
          %s342 = smul.addr %s341, 128
          %s343 = scalar_lea.hbm %s0, %s342
          %s344 = sshll.u32 %s334, 4
          %s345 = int_to_ptr.vmem [resolvable:$true] %s344
          %350 = dma.hbm_to_vmem [thread:$0]  %s343, 4096, %s345, %s331, 128, 128, 8
        $region44: #{tpu_custom_call.1} parent=39 // pred_fallthru
          _
        // Predicated region
        $region45: #{tpu_custom_call.1} parent=39 // pred_check
          %p351 = pneg %p94
        $region46: #{tpu_custom_call.1} parent=39 // pred_check_branch
          %353 = sbr.rel (%p351) target = $region48
        $region47: #{tpu_custom_call.1} parent=39 // pred_region
          %s354 = sand.u32 %s24, 1
          %s355 = scalar_lea.sflag [#allocation7], %s354
          %s356 = sand.u32 %s84, 1
          %s357 = smul.addr %s356, 16
          %s358 = scalar_lea.vmem [#allocation6], %s357
          %s359 = smul.u32 %s32, 16
          %s360 = ssub.s32 %s359, 1
          %p361 = scmp.gt.s32.totalorder %s360, 0
          %s362 = scalar_select %p361, %s360, 0
          %s364 = ssub.s32 256, 256
          %365 = vsyncadd %s355, %s364
          %s366 = smul.addr %s362, 2
          %s367 = smul.addr %s31, 32
          %s368 = sadd.s32 %s366, %s367
          %s369 = smul.addr %s368, 128
          %s370 = scalar_lea.hbm %s1, %s369
          %s371 = sshll.u32 %s358, 4
          %s372 = int_to_ptr.vmem [resolvable:$true] %s371
          %377 = dma.hbm_to_vmem [thread:$0]  %s370, 256, %s372, %s355, 128, 128, 8
        $region48: #{tpu_custom_call.1} parent=39 // pred_fallthru
          _
        // Predicated region
        $region49: #{tpu_custom_call.1} parent=39 // pred_check
          %p378 = pneg %p130
        $region50: #{tpu_custom_call.1} parent=39 // pred_check_branch
          %380 = sbr.rel (%p378) target = $region52
        $region51: #{tpu_custom_call.1} parent=39 // pred_region
          %s381 = sand.u32 %s24, 1
          %s382 = scalar_lea.sflag [#allocation7], %s381
          %s383 = sand.u32 %s120, 1
          %s384 = smul.addr %s383, 16
          %s385 = scalar_lea.vmem [#allocation8], %s384
          %s386 = smul.u32 %s32, 16
          %s387 = sadd.s32 %s386, 16
          %p388 = scmp.lt.s32.totalorder %s387, 15
          %s389 = scalar_select %p388, %s387, 15
          %s391 = ssub.s32 256, 256
          %392 = vsyncadd %s382, %s391
          %s393 = smul.addr %s389, 2
          %s394 = smul.addr %s31, 32
          %s395 = sadd.s32 %s393, %s394
          %s396 = smul.addr %s395, 128
          %s397 = scalar_lea.hbm %s2, %s396
          %s398 = sshll.u32 %s385, 4
          %s399 = int_to_ptr.vmem [resolvable:$true] %s398
          %404 = dma.hbm_to_vmem [thread:$0]  %s397, 256, %s399, %s382, 128, 128, 8
        $region52: #{tpu_custom_call.1} parent=39 // pred_fallthru
          _
      $region40: #{tpu_custom_call.1} parent=5 // pred_fallthru
        _
      %p405 = scmp.le.s32.totalorder 1, %s24
      %p406 = scmp.lt.s32.totalorder %s24, 3
      %p407 = pnand %p405, %p406
      %p408 = pneg %p407
      // Predicated region
      $region53: #{tpu_custom_call.1} parent=5 // pred_check
        _
      $region54: #{tpu_custom_call.1} parent=5 // pred_check_branch
        %410 = sbr.rel (%p407) target = $region56
      $region55: #{tpu_custom_call.1} parent=5 // pred_region
        %s411 = ssub.s32 %s24, 1
        %s412 = sand.u32 %s51, 1
        %s413 = scalar_lea.sflag [#allocation4], %s412
        %s414 = sand.u32 %s51, 1
        %s415 = smul.addr %s414, 256
        %s416 = scalar_lea.vmem [#allocation3], %s415
        // Predicated region
        $region57: #{tpu_custom_call.1} parent=55 // pred_check
          %p417 = pneg %p64
        $region58: #{tpu_custom_call.1} parent=55 // pred_check_branch
          %419 = sbr.rel (%p417) target = $region60
        $region59: #{tpu_custom_call.1} parent=55 // pred_region
          %420 = dma.done %s413, 4096
        $region60: #{tpu_custom_call.1} parent=55 // pred_fallthru
          _
        %s421 = sand.u32 %s29, 1
        %s422 = scalar_lea.sflag [#allocation7], %s421
        %s423 = sand.u32 %s87, 1
        %s424 = smul.addr %s423, 16
        %s425 = scalar_lea.vmem [#allocation6], %s424
        // Predicated region
        $region61: #{tpu_custom_call.1} parent=55 // pred_check
          %p426 = pneg %p100
        $region62: #{tpu_custom_call.1} parent=55 // pred_check_branch
          %428 = sbr.rel (%p426) target = $region64
        $region63: #{tpu_custom_call.1} parent=55 // pred_region
          %429 = dma.done %s422, 256
        $region64: #{tpu_custom_call.1} parent=55 // pred_fallthru
          _
        %s430 = sand.u32 %s29, 1
        %s431 = scalar_lea.sflag [#allocation7], %s430
        %s432 = sand.u32 %s123, 1
        %s433 = smul.addr %s432, 16
        %s434 = scalar_lea.vmem [#allocation8], %s433
        // Predicated region
        $region65: #{tpu_custom_call.1} parent=55 // pred_check
          %p435 = pneg %p136
        $region66: #{tpu_custom_call.1} parent=55 // pred_check_branch
          %437 = sbr.rel (%p435) target = $region68
        $region67: #{tpu_custom_call.1} parent=55 // pred_region
          %438 = dma.done %s431, 256
        $region68: #{tpu_custom_call.1} parent=55 // pred_fallthru
          _
        %s439 = sand.u32 %s51, 1
        %s440 = scalar_lea.sflag [#allocation4], %s439
        %s441 = sand.u32 %s51, 1
        %s442 = smul.addr %s441, 256
        %s443 = scalar_lea.vmem [#allocation3], %s442
        %p444 = pneg %p64
        %p445 = pneg %p61
        %s446 = sand.u32 %s29, 1
        %s447 = scalar_lea.sflag [#allocation7], %s446
        %s448 = sand.u32 %s87, 1
        %s449 = smul.addr %s448, 16
        %s450 = scalar_lea.vmem [#allocation6], %s449
        %p451 = pneg %p100
        %p452 = pneg %p97
        %s453 = sand.u32 %s29, 1
        %s454 = scalar_lea.sflag [#allocation7], %s453
        %s455 = sand.u32 %s123, 1
        %s456 = smul.addr %s455, 16
        %s457 = scalar_lea.vmem [#allocation8], %s456
        %p458 = pneg %p136
        %p459 = pneg %p133
        %p460 = pneg %p157
        %p461 = pneg %p154
        %p462 = pneg %p178
        %p463 = pneg %p175
        %p464 = pneg %p199
        %p465 = pneg %p196
        %p466 = pneg %p220
        %p467 = pneg %p217
        %p468 = pneg %p241
        %p469 = pneg %p238
        %p470 = pneg %p262
        %p471 = pneg %p259
        %p472 = pneg %p290
        %p473 = pneg %p287
        %s474 = sand.u32 %s277, 1
        %s475 = scalar_lea.sflag [#allocation5], %s474
        %s476 = sand.u32 %s277, 1
        %s477 = smul.addr %s476, 256
        %s478 = scalar_lea.vmem [#allocation9], %s477
        %s479 = smul.u32 16, %s34
        %s480 = smul.u32 %s34, 16
        %s481 = ssub.s32 %s480, 1
        %p482 = scmp.gt.s32.totalorder %s481, 0
        %s483 = scalar_select %p482, %s481, 0
        %s484 = smul.u32 %s34, 16
        %s485 = sadd.s32 %s484, 16
        %p486 = scmp.lt.s32.totalorder %s485, 15
        %s487 = scalar_select %p486, %s485, 15
        %s488 = smul.u32 16, %s34
        %p489 = scmp.eq.s32.totalorder %s34, 0
        %v490 = vld [vmem:[%s416] sm:$0xff]
        %v491 = vld [vmem:[%s416 + $0x8] sm:$0xff]
        %v492 = vld [vmem:[%s416 + $0x10] sm:$0xff]
        %v493 = vld [vmem:[%s416 + $0x18] sm:$0xff]
        %v494 = vld [vmem:[%s416 + $0x20] sm:$0xff]
        %v495 = vld [vmem:[%s416 + $0x28] sm:$0xff]
        %v496 = vld [vmem:[%s416 + $0x30] sm:$0xff]
        %v497 = vld [vmem:[%s416 + $0x38] sm:$0xff]
        %v498 = vld [vmem:[%s416 + $0x40] sm:$0xff]
        %v499 = vld [vmem:[%s416 + $0x48] sm:$0xff]
        %v500 = vld [vmem:[%s416 + $0x50] sm:$0xff]
        %v501 = vld [vmem:[%s416 + $0x58] sm:$0xff]
        %v502 = vld [vmem:[%s416 + $0x60] sm:$0xff]
        %v503 = vld [vmem:[%s416 + $0x68] sm:$0xff]
        %v504 = vld [vmem:[%s416 + $0x70] sm:$0xff]
        %v505 = vld [vmem:[%s416 + $0x78] sm:$0xff]
        %v506 = vld [vmem:[%s416 + $0x80] sm:$0xff]
        %v507 = vld [vmem:[%s416 + $0x88] sm:$0xff]
        %v508 = vld [vmem:[%s416 + $0x90] sm:$0xff]
        %v509 = vld [vmem:[%s416 + $0x98] sm:$0xff]
        %v510 = vld [vmem:[%s416 + $0xa0] sm:$0xff]
        %v511 = vld [vmem:[%s416 + $0xa8] sm:$0xff]
        %v512 = vld [vmem:[%s416 + $0xb0] sm:$0xff]
        %v513 = vld [vmem:[%s416 + $0xb8] sm:$0xff]
        %v514 = vld [vmem:[%s416 + $0xc0] sm:$0xff]
        %v515 = vld [vmem:[%s416 + $0xc8] sm:$0xff]
        %v516 = vld [vmem:[%s416 + $0xd0] sm:$0xff]
        %v517 = vld [vmem:[%s416 + $0xd8] sm:$0xff]
        %v518 = vld [vmem:[%s416 + $0xe0] sm:$0xff]
        %v519 = vld [vmem:[%s416 + $0xe8] sm:$0xff]
        %v520 = vld [vmem:[%s416 + $0xf0] sm:$0xff]
        %v521 = vld [vmem:[%s416 + $0xf8] sm:$0xff]
        %v522 = vld [vmem:[%s425] sm:$0xff]
        %v523 = vld [vmem:[%s425 + $0x8] sm:$0xff]
        %v524 = vld [vmem:[%s434] sm:$0xff]
        %v525 = vld [vmem:[%s434 + $0x8] sm:$0xff]
        %v526 = vld [vmem:[%s3] sm:$0xff]
        %v527 = vld [vmem:[%s3 + $0x8] sm:$0xff]
        %v528 = vld [vmem:[%s4] sm:$0x1]
        %v530 = vlaneseq
        %v531 = vshrl.u32 %v530, 7
        %v532 = vsub.s32 0, %v531
        %v533 = vrot.slane %v528, %v532
        %vm535 = vcmask 130048
        %v537 = vsel %vm535, %v522, 0
        %v540 = vsel %vm535, %v523, 0
        %v543 = vsel %vm535, %v490, 0
        %v546 = vsel %vm535, %v491, 0
        %v549 = vsel %vm535, %v492, 0
        %v552 = vsel %vm535, %v493, 0
        %v555 = vsel %vm535, %v494, 0
        %v558 = vsel %vm535, %v495, 0
        %v561 = vsel %vm535, %v496, 0
        %v564 = vsel %vm535, %v497, 0
        %v567 = vsel %vm535, %v498, 0
        %v570 = vsel %vm535, %v499, 0
        %v573 = vsel %vm535, %v500, 0
        %v576 = vsel %vm535, %v501, 0
        %v579 = vsel %vm535, %v502, 0
        %v582 = vsel %vm535, %v503, 0
        %v585 = vsel %vm535, %v504, 0
        %v588 = vsel %vm535, %v505, 0
        %v591 = vsel %vm535, %v506, 0
        %v594 = vsel %vm535, %v507, 0
        %v597 = vsel %vm535, %v508, 0
        %v600 = vsel %vm535, %v509, 0
        %v603 = vsel %vm535, %v510, 0
        %v606 = vsel %vm535, %v511, 0
        %v609 = vsel %vm535, %v512, 0
        %v612 = vsel %vm535, %v513, 0
        %v615 = vsel %vm535, %v514, 0
        %v618 = vsel %vm535, %v515, 0
        %v621 = vsel %vm535, %v516, 0
        %v624 = vsel %vm535, %v517, 0
        %v627 = vsel %vm535, %v518, 0
        %v630 = vsel %vm535, %v519, 0
        %v633 = vsel %vm535, %v520, 0
        %v636 = vsel %vm535, %v521, 0
        %v639 = vsel %vm535, %v524, 0
        %v642 = vsel %vm535, %v525, 0
        %644 = vmatprep.subr.mxu0 0.0
        %645 = vmatpush1.msra.mxu0 %v526
        %646 = vmatprep.subr.mxu0 0.0
        %647 = vmatpush1.msra.mxu0 %v527
        %648 = vmatprep.subr.mxu0 0.0
        %649 = vmatpush1.msra.mxu0 0.0
        %650 = vmatprep.subr.mxu0 0.0
        %651 = vmatpush1.msra.mxu0 0.0
        %652 = vmatprep.subr.mxu0 0.0
        %653 = vmatpush1.msra.mxu0 0.0
        %654 = vmatprep.subr.mxu0 0.0
        %655 = vmatpush1.msra.mxu0 0.0
        %656 = vmatprep.subr.mxu0 0.0
        %657 = vmatpush1.msra.mxu0 0.0
        %658 = vmatprep.subr.mxu0 0.0
        %659 = vmatpush1.msra.mxu0 0.0
        %660 = vmatprep.subr.mxu0 0.0
        %661 = vmatpush1.msra.mxu0 0.0
        %662 = vmatprep.subr.mxu0 0.0
        %663 = vmatpush1.msra.mxu0 0.0
        %664 = vmatprep.subr.mxu0 0.0
        %665 = vmatpush1.msra.mxu0 0.0
        %666 = vmatprep.subr.mxu0 0.0
        %667 = vmatpush1.msra.mxu0 0.0
        %668 = vmatprep.subr.mxu0 0.0
        %669 = vmatpush1.msra.mxu0 0.0
        %670 = vmatprep.subr.mxu0 0.0
        %671 = vmatpush1.msra.mxu0 0.0
        %672 = vmatprep.subr.mxu0 0.0
        %673 = vmatpush1.msra.mxu0 0.0
        %674 = vmatprep.subr.mxu0 0.0
        %675 = vmatpush1.msra.mxu0 0.0
        %676 = vmatprep.subr.mxu0 0.0
        %677 = vmatpush1.msra.mxu0 0.0
        %678 = vmatprep.subr.mxu0 0.0
        %679 = vmatpush1.msra.mxu0 0.0
        %680 = vmatprep.subr.mxu0 0.0
        %681 = vmatpush1.msra.mxu0 0.0
        %682 = vmatprep.subr.mxu0 0.0
        %683 = vmatpush1.msra.mxu0 0.0
        %684 = vmatprep.subr.mxu0 0.0
        %685 = vmatpush1.msra.mxu0 0.0
        %686 = vmatprep.subr.mxu0 0.0
        %687 = vmatpush1.msra.mxu0 0.0
        %688 = vmatprep.subr.mxu0 0.0
        %689 = vmatpush1.msra.mxu0 0.0
        %690 = vmatprep.subr.mxu0 0.0
        %691 = vmatpush1.msra.mxu0 0.0
        %692 = vmatprep.subr.mxu0 0.0
        %693 = vmatpush1.msra.mxu0 0.0
        %694 = vmatprep.subr.mxu0 0.0
        %695 = vmatpush1.msra.mxu0 0.0
        %696 = vmatprep.subr.mxu0 0.0
        %697 = vmatpush1.msra.mxu0 0.0
        %698 = vmatprep.subr.mxu0 0.0
        %699 = vmatpush1.msra.mxu0 0.0
        %700 = vmatprep.subr.mxu0 0.0
        %701 = vmatpush1.msra.mxu0 0.0
        %702 = vmatprep.subr.mxu0 0.0
        %703 = vmatpush1.msra.mxu0 0.0
        %704 = vmatprep.subr.mxu0 0.0
        %705 = vmatpush1.msra.mxu0 0.0
        %706 = vmatprep.subr.mxu0 0.0
        %707 = vmatpush1.msra.mxu0 0.0
        %708 = vmatprep.mubr.f32.mxu0 0.0
        %709 = vmatmul.mubr.f32.gmra.mrb[0].mxu0 %v537
        %v710 = vpop.f32.mrb[0].mxu0
        %v711 = vadd.f32 %v533, %v710
        %v712 = vpop.f32.mrb[0].mxu0
        %713 = vmatprep.mubr.f32.mxu0 0.0
        %714 = vmatmul.mubr.f32.gmra.mrb[0].mxu0 %v540
        %v715 = vpop.f32.mrb[0].mxu0
        %v716 = vadd.f32 %v533, %v715
        %v717 = vpop.f32.mrb[0].mxu0
        %718 = vmatprep.mubr.f32.mxu0 0.0
        %719 = vmatmul.mubr.f32.gmra.mrb[0].mxu0 %v543
        %v720 = vpop.f32.mrb[0].mxu0
        %v721 = vadd.f32 %v533, %v720
        %v722 = vpop.f32.mrb[0].mxu0
        %723 = vmatprep.mubr.f32.mxu0 0.0
        %724 = vmatmul.mubr.f32.gmra.mrb[0].mxu0 %v546
        %v725 = vpop.f32.mrb[0].mxu0
        %v726 = vadd.f32 %v533, %v725
        %v727 = vpop.f32.mrb[0].mxu0
        %728 = vmatprep.mubr.f32.mxu0 0.0
        %729 = vmatmul.mubr.f32.gmra.mrb[0].mxu0 %v549
        %v730 = vpop.f32.mrb[0].mxu0
        %v731 = vadd.f32 %v533, %v730
        %v732 = vpop.f32.mrb[0].mxu0
        %733 = vmatprep.mubr.f32.mxu0 0.0
        %734 = vmatmul.mubr.f32.gmra.mrb[0].mxu0 %v552
        %v735 = vpop.f32.mrb[0].mxu0
        %v736 = vadd.f32 %v533, %v735
        %v737 = vpop.f32.mrb[0].mxu0
        %738 = vmatprep.mubr.f32.mxu0 0.0
        %739 = vmatmul.mubr.f32.gmra.mrb[0].mxu0 %v555
        %v740 = vpop.f32.mrb[0].mxu0
        %v741 = vadd.f32 %v533, %v740
        %v742 = vpop.f32.mrb[0].mxu0
        %743 = vmatprep.mubr.f32.mxu0 0.0
        %744 = vmatmul.mubr.f32.gmra.mrb[0].mxu0 %v558
        %v745 = vpop.f32.mrb[0].mxu0
        %v746 = vadd.f32 %v533, %v745
        %v747 = vpop.f32.mrb[0].mxu0
        %748 = vmatprep.mubr.f32.mxu0 0.0
        %749 = vmatmul.mubr.f32.gmra.mrb[0].mxu0 %v561
        %v750 = vpop.f32.mrb[0].mxu0
        %v751 = vadd.f32 %v533, %v750
        %v752 = vpop.f32.mrb[0].mxu0
        %753 = vmatprep.mubr.f32.mxu0 0.0
        %754 = vmatmul.mubr.f32.gmra.mrb[0].mxu0 %v564
        %v755 = vpop.f32.mrb[0].mxu0
        %v756 = vadd.f32 %v533, %v755
        %v757 = vpop.f32.mrb[0].mxu0
        %758 = vmatprep.mubr.f32.mxu0 0.0
        %759 = vmatmul.mubr.f32.gmra.mrb[0].mxu0 %v567
        %v760 = vpop.f32.mrb[0].mxu0
        %v761 = vadd.f32 %v533, %v760
        %v762 = vpop.f32.mrb[0].mxu0
        %763 = vmatprep.mubr.f32.mxu0 0.0
        %764 = vmatmul.mubr.f32.gmra.mrb[0].mxu0 %v570
        %v765 = vpop.f32.mrb[0].mxu0
        %v766 = vadd.f32 %v533, %v765
        %v767 = vpop.f32.mrb[0].mxu0
        %768 = vmatprep.mubr.f32.mxu0 0.0
        %769 = vmatmul.mubr.f32.gmra.mrb[0].mxu0 %v573
        %v770 = vpop.f32.mrb[0].mxu0
        %v771 = vadd.f32 %v533, %v770
        %v772 = vpop.f32.mrb[0].mxu0
        %773 = vmatprep.mubr.f32.mxu0 0.0
        %774 = vmatmul.mubr.f32.gmra.mrb[0].mxu0 %v576
        %v775 = vpop.f32.mrb[0].mxu0
        %v776 = vadd.f32 %v533, %v775
        %v777 = vpop.f32.mrb[0].mxu0
        %778 = vmatprep.mubr.f32.mxu0 0.0
        %779 = vmatmul.mubr.f32.gmra.mrb[0].mxu0 %v579
        %v780 = vpop.f32.mrb[0].mxu0
        %v781 = vadd.f32 %v533, %v780
        %v782 = vpop.f32.mrb[0].mxu0
        %783 = vmatprep.mubr.f32.mxu0 0.0
        %784 = vmatmul.mubr.f32.gmra.mrb[0].mxu0 %v582
        %v785 = vpop.f32.mrb[0].mxu0
        %v786 = vadd.f32 %v533, %v785
        %v787 = vpop.f32.mrb[0].mxu0
        %788 = vmatprep.mubr.f32.mxu0 0.0
        %789 = vmatmul.mubr.f32.gmra.mrb[0].mxu0 %v585
        %v790 = vpop.f32.mrb[0].mxu0
        %v791 = vadd.f32 %v533, %v790
        %v792 = vpop.f32.mrb[0].mxu0
        %793 = vmatprep.mubr.f32.mxu0 0.0
        %794 = vmatmul.mubr.f32.gmra.mrb[0].mxu0 %v588
        %v795 = vpop.f32.mrb[0].mxu0
        %v796 = vadd.f32 %v533, %v795
        %v797 = vpop.f32.mrb[0].mxu0
        %798 = vmatprep.mubr.f32.mxu0 0.0
        %799 = vmatmul.mubr.f32.gmra.mrb[0].mxu0 %v591
        %v800 = vpop.f32.mrb[0].mxu0
        %v801 = vadd.f32 %v533, %v800
        %v802 = vpop.f32.mrb[0].mxu0
        %803 = vmatprep.mubr.f32.mxu0 0.0
        %804 = vmatmul.mubr.f32.gmra.mrb[0].mxu0 %v594
        %v805 = vpop.f32.mrb[0].mxu0
        %v806 = vadd.f32 %v533, %v805
        %v807 = vpop.f32.mrb[0].mxu0
        %808 = vmatprep.mubr.f32.mxu0 0.0
        %809 = vmatmul.mubr.f32.gmra.mrb[0].mxu0 %v597
        %v810 = vpop.f32.mrb[0].mxu0
        %v811 = vadd.f32 %v533, %v810
        %v812 = vpop.f32.mrb[0].mxu0
        %813 = vmatprep.mubr.f32.mxu0 0.0
        %814 = vmatmul.mubr.f32.gmra.mrb[0].mxu0 %v600
        %v815 = vpop.f32.mrb[0].mxu0
        %v816 = vadd.f32 %v533, %v815
        %v817 = vpop.f32.mrb[0].mxu0
        %818 = vmatprep.mubr.f32.mxu0 0.0
        %819 = vmatmul.mubr.f32.gmra.mrb[0].mxu0 %v603
        %v820 = vpop.f32.mrb[0].mxu0
        %v821 = vadd.f32 %v533, %v820
        %v822 = vpop.f32.mrb[0].mxu0
        %823 = vmatprep.mubr.f32.mxu0 0.0
        %824 = vmatmul.mubr.f32.gmra.mrb[0].mxu0 %v606
        %v825 = vpop.f32.mrb[0].mxu0
        %v826 = vadd.f32 %v533, %v825
        %v827 = vpop.f32.mrb[0].mxu0
        %828 = vmatprep.mubr.f32.mxu0 0.0
        %829 = vmatmul.mubr.f32.gmra.mrb[0].mxu0 %v609
        %v830 = vpop.f32.mrb[0].mxu0
        %v831 = vadd.f32 %v533, %v830
        %v832 = vpop.f32.mrb[0].mxu0
        %833 = vmatprep.mubr.f32.mxu0 0.0
        %834 = vmatmul.mubr.f32.gmra.mrb[0].mxu0 %v612
        %v835 = vpop.f32.mrb[0].mxu0
        %v836 = vadd.f32 %v533, %v835
        %v837 = vpop.f32.mrb[0].mxu0
        %838 = vmatprep.mubr.f32.mxu0 0.0
        %839 = vmatmul.mubr.f32.gmra.mrb[0].mxu0 %v615
        %v840 = vpop.f32.mrb[0].mxu0
        %v841 = vadd.f32 %v533, %v840
        %v842 = vpop.f32.mrb[0].mxu0
        %843 = vmatprep.mubr.f32.mxu0 0.0
        %844 = vmatmul.mubr.f32.gmra.mrb[0].mxu0 %v618
        %v845 = vpop.f32.mrb[0].mxu0
        %v846 = vadd.f32 %v533, %v845
        %v847 = vpop.f32.mrb[0].mxu0
        %848 = vmatprep.mubr.f32.mxu0 0.0
        %849 = vmatmul.mubr.f32.gmra.mrb[0].mxu0 %v621
        %v850 = vpop.f32.mrb[0].mxu0
        %v851 = vadd.f32 %v533, %v850
        %v852 = vpop.f32.mrb[0].mxu0
        %853 = vmatprep.mubr.f32.mxu0 0.0
        %854 = vmatmul.mubr.f32.gmra.mrb[0].mxu0 %v624
        %v855 = vpop.f32.mrb[0].mxu0
        %v856 = vadd.f32 %v533, %v855
        %v857 = vpop.f32.mrb[0].mxu0
        %858 = vmatprep.mubr.f32.mxu0 0.0
        %859 = vmatmul.mubr.f32.gmra.mrb[0].mxu0 %v627
        %v860 = vpop.f32.mrb[0].mxu0
        %v861 = vadd.f32 %v533, %v860
        %v862 = vpop.f32.mrb[0].mxu0
        %863 = vmatprep.mubr.f32.mxu0 0.0
        %864 = vmatmul.mubr.f32.gmra.mrb[0].mxu0 %v630
        %v865 = vpop.f32.mrb[0].mxu0
        %v866 = vadd.f32 %v533, %v865
        %v867 = vpop.f32.mrb[0].mxu0
        %868 = vmatprep.mubr.f32.mxu0 0.0
        %869 = vmatmul.mubr.f32.gmra.mrb[0].mxu0 %v633
        %v870 = vpop.f32.mrb[0].mxu0
        %v871 = vadd.f32 %v533, %v870
        %v872 = vpop.f32.mrb[0].mxu0
        %873 = vmatprep.mubr.f32.mxu0 0.0
        %874 = vmatmul.mubr.f32.gmra.mrb[0].mxu0 %v636
        %v875 = vpop.f32.mrb[0].mxu0
        %v876 = vadd.f32 %v533, %v875
        %v877 = vpop.f32.mrb[0].mxu0
        %878 = vmatprep.mubr.f32.mxu0 0.0
        %879 = vmatmul.mubr.f32.gmra.mrb[0].mxu0 %v639
        %v880 = vpop.f32.mrb[0].mxu0
        %v881 = vadd.f32 %v533, %v880
        %v882 = vpop.f32.mrb[0].mxu0
        %883 = vmatprep.mubr.f32.mxu0 0.0
        %884 = vmatmul.mubr.f32.gmra.mrb[0].mxu0 %v642
        %v885 = vpop.f32.mrb[0].mxu0
        %v886 = vadd.f32 %v533, %v885
        %v887 = vpop.f32.mrb[0].mxu0
        %888 = vdwg.mxu0
        %v889 = vmax.f32 %v711, 0.0
        %v890 = vmax.f32 %v716, 0.0
        %v891 = vmax.f32 %v721, 0.0
        %v892 = vmax.f32 %v726, 0.0
        %v893 = vmax.f32 %v731, 0.0
        %v894 = vmax.f32 %v736, 0.0
        %v895 = vmax.f32 %v741, 0.0
        %v896 = vmax.f32 %v746, 0.0
        %v897 = vmax.f32 %v751, 0.0
        %v898 = vmax.f32 %v756, 0.0
        %v899 = vmax.f32 %v761, 0.0
        %v900 = vmax.f32 %v766, 0.0
        %v901 = vmax.f32 %v771, 0.0
        %v902 = vmax.f32 %v776, 0.0
        %v903 = vmax.f32 %v781, 0.0
        %v904 = vmax.f32 %v786, 0.0
        %v905 = vmax.f32 %v791, 0.0
        %v906 = vmax.f32 %v796, 0.0
        %v907 = vmax.f32 %v801, 0.0
        %v908 = vmax.f32 %v806, 0.0
        %v909 = vmax.f32 %v811, 0.0
        %v910 = vmax.f32 %v816, 0.0
        %v911 = vmax.f32 %v821, 0.0
        %v912 = vmax.f32 %v826, 0.0
        %v913 = vmax.f32 %v831, 0.0
        %v914 = vmax.f32 %v836, 0.0
        %v915 = vmax.f32 %v841, 0.0
        %v916 = vmax.f32 %v846, 0.0
        %v917 = vmax.f32 %v851, 0.0
        %v918 = vmax.f32 %v856, 0.0
        %v919 = vmax.f32 %v861, 0.0
        %v920 = vmax.f32 %v866, 0.0
        %v921 = vmax.f32 %v871, 0.0
        %v922 = vmax.f32 %v876, 0.0
        %v923 = vmax.f32 %v881, 0.0
        %v924 = vmax.f32 %v886, 0.0
        %s925 = scalar_select %p489, 1, 0
        %v926 = vstv %s925
        %vm927 = vcmp.eq.s32.totalorder %v926, 1
        %v928 = vsel %vm927, 0.0, %v889
        %v929 = vsel %vm927, 0.0, %v890
        %v930 = vsel %vm927, 0.0, %v923
        %v931 = vsel %vm927, 0.0, %v924
        %vm932 = vcmask 24576
        %933 = vst.msk [vmem:[#allocation2] sm:$0x1] %vm932, 0.0
        %934 = vst.msk [vmem:[#allocation2 + $0x18] sm:$0x1] %vm932, 0.0
        %935 = vst.msk [vmem:[#allocation2 + $0x30] sm:$0x1] %vm932, 0.0
        %936 = vst.msk [vmem:[#allocation2 + $0x48] sm:$0x1] %vm932, 0.0
        %937 = vst.msk [vmem:[#allocation2 + $0x60] sm:$0x1] %vm932, 0.0
        %938 = vst.msk [vmem:[#allocation2 + $0x78] sm:$0x1] %vm932, 0.0
        %939 = vst.msk [vmem:[#allocation2 + $0x90] sm:$0x1] %vm932, 0.0
        %940 = vst.msk [vmem:[#allocation2 + $0xa8] sm:$0x1] %vm932, 0.0
        %941 = vst.msk [vmem:[#allocation2 + $0xc0] sm:$0x1] %vm932, 0.0
        %942 = vst.msk [vmem:[#allocation2 + $0xd8] sm:$0x1] %vm932, 0.0
        %943 = vst.msk [vmem:[#allocation2 + $0xf0] sm:$0x1] %vm932, 0.0
        %944 = vst.msk [vmem:[#allocation2 + $0x108] sm:$0x1] %vm932, 0.0
        %945 = vst.msk [vmem:[#allocation2 + $0x120] sm:$0x1] %vm932, 0.0
        %946 = vst.msk [vmem:[#allocation2 + $0x138] sm:$0x1] %vm932, 0.0
        %947 = vst.msk [vmem:[#allocation2 + $0x150] sm:$0x1] %vm932, 0.0
        %948 = vst.msk [vmem:[#allocation2 + $0x168] sm:$0x1] %vm932, 0.0
        %949 = vst.msk [vmem:[#allocation2 + $0x180] sm:$0x1] %vm932, 0.0
        %950 = vst.msk [vmem:[#allocation2 + $0x198] sm:$0x1] %vm932, 0.0
        %951 = vst.msk [vmem:[#allocation2 + $0x11] sm:$0x1] %vm932, 0.0
        %952 = vst.msk [vmem:[#allocation2 + $0x29] sm:$0x1] %vm932, 0.0
        %953 = vst.msk [vmem:[#allocation2 + $0x41] sm:$0x1] %vm932, 0.0
        %954 = vst.msk [vmem:[#allocation2 + $0x59] sm:$0x1] %vm932, 0.0
        %955 = vst.msk [vmem:[#allocation2 + $0x71] sm:$0x1] %vm932, 0.0
        %956 = vst.msk [vmem:[#allocation2 + $0x89] sm:$0x1] %vm932, 0.0
        %957 = vst.msk [vmem:[#allocation2 + $0xa1] sm:$0x1] %vm932, 0.0
        %958 = vst.msk [vmem:[#allocation2 + $0xb9] sm:$0x1] %vm932, 0.0
        %959 = vst.msk [vmem:[#allocation2 + $0xd1] sm:$0x1] %vm932, 0.0
        %960 = vst.msk [vmem:[#allocation2 + $0xe9] sm:$0x1] %vm932, 0.0
        %961 = vst.msk [vmem:[#allocation2 + $0x101] sm:$0x1] %vm932, 0.0
        %962 = vst.msk [vmem:[#allocation2 + $0x119] sm:$0x1] %vm932, 0.0
        %963 = vst.msk [vmem:[#allocation2 + $0x131] sm:$0x1] %vm932, 0.0
        %964 = vst.msk [vmem:[#allocation2 + $0x149] sm:$0x1] %vm932, 0.0
        %965 = vst.msk [vmem:[#allocation2 + $0x161] sm:$0x1] %vm932, 0.0
        %966 = vst.msk [vmem:[#allocation2 + $0x179] sm:$0x1] %vm932, 0.0
        %967 = vst.msk [vmem:[#allocation2 + $0x191] sm:$0x1] %vm932, 0.0
        %968 = vst.msk [vmem:[#allocation2 + $0x1a9] sm:$0x1] %vm932, 0.0
        %vm969 = vcmask 31744
        %970 = vst.msk [vmem:[#allocation2 + $0x1] sm:$0xff] %vm969, %v928
        %971 = vst.msk [vmem:[#allocation2 + $0x9] sm:$0xff] %vm969, %v929
        %s972 = scalar_lea.vmem [#allocation2], 24
        %973 = vst.msk [vmem:[%s972 + $0x1] sm:$0xff] %vm969, %v891
        %974 = vst.msk [vmem:[%s972 + $0x9] sm:$0xff] %vm969, %v892
        %975 = vst.msk [vmem:[%s972 + $0x19] sm:$0xff] %vm969, %v893
        %976 = vst.msk [vmem:[%s972 + $0x21] sm:$0xff] %vm969, %v894
        %977 = vst.msk [vmem:[%s972 + $0x31] sm:$0xff] %vm969, %v895
        %978 = vst.msk [vmem:[%s972 + $0x39] sm:$0xff] %vm969, %v896
        %979 = vst.msk [vmem:[%s972 + $0x49] sm:$0xff] %vm969, %v897
        %980 = vst.msk [vmem:[%s972 + $0x51] sm:$0xff] %vm969, %v898
        %981 = vst.msk [vmem:[%s972 + $0x61] sm:$0xff] %vm969, %v899
        %982 = vst.msk [vmem:[%s972 + $0x69] sm:$0xff] %vm969, %v900
        %983 = vst.msk [vmem:[%s972 + $0x79] sm:$0xff] %vm969, %v901
        %984 = vst.msk [vmem:[%s972 + $0x81] sm:$0xff] %vm969, %v902
        %985 = vst.msk [vmem:[%s972 + $0x91] sm:$0xff] %vm969, %v903
        %986 = vst.msk [vmem:[%s972 + $0x99] sm:$0xff] %vm969, %v904
        %987 = vst.msk [vmem:[%s972 + $0xa9] sm:$0xff] %vm969, %v905
        %988 = vst.msk [vmem:[%s972 + $0xb1] sm:$0xff] %vm969, %v906
        %989 = vst.msk [vmem:[%s972 + $0xc1] sm:$0xff] %vm969, %v907
        %990 = vst.msk [vmem:[%s972 + $0xc9] sm:$0xff] %vm969, %v908
        %991 = vst.msk [vmem:[%s972 + $0xd9] sm:$0xff] %vm969, %v909
        %992 = vst.msk [vmem:[%s972 + $0xe1] sm:$0xff] %vm969, %v910
        %993 = vst.msk [vmem:[%s972 + $0xf1] sm:$0xff] %vm969, %v911
        %994 = vst.msk [vmem:[%s972 + $0xf9] sm:$0xff] %vm969, %v912
        %995 = vst.msk [vmem:[%s972 + $0x109] sm:$0xff] %vm969, %v913
        %996 = vst.msk [vmem:[%s972 + $0x111] sm:$0xff] %vm969, %v914
        %997 = vst.msk [vmem:[%s972 + $0x121] sm:$0xff] %vm969, %v915
        %998 = vst.msk [vmem:[%s972 + $0x129] sm:$0xff] %vm969, %v916
        %999 = vst.msk [vmem:[%s972 + $0x139] sm:$0xff] %vm969, %v917
        %1000 = vst.msk [vmem:[%s972 + $0x141] sm:$0xff] %vm969, %v918
        %1001 = vst.msk [vmem:[%s972 + $0x151] sm:$0xff] %vm969, %v919
        %1002 = vst.msk [vmem:[%s972 + $0x159] sm:$0xff] %vm969, %v920
        %1003 = vst.msk [vmem:[%s972 + $0x169] sm:$0xff] %vm969, %v921
        %1004 = vst.msk [vmem:[%s972 + $0x171] sm:$0xff] %vm969, %v922
        %s1005 = scalar_lea.vmem [#allocation2], 408
        %1006 = vst.msk [vmem:[%s1005 + $0x1] sm:$0xff] %vm969, %v930
        %1007 = vst.msk [vmem:[%s1005 + $0x9] sm:$0xff] %vm969, %v931
        %v1008 = vld [vmem:[#allocation2] sm:$0xff]
        %v1009 = vld [vmem:[#allocation2 + $0x8] sm:$0xff]
        %v1010 = vld [vmem:[#allocation2 + $0x10] sm:$0x3]
        %v1011 = vld [vmem:[#allocation2 + $0x18] sm:$0xff]
        %v1012 = vld [vmem:[#allocation2 + $0x20] sm:$0xff]
        %v1013 = vld [vmem:[#allocation2 + $0x28] sm:$0x3]
        %v1014 = vld [vmem:[#allocation2 + $0x30] sm:$0xff]
        %v1015 = vld [vmem:[#allocation2 + $0x38] sm:$0xff]
        %v1016 = vld [vmem:[#allocation2 + $0x40] sm:$0x3]
        %v1017 = vld [vmem:[#allocation2 + $0x48] sm:$0xff]
        %v1018 = vld [vmem:[#allocation2 + $0x50] sm:$0xff]
        %v1019 = vld [vmem:[#allocation2 + $0x58] sm:$0x3]
        %v1020 = vld [vmem:[#allocation2 + $0x60] sm:$0xff]
        %v1021 = vld [vmem:[#allocation2 + $0x68] sm:$0xff]
        %v1022 = vld [vmem:[#allocation2 + $0x70] sm:$0x3]
        %v1023 = vld [vmem:[#allocation2 + $0x78] sm:$0xff]
        %v1024 = vld [vmem:[#allocation2 + $0x80] sm:$0xff]
        %v1025 = vld [vmem:[#allocation2 + $0x88] sm:$0x3]
        %v1026 = vld [vmem:[#allocation2 + $0x90] sm:$0xff]
        %v1027 = vld [vmem:[#allocation2 + $0x98] sm:$0xff]
        %v1028 = vld [vmem:[#allocation2 + $0xa0] sm:$0x3]
        %v1029 = vld [vmem:[#allocation2 + $0xa8] sm:$0xff]
        %v1030 = vld [vmem:[#allocation2 + $0xb0] sm:$0xff]
        %v1031 = vld [vmem:[#allocation2 + $0xb8] sm:$0x3]
        %v1032 = vld [vmem:[#allocation2 + $0xc0] sm:$0xff]
        %v1033 = vld [vmem:[#allocation2 + $0xc8] sm:$0xff]
        %v1034 = vld [vmem:[#allocation2 + $0xd0] sm:$0x3]
        %v1035 = vld [vmem:[#allocation2 + $0xd8] sm:$0xff]
        %v1036 = vld [vmem:[#allocation2 + $0xe0] sm:$0xff]
        %v1037 = vld [vmem:[#allocation2 + $0xe8] sm:$0x3]
        %v1038 = vld [vmem:[#allocation2 + $0xf0] sm:$0xff]
        %v1039 = vld [vmem:[#allocation2 + $0xf8] sm:$0xff]
        %v1040 = vld [vmem:[#allocation2 + $0x100] sm:$0x3]
        %v1041 = vld [vmem:[#allocation2 + $0x108] sm:$0xff]
        %v1042 = vld [vmem:[#allocation2 + $0x110] sm:$0xff]
        %v1043 = vld [vmem:[#allocation2 + $0x118] sm:$0x3]
        %v1044 = vld [vmem:[#allocation2 + $0x120] sm:$0xff]
        %v1045 = vld [vmem:[#allocation2 + $0x128] sm:$0xff]
        %v1046 = vld [vmem:[#allocation2 + $0x130] sm:$0x3]
        %v1047 = vld [vmem:[#allocation2 + $0x138] sm:$0xff]
        %v1048 = vld [vmem:[#allocation2 + $0x140] sm:$0xff]
        %v1049 = vld [vmem:[#allocation2 + $0x148] sm:$0x3]
        %v1050 = vld [vmem:[#allocation2 + $0x150] sm:$0xff]
        %v1051 = vld [vmem:[#allocation2 + $0x158] sm:$0xff]
        %v1052 = vld [vmem:[#allocation2 + $0x160] sm:$0x3]
        %v1053 = vld [vmem:[#allocation2 + $0x168] sm:$0xff]
        %v1054 = vld [vmem:[#allocation2 + $0x170] sm:$0xff]
        %v1055 = vld [vmem:[#allocation2 + $0x178] sm:$0x3]
        %vm1104 = vcmask 1046528
        %v1105 = vrot.slane %v1008, 1
        %v1106 = vrot.slane %v1009, 1
        %v1107 = vsel %vm1104, %v1105, %v1106
        %v1108 = vrot.slane %v1010, 1
        %v1109 = vsel %vm1104, %v1106, %v1108
        %v1110 = vrot.slane %v1011, 1
        %v1111 = vrot.slane %v1012, 1
        %v1112 = vsel %vm1104, %v1110, %v1111
        %v1113 = vrot.slane %v1013, 1
        %v1114 = vsel %vm1104, %v1111, %v1113
        %v1115 = vrot.slane %v1014, 1
        %v1116 = vrot.slane %v1015, 1
        %v1117 = vsel %vm1104, %v1115, %v1116
        %v1118 = vrot.slane %v1016, 1
        %v1119 = vsel %vm1104, %v1116, %v1118
        %v1120 = vrot.slane %v1017, 1
        %v1121 = vrot.slane %v1018, 1
        %v1122 = vsel %vm1104, %v1120, %v1121
        %v1123 = vrot.slane %v1019, 1
        %v1124 = vsel %vm1104, %v1121, %v1123
        %v1125 = vrot.slane %v1020, 1
        %v1126 = vrot.slane %v1021, 1
        %v1127 = vsel %vm1104, %v1125, %v1126
        %v1128 = vrot.slane %v1022, 1
        %v1129 = vsel %vm1104, %v1126, %v1128
        %v1130 = vrot.slane %v1023, 1
        %v1131 = vrot.slane %v1024, 1
        %v1132 = vsel %vm1104, %v1130, %v1131
        %v1133 = vrot.slane %v1025, 1
        %v1134 = vsel %vm1104, %v1131, %v1133
        %v1135 = vrot.slane %v1026, 1
        %v1136 = vrot.slane %v1027, 1
        %v1137 = vsel %vm1104, %v1135, %v1136
        %v1138 = vrot.slane %v1028, 1
        %v1139 = vsel %vm1104, %v1136, %v1138
        %v1140 = vrot.slane %v1029, 1
        %v1141 = vrot.slane %v1030, 1
        %v1142 = vsel %vm1104, %v1140, %v1141
        %v1143 = vrot.slane %v1031, 1
        %v1144 = vsel %vm1104, %v1141, %v1143
        %v1145 = vrot.slane %v1032, 1
        %v1146 = vrot.slane %v1033, 1
        %v1147 = vsel %vm1104, %v1145, %v1146
        %v1148 = vrot.slane %v1034, 1
        %v1149 = vsel %vm1104, %v1146, %v1148
        %v1150 = vrot.slane %v1035, 1
        %v1151 = vrot.slane %v1036, 1
        %v1152 = vsel %vm1104, %v1150, %v1151
        %v1153 = vrot.slane %v1037, 1
        %v1154 = vsel %vm1104, %v1151, %v1153
        %v1155 = vrot.slane %v1038, 1
        %v1156 = vrot.slane %v1039, 1
        %v1157 = vsel %vm1104, %v1155, %v1156
        %v1158 = vrot.slane %v1040, 1
        %v1159 = vsel %vm1104, %v1156, %v1158
        %v1160 = vrot.slane %v1041, 1
        %v1161 = vrot.slane %v1042, 1
        %v1162 = vsel %vm1104, %v1160, %v1161
        %v1163 = vrot.slane %v1043, 1
        %v1164 = vsel %vm1104, %v1161, %v1163
        %v1165 = vrot.slane %v1044, 1
        %v1166 = vrot.slane %v1045, 1
        %v1167 = vsel %vm1104, %v1165, %v1166
        %v1168 = vrot.slane %v1046, 1
        %v1169 = vsel %vm1104, %v1166, %v1168
        %v1170 = vrot.slane %v1047, 1
        %v1171 = vrot.slane %v1048, 1
        %v1172 = vsel %vm1104, %v1170, %v1171
        %v1173 = vrot.slane %v1049, 1
        %v1174 = vsel %vm1104, %v1171, %v1173
        %v1175 = vrot.slane %v1050, 1
        %v1176 = vrot.slane %v1051, 1
        %v1177 = vsel %vm1104, %v1175, %v1176
        %v1178 = vrot.slane %v1052, 1
        %v1179 = vsel %vm1104, %v1176, %v1178
        %v1180 = vrot.slane %v1053, 1
        %v1181 = vrot.slane %v1054, 1
        %v1182 = vsel %vm1104, %v1180, %v1181
        %v1183 = vrot.slane %v1055, 1
        %v1184 = vsel %vm1104, %v1181, %v1183
        %1185 = vrot.lane.b32.xlu0 %v1107, 4
        %v1186 = vpop.permute.xlu0 %1185
        %1187 = vrot.lane.b32.xlu0 %v1109, 4
        %v1188 = vpop.permute.xlu0 %1187
        %1189 = vrot.lane.b32.xlu0 %v1112, 4
        %v1190 = vpop.permute.xlu0 %1189
        %1191 = vrot.lane.b32.xlu0 %v1114, 4
        %v1192 = vpop.permute.xlu0 %1191
        %1193 = vrot.lane.b32.xlu0 %v1117, 4
        %v1194 = vpop.permute.xlu0 %1193
        %1195 = vrot.lane.b32.xlu0 %v1119, 4
        %v1196 = vpop.permute.xlu0 %1195
        %1197 = vrot.lane.b32.xlu0 %v1122, 4
        %v1198 = vpop.permute.xlu0 %1197
        %1199 = vrot.lane.b32.xlu0 %v1124, 4
        %v1200 = vpop.permute.xlu0 %1199
        %1201 = vrot.lane.b32.xlu0 %v1127, 4
        %v1202 = vpop.permute.xlu0 %1201
        %1203 = vrot.lane.b32.xlu0 %v1129, 4
        %v1204 = vpop.permute.xlu0 %1203
        %1205 = vrot.lane.b32.xlu0 %v1132, 4
        %v1206 = vpop.permute.xlu0 %1205
        %1207 = vrot.lane.b32.xlu0 %v1134, 4
        %v1208 = vpop.permute.xlu0 %1207
        %1209 = vrot.lane.b32.xlu0 %v1137, 4
        %v1210 = vpop.permute.xlu0 %1209
        %1211 = vrot.lane.b32.xlu0 %v1139, 4
        %v1212 = vpop.permute.xlu0 %1211
        %1213 = vrot.lane.b32.xlu0 %v1142, 4
        %v1214 = vpop.permute.xlu0 %1213
        %1215 = vrot.lane.b32.xlu0 %v1144, 4
        %v1216 = vpop.permute.xlu0 %1215
        %1217 = vrot.lane.b32.xlu0 %v1147, 4
        %v1218 = vpop.permute.xlu0 %1217
        %1219 = vrot.lane.b32.xlu0 %v1149, 4
        %v1220 = vpop.permute.xlu0 %1219
        %1221 = vrot.lane.b32.xlu0 %v1152, 4
        %v1222 = vpop.permute.xlu0 %1221
        %1223 = vrot.lane.b32.xlu0 %v1154, 4
        %v1224 = vpop.permute.xlu0 %1223
        %1225 = vrot.lane.b32.xlu0 %v1157, 4
        %v1226 = vpop.permute.xlu0 %1225
        %1227 = vrot.lane.b32.xlu0 %v1159, 4
        %v1228 = vpop.permute.xlu0 %1227
        %1229 = vrot.lane.b32.xlu0 %v1162, 4
        %v1230 = vpop.permute.xlu0 %1229
        %1231 = vrot.lane.b32.xlu0 %v1164, 4
        %v1232 = vpop.permute.xlu0 %1231
        %1233 = vrot.lane.b32.xlu0 %v1167, 4
        %v1234 = vpop.permute.xlu0 %1233
        %1235 = vrot.lane.b32.xlu0 %v1169, 4
        %v1236 = vpop.permute.xlu0 %1235
        %1237 = vrot.lane.b32.xlu0 %v1172, 4
        %v1238 = vpop.permute.xlu0 %1237
        %1239 = vrot.lane.b32.xlu0 %v1174, 4
        %v1240 = vpop.permute.xlu0 %1239
        %1241 = vrot.lane.b32.xlu0 %v1177, 4
        %v1242 = vpop.permute.xlu0 %1241
        %1243 = vrot.lane.b32.xlu0 %v1179, 4
        %v1244 = vpop.permute.xlu0 %1243
        %1245 = vrot.lane.b32.xlu0 %v1182, 4
        %v1246 = vpop.permute.xlu0 %1245
        %1247 = vrot.lane.b32.xlu0 %v1184, 4
        %v1248 = vpop.permute.xlu0 %1247
        %vm1281 = vcmask 1045504
        %v1282 = vrot.slane %v1008, 2
        %v1283 = vrot.slane %v1009, 2
        %v1284 = vsel %vm1281, %v1282, %v1283
        %v1285 = vrot.slane %v1010, 2
        %v1286 = vsel %vm1281, %v1283, %v1285
        %v1287 = vrot.slane %v1011, 2
        %v1288 = vrot.slane %v1012, 2
        %v1289 = vsel %vm1281, %v1287, %v1288
        %v1290 = vrot.slane %v1013, 2
        %v1291 = vsel %vm1281, %v1288, %v1290
        %v1292 = vrot.slane %v1014, 2
        %v1293 = vrot.slane %v1015, 2
        %v1294 = vsel %vm1281, %v1292, %v1293
        %v1295 = vrot.slane %v1016, 2
        %v1296 = vsel %vm1281, %v1293, %v1295
        %v1297 = vrot.slane %v1017, 2
        %v1298 = vrot.slane %v1018, 2
        %v1299 = vsel %vm1281, %v1297, %v1298
        %v1300 = vrot.slane %v1019, 2
        %v1301 = vsel %vm1281, %v1298, %v1300
        %v1302 = vrot.slane %v1020, 2
        %v1303 = vrot.slane %v1021, 2
        %v1304 = vsel %vm1281, %v1302, %v1303
        %v1305 = vrot.slane %v1022, 2
        %v1306 = vsel %vm1281, %v1303, %v1305
        %v1307 = vrot.slane %v1023, 2
        %v1308 = vrot.slane %v1024, 2
        %v1309 = vsel %vm1281, %v1307, %v1308
        %v1310 = vrot.slane %v1025, 2
        %v1311 = vsel %vm1281, %v1308, %v1310
        %v1312 = vrot.slane %v1026, 2
        %v1313 = vrot.slane %v1027, 2
        %v1314 = vsel %vm1281, %v1312, %v1313
        %v1315 = vrot.slane %v1028, 2
        %v1316 = vsel %vm1281, %v1313, %v1315
        %v1317 = vrot.slane %v1029, 2
        %v1318 = vrot.slane %v1030, 2
        %v1319 = vsel %vm1281, %v1317, %v1318
        %v1320 = vrot.slane %v1031, 2
        %v1321 = vsel %vm1281, %v1318, %v1320
        %v1322 = vrot.slane %v1032, 2
        %v1323 = vrot.slane %v1033, 2
        %v1324 = vsel %vm1281, %v1322, %v1323
        %v1325 = vrot.slane %v1034, 2
        %v1326 = vsel %vm1281, %v1323, %v1325
        %v1327 = vrot.slane %v1035, 2
        %v1328 = vrot.slane %v1036, 2
        %v1329 = vsel %vm1281, %v1327, %v1328
        %v1330 = vrot.slane %v1037, 2
        %v1331 = vsel %vm1281, %v1328, %v1330
        %v1332 = vrot.slane %v1038, 2
        %v1333 = vrot.slane %v1039, 2
        %v1334 = vsel %vm1281, %v1332, %v1333
        %v1335 = vrot.slane %v1040, 2
        %v1336 = vsel %vm1281, %v1333, %v1335
        %v1337 = vrot.slane %v1041, 2
        %v1338 = vrot.slane %v1042, 2
        %v1339 = vsel %vm1281, %v1337, %v1338
        %v1340 = vrot.slane %v1043, 2
        %v1341 = vsel %vm1281, %v1338, %v1340
        %v1342 = vrot.slane %v1044, 2
        %v1343 = vrot.slane %v1045, 2
        %v1344 = vsel %vm1281, %v1342, %v1343
        %v1345 = vrot.slane %v1046, 2
        %v1346 = vsel %vm1281, %v1343, %v1345
        %v1347 = vrot.slane %v1047, 2
        %v1348 = vrot.slane %v1048, 2
        %v1349 = vsel %vm1281, %v1347, %v1348
        %v1350 = vrot.slane %v1049, 2
        %v1351 = vsel %vm1281, %v1348, %v1350
        %v1352 = vrot.slane %v1050, 2
        %v1353 = vrot.slane %v1051, 2
        %v1354 = vsel %vm1281, %v1352, %v1353
        %v1355 = vrot.slane %v1052, 2
        %v1356 = vsel %vm1281, %v1353, %v1355
        %v1357 = vrot.slane %v1053, 2
        %v1358 = vrot.slane %v1054, 2
        %v1359 = vsel %vm1281, %v1357, %v1358
        %v1360 = vrot.slane %v1055, 2
        %v1361 = vsel %vm1281, %v1358, %v1360
        %1362 = vrot.lane.b32.xlu0 %v1284, 8
        %v1363 = vpop.permute.xlu0 %1362
        %1364 = vrot.lane.b32.xlu0 %v1286, 8
        %v1365 = vpop.permute.xlu0 %1364
        %1366 = vrot.lane.b32.xlu0 %v1289, 8
        %v1367 = vpop.permute.xlu0 %1366
        %1368 = vrot.lane.b32.xlu0 %v1291, 8
        %v1369 = vpop.permute.xlu0 %1368
        %1370 = vrot.lane.b32.xlu0 %v1294, 8
        %v1371 = vpop.permute.xlu0 %1370
        %1372 = vrot.lane.b32.xlu0 %v1296, 8
        %v1373 = vpop.permute.xlu0 %1372
        %1374 = vrot.lane.b32.xlu0 %v1299, 8
        %v1375 = vpop.permute.xlu0 %1374
        %1376 = vrot.lane.b32.xlu0 %v1301, 8
        %v1377 = vpop.permute.xlu0 %1376
        %1378 = vrot.lane.b32.xlu0 %v1304, 8
        %v1379 = vpop.permute.xlu0 %1378
        %1380 = vrot.lane.b32.xlu0 %v1306, 8
        %v1381 = vpop.permute.xlu0 %1380
        %1382 = vrot.lane.b32.xlu0 %v1309, 8
        %v1383 = vpop.permute.xlu0 %1382
        %1384 = vrot.lane.b32.xlu0 %v1311, 8
        %v1385 = vpop.permute.xlu0 %1384
        %1386 = vrot.lane.b32.xlu0 %v1314, 8
        %v1387 = vpop.permute.xlu0 %1386
        %1388 = vrot.lane.b32.xlu0 %v1316, 8
        %v1389 = vpop.permute.xlu0 %1388
        %1390 = vrot.lane.b32.xlu0 %v1319, 8
        %v1391 = vpop.permute.xlu0 %1390
        %1392 = vrot.lane.b32.xlu0 %v1321, 8
        %v1393 = vpop.permute.xlu0 %1392
        %1394 = vrot.lane.b32.xlu0 %v1324, 8
        %v1395 = vpop.permute.xlu0 %1394
        %1396 = vrot.lane.b32.xlu0 %v1326, 8
        %v1397 = vpop.permute.xlu0 %1396
        %1398 = vrot.lane.b32.xlu0 %v1329, 8
        %v1399 = vpop.permute.xlu0 %1398
        %1400 = vrot.lane.b32.xlu0 %v1331, 8
        %v1401 = vpop.permute.xlu0 %1400
        %1402 = vrot.lane.b32.xlu0 %v1334, 8
        %v1403 = vpop.permute.xlu0 %1402
        %1404 = vrot.lane.b32.xlu0 %v1336, 8
        %v1405 = vpop.permute.xlu0 %1404
        %1406 = vrot.lane.b32.xlu0 %v1339, 8
        %v1407 = vpop.permute.xlu0 %1406
        %1408 = vrot.lane.b32.xlu0 %v1341, 8
        %v1409 = vpop.permute.xlu0 %1408
        %1410 = vrot.lane.b32.xlu0 %v1344, 8
        %v1411 = vpop.permute.xlu0 %1410
        %1412 = vrot.lane.b32.xlu0 %v1346, 8
        %v1413 = vpop.permute.xlu0 %1412
        %1414 = vrot.lane.b32.xlu0 %v1349, 8
        %v1415 = vpop.permute.xlu0 %1414
        %1416 = vrot.lane.b32.xlu0 %v1351, 8
        %v1417 = vpop.permute.xlu0 %1416
        %1418 = vrot.lane.b32.xlu0 %v1354, 8
        %v1419 = vpop.permute.xlu0 %1418
        %1420 = vrot.lane.b32.xlu0 %v1356, 8
        %v1421 = vpop.permute.xlu0 %1420
        %1422 = vrot.lane.b32.xlu0 %v1359, 8
        %v1423 = vpop.permute.xlu0 %1422
        %1424 = vrot.lane.b32.xlu0 %v1361, 8
        %v1425 = vpop.permute.xlu0 %1424
        %v1458 = vsel %vm969, %v1008, %v1186
        %v1459 = vsel %vm969, %v1009, %v1188
        %v1460 = vsel %vm969, %v1011, %v1190
        %v1461 = vsel %vm969, %v1012, %v1192
        %v1462 = vsel %vm969, %v1014, %v1194
        %v1463 = vsel %vm969, %v1015, %v1196
        %v1464 = vsel %vm969, %v1017, %v1198
        %v1465 = vsel %vm969, %v1018, %v1200
        %v1466 = vsel %vm969, %v1020, %v1202
        %v1467 = vsel %vm969, %v1021, %v1204
        %v1468 = vsel %vm969, %v1023, %v1206
        %v1469 = vsel %vm969, %v1024, %v1208
        %v1470 = vsel %vm969, %v1026, %v1210
        %v1471 = vsel %vm969, %v1027, %v1212
        %v1472 = vsel %vm969, %v1029, %v1214
        %v1473 = vsel %vm969, %v1030, %v1216
        %v1474 = vsel %vm969, %v1032, %v1218
        %v1475 = vsel %vm969, %v1033, %v1220
        %v1476 = vsel %vm969, %v1035, %v1222
        %v1477 = vsel %vm969, %v1036, %v1224
        %v1478 = vsel %vm969, %v1038, %v1226
        %v1479 = vsel %vm969, %v1039, %v1228
        %v1480 = vsel %vm969, %v1041, %v1230
        %v1481 = vsel %vm969, %v1042, %v1232
        %v1482 = vsel %vm969, %v1044, %v1234
        %v1483 = vsel %vm969, %v1045, %v1236
        %v1484 = vsel %vm969, %v1047, %v1238
        %v1485 = vsel %vm969, %v1048, %v1240
        %v1486 = vsel %vm969, %v1050, %v1242
        %v1487 = vsel %vm969, %v1051, %v1244
        %v1488 = vsel %vm969, %v1053, %v1246
        %v1489 = vsel %vm969, %v1054, %v1248
        %vm1490 = vcmask 64512
        %v1491 = vsel %vm1490, %v1458, %v1363
        %v1492 = vsel %vm1490, %v1459, %v1365
        %v1493 = vsel %vm1490, %v1460, %v1367
        %v1494 = vsel %vm1490, %v1461, %v1369
        %v1495 = vsel %vm1490, %v1462, %v1371
        %v1496 = vsel %vm1490, %v1463, %v1373
        %v1497 = vsel %vm1490, %v1464, %v1375
        %v1498 = vsel %vm1490, %v1465, %v1377
        %v1499 = vsel %vm1490, %v1466, %v1379
        %v1500 = vsel %vm1490, %v1467, %v1381
        %v1501 = vsel %vm1490, %v1468, %v1383
        %v1502 = vsel %vm1490, %v1469, %v1385
        %v1503 = vsel %vm1490, %v1470, %v1387
        %v1504 = vsel %vm1490, %v1471, %v1389
        %v1505 = vsel %vm1490, %v1472, %v1391
        %v1506 = vsel %vm1490, %v1473, %v1393
        %v1507 = vsel %vm1490, %v1474, %v1395
        %v1508 = vsel %vm1490, %v1475, %v1397
        %v1509 = vsel %vm1490, %v1476, %v1399
        %v1510 = vsel %vm1490, %v1477, %v1401
        %v1511 = vsel %vm1490, %v1478, %v1403
        %v1512 = vsel %vm1490, %v1479, %v1405
        %v1513 = vsel %vm1490, %v1480, %v1407
        %v1514 = vsel %vm1490, %v1481, %v1409
        %v1515 = vsel %vm1490, %v1482, %v1411
        %v1516 = vsel %vm1490, %v1483, %v1413
        %v1517 = vsel %vm1490, %v1484, %v1415
        %v1518 = vsel %vm1490, %v1485, %v1417
        %v1519 = vsel %vm1490, %v1486, %v1419
        %v1520 = vsel %vm1490, %v1487, %v1421
        %v1521 = vsel %vm1490, %v1488, %v1423
        %v1522 = vsel %vm1490, %v1489, %v1425
        %v1523 = vld [vmem:[%s5] sm:$0xff]
        %v1524 = vld [vmem:[%s5 + $0x8] sm:$0xf]
        %v1525 = vld [vmem:[%s972] sm:$0xff]
        %v1526 = vld [vmem:[%s972 + $0x8] sm:$0xff]
        %v1527 = vld [vmem:[%s972 + $0x10] sm:$0x3]
        %v1528 = vld [vmem:[%s972 + $0x18] sm:$0xff]
        %v1529 = vld [vmem:[%s972 + $0x20] sm:$0xff]
        %v1530 = vld [vmem:[%s972 + $0x28] sm:$0x3]
        %v1531 = vld [vmem:[%s972 + $0x30] sm:$0xff]
        %v1532 = vld [vmem:[%s972 + $0x38] sm:$0xff]
        %v1533 = vld [vmem:[%s972 + $0x40] sm:$0x3]
        %v1534 = vld [vmem:[%s972 + $0x48] sm:$0xff]
        %v1535 = vld [vmem:[%s972 + $0x50] sm:$0xff]
        %v1536 = vld [vmem:[%s972 + $0x58] sm:$0x3]
        %v1537 = vld [vmem:[%s972 + $0x60] sm:$0xff]
        %v1538 = vld [vmem:[%s972 + $0x68] sm:$0xff]
        %v1539 = vld [vmem:[%s972 + $0x70] sm:$0x3]
        %v1540 = vld [vmem:[%s972 + $0x78] sm:$0xff]
        %v1541 = vld [vmem:[%s972 + $0x80] sm:$0xff]
        %v1542 = vld [vmem:[%s972 + $0x88] sm:$0x3]
        %v1543 = vld [vmem:[%s972 + $0x90] sm:$0xff]
        %v1544 = vld [vmem:[%s972 + $0x98] sm:$0xff]
        %v1545 = vld [vmem:[%s972 + $0xa0] sm:$0x3]
        %v1546 = vld [vmem:[%s972 + $0xa8] sm:$0xff]
        %v1547 = vld [vmem:[%s972 + $0xb0] sm:$0xff]
        %v1548 = vld [vmem:[%s972 + $0xb8] sm:$0x3]
        %v1549 = vld [vmem:[%s972 + $0xc0] sm:$0xff]
        %v1550 = vld [vmem:[%s972 + $0xc8] sm:$0xff]
        %v1551 = vld [vmem:[%s972 + $0xd0] sm:$0x3]
        %v1552 = vld [vmem:[%s972 + $0xd8] sm:$0xff]
        %v1553 = vld [vmem:[%s972 + $0xe0] sm:$0xff]
        %v1554 = vld [vmem:[%s972 + $0xe8] sm:$0x3]
        %v1555 = vld [vmem:[%s972 + $0xf0] sm:$0xff]
        %v1556 = vld [vmem:[%s972 + $0xf8] sm:$0xff]
        %v1557 = vld [vmem:[%s972 + $0x100] sm:$0x3]
        %v1558 = vld [vmem:[%s972 + $0x108] sm:$0xff]
        %v1559 = vld [vmem:[%s972 + $0x110] sm:$0xff]
        %v1560 = vld [vmem:[%s972 + $0x118] sm:$0x3]
        %v1561 = vld [vmem:[%s972 + $0x120] sm:$0xff]
        %v1562 = vld [vmem:[%s972 + $0x128] sm:$0xff]
        %v1563 = vld [vmem:[%s972 + $0x130] sm:$0x3]
        %v1564 = vld [vmem:[%s972 + $0x138] sm:$0xff]
        %v1565 = vld [vmem:[%s972 + $0x140] sm:$0xff]
        %v1566 = vld [vmem:[%s972 + $0x148] sm:$0x3]
        %v1567 = vld [vmem:[%s972 + $0x150] sm:$0xff]
        %v1568 = vld [vmem:[%s972 + $0x158] sm:$0xff]
        %v1569 = vld [vmem:[%s972 + $0x160] sm:$0x3]
        %v1570 = vld [vmem:[%s972 + $0x168] sm:$0xff]
        %v1571 = vld [vmem:[%s972 + $0x170] sm:$0xff]
        %v1572 = vld [vmem:[%s972 + $0x178] sm:$0x3]
        %v1621 = vrot.slane %v1525, 1
        %v1622 = vrot.slane %v1526, 1
        %v1623 = vsel %vm1104, %v1621, %v1622
        %v1624 = vrot.slane %v1527, 1
        %v1625 = vsel %vm1104, %v1622, %v1624
        %v1626 = vrot.slane %v1528, 1
        %v1627 = vrot.slane %v1529, 1
        %v1628 = vsel %vm1104, %v1626, %v1627
        %v1629 = vrot.slane %v1530, 1
        %v1630 = vsel %vm1104, %v1627, %v1629
        %v1631 = vrot.slane %v1531, 1
        %v1632 = vrot.slane %v1532, 1
        %v1633 = vsel %vm1104, %v1631, %v1632
        %v1634 = vrot.slane %v1533, 1
        %v1635 = vsel %vm1104, %v1632, %v1634
        %v1636 = vrot.slane %v1534, 1
        %v1637 = vrot.slane %v1535, 1
        %v1638 = vsel %vm1104, %v1636, %v1637
        %v1639 = vrot.slane %v1536, 1
        %v1640 = vsel %vm1104, %v1637, %v1639
        %v1641 = vrot.slane %v1537, 1
        %v1642 = vrot.slane %v1538, 1
        %v1643 = vsel %vm1104, %v1641, %v1642
        %v1644 = vrot.slane %v1539, 1
        %v1645 = vsel %vm1104, %v1642, %v1644
        %v1646 = vrot.slane %v1540, 1
        %v1647 = vrot.slane %v1541, 1
        %v1648 = vsel %vm1104, %v1646, %v1647
        %v1649 = vrot.slane %v1542, 1
        %v1650 = vsel %vm1104, %v1647, %v1649
        %v1651 = vrot.slane %v1543, 1
        %v1652 = vrot.slane %v1544, 1
        %v1653 = vsel %vm1104, %v1651, %v1652
        %v1654 = vrot.slane %v1545, 1
        %v1655 = vsel %vm1104, %v1652, %v1654
        %v1656 = vrot.slane %v1546, 1
        %v1657 = vrot.slane %v1547, 1
        %v1658 = vsel %vm1104, %v1656, %v1657
        %v1659 = vrot.slane %v1548, 1
        %v1660 = vsel %vm1104, %v1657, %v1659
        %v1661 = vrot.slane %v1549, 1
        %v1662 = vrot.slane %v1550, 1
        %v1663 = vsel %vm1104, %v1661, %v1662
        %v1664 = vrot.slane %v1551, 1
        %v1665 = vsel %vm1104, %v1662, %v1664
        %v1666 = vrot.slane %v1552, 1
        %v1667 = vrot.slane %v1553, 1
        %v1668 = vsel %vm1104, %v1666, %v1667
        %v1669 = vrot.slane %v1554, 1
        %v1670 = vsel %vm1104, %v1667, %v1669
        %v1671 = vrot.slane %v1555, 1
        %v1672 = vrot.slane %v1556, 1
        %v1673 = vsel %vm1104, %v1671, %v1672
        %v1674 = vrot.slane %v1557, 1
        %v1675 = vsel %vm1104, %v1672, %v1674
        %v1676 = vrot.slane %v1558, 1
        %v1677 = vrot.slane %v1559, 1
        %v1678 = vsel %vm1104, %v1676, %v1677
        %v1679 = vrot.slane %v1560, 1
        %v1680 = vsel %vm1104, %v1677, %v1679
        %v1681 = vrot.slane %v1561, 1
        %v1682 = vrot.slane %v1562, 1
        %v1683 = vsel %vm1104, %v1681, %v1682
        %v1684 = vrot.slane %v1563, 1
        %v1685 = vsel %vm1104, %v1682, %v1684
        %v1686 = vrot.slane %v1564, 1
        %v1687 = vrot.slane %v1565, 1
        %v1688 = vsel %vm1104, %v1686, %v1687
        %v1689 = vrot.slane %v1566, 1
        %v1690 = vsel %vm1104, %v1687, %v1689
        %v1691 = vrot.slane %v1567, 1
        %v1692 = vrot.slane %v1568, 1
        %v1693 = vsel %vm1104, %v1691, %v1692
        %v1694 = vrot.slane %v1569, 1
        %v1695 = vsel %vm1104, %v1692, %v1694
        %v1696 = vrot.slane %v1570, 1
        %v1697 = vrot.slane %v1571, 1
        %v1698 = vsel %vm1104, %v1696, %v1697
        %v1699 = vrot.slane %v1572, 1
        %v1700 = vsel %vm1104, %v1697, %v1699
        %1701 = vrot.lane.b32.xlu0 %v1623, 4
        %v1702 = vpop.permute.xlu0 %1701
        %1703 = vrot.lane.b32.xlu0 %v1625, 4
        %v1704 = vpop.permute.xlu0 %1703
        %1705 = vrot.lane.b32.xlu0 %v1628, 4
        %v1706 = vpop.permute.xlu0 %1705
        %1707 = vrot.lane.b32.xlu0 %v1630, 4
        %v1708 = vpop.permute.xlu0 %1707
        %1709 = vrot.lane.b32.xlu0 %v1633, 4
        %v1710 = vpop.permute.xlu0 %1709
        %1711 = vrot.lane.b32.xlu0 %v1635, 4
        %v1712 = vpop.permute.xlu0 %1711
        %1713 = vrot.lane.b32.xlu0 %v1638, 4
        %v1714 = vpop.permute.xlu0 %1713
        %1715 = vrot.lane.b32.xlu0 %v1640, 4
        %v1716 = vpop.permute.xlu0 %1715
        %1717 = vrot.lane.b32.xlu0 %v1643, 4
        %v1718 = vpop.permute.xlu0 %1717
        %1719 = vrot.lane.b32.xlu0 %v1645, 4
        %v1720 = vpop.permute.xlu0 %1719
        %1721 = vrot.lane.b32.xlu0 %v1648, 4
        %v1722 = vpop.permute.xlu0 %1721
        %1723 = vrot.lane.b32.xlu0 %v1650, 4
        %v1724 = vpop.permute.xlu0 %1723
        %1725 = vrot.lane.b32.xlu0 %v1653, 4
        %v1726 = vpop.permute.xlu0 %1725
        %1727 = vrot.lane.b32.xlu0 %v1655, 4
        %v1728 = vpop.permute.xlu0 %1727
        %1729 = vrot.lane.b32.xlu0 %v1658, 4
        %v1730 = vpop.permute.xlu0 %1729
        %1731 = vrot.lane.b32.xlu0 %v1660, 4
        %v1732 = vpop.permute.xlu0 %1731
        %1733 = vrot.lane.b32.xlu0 %v1663, 4
        %v1734 = vpop.permute.xlu0 %1733
        %1735 = vrot.lane.b32.xlu0 %v1665, 4
        %v1736 = vpop.permute.xlu0 %1735
        %1737 = vrot.lane.b32.xlu0 %v1668, 4
        %v1738 = vpop.permute.xlu0 %1737
        %1739 = vrot.lane.b32.xlu0 %v1670, 4
        %v1740 = vpop.permute.xlu0 %1739
        %1741 = vrot.lane.b32.xlu0 %v1673, 4
        %v1742 = vpop.permute.xlu0 %1741
        %1743 = vrot.lane.b32.xlu0 %v1675, 4
        %v1744 = vpop.permute.xlu0 %1743
        %1745 = vrot.lane.b32.xlu0 %v1678, 4
        %v1746 = vpop.permute.xlu0 %1745
        %1747 = vrot.lane.b32.xlu0 %v1680, 4
        %v1748 = vpop.permute.xlu0 %1747
        %1749 = vrot.lane.b32.xlu0 %v1683, 4
        %v1750 = vpop.permute.xlu0 %1749
        %1751 = vrot.lane.b32.xlu0 %v1685, 4
        %v1752 = vpop.permute.xlu0 %1751
        %1753 = vrot.lane.b32.xlu0 %v1688, 4
        %v1754 = vpop.permute.xlu0 %1753
        %1755 = vrot.lane.b32.xlu0 %v1690, 4
        %v1756 = vpop.permute.xlu0 %1755
        %1757 = vrot.lane.b32.xlu0 %v1693, 4
        %v1758 = vpop.permute.xlu0 %1757
        %1759 = vrot.lane.b32.xlu0 %v1695, 4
        %v1760 = vpop.permute.xlu0 %1759
        %1761 = vrot.lane.b32.xlu0 %v1698, 4
        %v1762 = vpop.permute.xlu0 %1761
        %1763 = vrot.lane.b32.xlu0 %v1700, 4
        %v1764 = vpop.permute.xlu0 %1763
        %v1797 = vrot.slane %v1525, 2
        %v1798 = vrot.slane %v1526, 2
        %v1799 = vsel %vm1281, %v1797, %v1798
        %v1800 = vrot.slane %v1527, 2
        %v1801 = vsel %vm1281, %v1798, %v1800
        %v1802 = vrot.slane %v1528, 2
        %v1803 = vrot.slane %v1529, 2
        %v1804 = vsel %vm1281, %v1802, %v1803
        %v1805 = vrot.slane %v1530, 2
        %v1806 = vsel %vm1281, %v1803, %v1805
        %v1807 = vrot.slane %v1531, 2
        %v1808 = vrot.slane %v1532, 2
        %v1809 = vsel %vm1281, %v1807, %v1808
        %v1810 = vrot.slane %v1533, 2
        %v1811 = vsel %vm1281, %v1808, %v1810
        %v1812 = vrot.slane %v1534, 2
        %v1813 = vrot.slane %v1535, 2
        %v1814 = vsel %vm1281, %v1812, %v1813
        %v1815 = vrot.slane %v1536, 2
        %v1816 = vsel %vm1281, %v1813, %v1815
        %v1817 = vrot.slane %v1537, 2
        %v1818 = vrot.slane %v1538, 2
        %v1819 = vsel %vm1281, %v1817, %v1818
        %v1820 = vrot.slane %v1539, 2
        %v1821 = vsel %vm1281, %v1818, %v1820
        %v1822 = vrot.slane %v1540, 2
        %v1823 = vrot.slane %v1541, 2
        %v1824 = vsel %vm1281, %v1822, %v1823
        %v1825 = vrot.slane %v1542, 2
        %v1826 = vsel %vm1281, %v1823, %v1825
        %v1827 = vrot.slane %v1543, 2
        %v1828 = vrot.slane %v1544, 2
        %v1829 = vsel %vm1281, %v1827, %v1828
        %v1830 = vrot.slane %v1545, 2
        %v1831 = vsel %vm1281, %v1828, %v1830
        %v1832 = vrot.slane %v1546, 2
        %v1833 = vrot.slane %v1547, 2
        %v1834 = vsel %vm1281, %v1832, %v1833
        %v1835 = vrot.slane %v1548, 2
        %v1836 = vsel %vm1281, %v1833, %v1835
        %v1837 = vrot.slane %v1549, 2
        %v1838 = vrot.slane %v1550, 2
        %v1839 = vsel %vm1281, %v1837, %v1838
        %v1840 = vrot.slane %v1551, 2
        %v1841 = vsel %vm1281, %v1838, %v1840
        %v1842 = vrot.slane %v1552, 2
        %v1843 = vrot.slane %v1553, 2
        %v1844 = vsel %vm1281, %v1842, %v1843
        %v1845 = vrot.slane %v1554, 2
        %v1846 = vsel %vm1281, %v1843, %v1845
        %v1847 = vrot.slane %v1555, 2
        %v1848 = vrot.slane %v1556, 2
        %v1849 = vsel %vm1281, %v1847, %v1848
        %v1850 = vrot.slane %v1557, 2
        %v1851 = vsel %vm1281, %v1848, %v1850
        %v1852 = vrot.slane %v1558, 2
        %v1853 = vrot.slane %v1559, 2
        %v1854 = vsel %vm1281, %v1852, %v1853
        %v1855 = vrot.slane %v1560, 2
        %v1856 = vsel %vm1281, %v1853, %v1855
        %v1857 = vrot.slane %v1561, 2
        %v1858 = vrot.slane %v1562, 2
        %v1859 = vsel %vm1281, %v1857, %v1858
        %v1860 = vrot.slane %v1563, 2
        %v1861 = vsel %vm1281, %v1858, %v1860
        %v1862 = vrot.slane %v1564, 2
        %v1863 = vrot.slane %v1565, 2
        %v1864 = vsel %vm1281, %v1862, %v1863
        %v1865 = vrot.slane %v1566, 2
        %v1866 = vsel %vm1281, %v1863, %v1865
        %v1867 = vrot.slane %v1567, 2
        %v1868 = vrot.slane %v1568, 2
        %v1869 = vsel %vm1281, %v1867, %v1868
        %v1870 = vrot.slane %v1569, 2
        %v1871 = vsel %vm1281, %v1868, %v1870
        %v1872 = vrot.slane %v1570, 2
        %v1873 = vrot.slane %v1571, 2
        %v1874 = vsel %vm1281, %v1872, %v1873
        %v1875 = vrot.slane %v1572, 2
        %v1876 = vsel %vm1281, %v1873, %v1875
        %1877 = vrot.lane.b32.xlu0 %v1799, 8
        %v1878 = vpop.permute.xlu0 %1877
        %1879 = vrot.lane.b32.xlu0 %v1801, 8
        %v1880 = vpop.permute.xlu0 %1879
        %1881 = vrot.lane.b32.xlu0 %v1804, 8
        %v1882 = vpop.permute.xlu0 %1881
        %1883 = vrot.lane.b32.xlu0 %v1806, 8
        %v1884 = vpop.permute.xlu0 %1883
        %1885 = vrot.lane.b32.xlu0 %v1809, 8
        %v1886 = vpop.permute.xlu0 %1885
        %1887 = vrot.lane.b32.xlu0 %v1811, 8
        %v1888 = vpop.permute.xlu0 %1887
        %1889 = vrot.lane.b32.xlu0 %v1814, 8
        %v1890 = vpop.permute.xlu0 %1889
        %1891 = vrot.lane.b32.xlu0 %v1816, 8
        %v1892 = vpop.permute.xlu0 %1891
        %1893 = vrot.lane.b32.xlu0 %v1819, 8
        %v1894 = vpop.permute.xlu0 %1893
        %1895 = vrot.lane.b32.xlu0 %v1821, 8
        %v1896 = vpop.permute.xlu0 %1895
        %1897 = vrot.lane.b32.xlu0 %v1824, 8
        %v1898 = vpop.permute.xlu0 %1897
        %1899 = vrot.lane.b32.xlu0 %v1826, 8
        %v1900 = vpop.permute.xlu0 %1899
        %1901 = vrot.lane.b32.xlu0 %v1829, 8
        %v1902 = vpop.permute.xlu0 %1901
        %1903 = vrot.lane.b32.xlu0 %v1831, 8
        %v1904 = vpop.permute.xlu0 %1903
        %1905 = vrot.lane.b32.xlu0 %v1834, 8
        %v1906 = vpop.permute.xlu0 %1905
        %1907 = vrot.lane.b32.xlu0 %v1836, 8
        %v1908 = vpop.permute.xlu0 %1907
        %1909 = vrot.lane.b32.xlu0 %v1839, 8
        %v1910 = vpop.permute.xlu0 %1909
        %1911 = vrot.lane.b32.xlu0 %v1841, 8
        %v1912 = vpop.permute.xlu0 %1911
        %1913 = vrot.lane.b32.xlu0 %v1844, 8
        %v1914 = vpop.permute.xlu0 %1913
        %1915 = vrot.lane.b32.xlu0 %v1846, 8
        %v1916 = vpop.permute.xlu0 %1915
        %1917 = vrot.lane.b32.xlu0 %v1849, 8
        %v1918 = vpop.permute.xlu0 %1917
        %1919 = vrot.lane.b32.xlu0 %v1851, 8
        %v1920 = vpop.permute.xlu0 %1919
        %1921 = vrot.lane.b32.xlu0 %v1854, 8
        %v1922 = vpop.permute.xlu0 %1921
        %1923 = vrot.lane.b32.xlu0 %v1856, 8
        %v1924 = vpop.permute.xlu0 %1923
        %1925 = vrot.lane.b32.xlu0 %v1859, 8
        %v1926 = vpop.permute.xlu0 %1925
        %1927 = vrot.lane.b32.xlu0 %v1861, 8
        %v1928 = vpop.permute.xlu0 %1927
        %1929 = vrot.lane.b32.xlu0 %v1864, 8
        %v1930 = vpop.permute.xlu0 %1929
        %1931 = vrot.lane.b32.xlu0 %v1866, 8
        %v1932 = vpop.permute.xlu0 %1931
        %1933 = vrot.lane.b32.xlu0 %v1869, 8
        %v1934 = vpop.permute.xlu0 %1933
        %1935 = vrot.lane.b32.xlu0 %v1871, 8
        %v1936 = vpop.permute.xlu0 %1935
        %1937 = vrot.lane.b32.xlu0 %v1874, 8
        %v1938 = vpop.permute.xlu0 %1937
        %1939 = vrot.lane.b32.xlu0 %v1876, 8
        %v1940 = vpop.permute.xlu0 %1939
        %v1973 = vsel %vm969, %v1525, %v1702
        %v1974 = vsel %vm969, %v1526, %v1704
        %v1975 = vsel %vm969, %v1528, %v1706
        %v1976 = vsel %vm969, %v1529, %v1708
        %v1977 = vsel %vm969, %v1531, %v1710
        %v1978 = vsel %vm969, %v1532, %v1712
        %v1979 = vsel %vm969, %v1534, %v1714
        %v1980 = vsel %vm969, %v1535, %v1716
        %v1981 = vsel %vm969, %v1537, %v1718
        %v1982 = vsel %vm969, %v1538, %v1720
        %v1983 = vsel %vm969, %v1540, %v1722
        %v1984 = vsel %vm969, %v1541, %v1724
        %v1985 = vsel %vm969, %v1543, %v1726
        %v1986 = vsel %vm969, %v1544, %v1728
        %v1987 = vsel %vm969, %v1546, %v1730
        %v1988 = vsel %vm969, %v1547, %v1732
        %v1989 = vsel %vm969, %v1549, %v1734
        %v1990 = vsel %vm969, %v1550, %v1736
        %v1991 = vsel %vm969, %v1552, %v1738
        %v1992 = vsel %vm969, %v1553, %v1740
        %v1993 = vsel %vm969, %v1555, %v1742
        %v1994 = vsel %vm969, %v1556, %v1744
        %v1995 = vsel %vm969, %v1558, %v1746
        %v1996 = vsel %vm969, %v1559, %v1748
        %v1997 = vsel %vm969, %v1561, %v1750
        %v1998 = vsel %vm969, %v1562, %v1752
        %v1999 = vsel %vm969, %v1564, %v1754
        %v2000 = vsel %vm969, %v1565, %v1756
        %v2001 = vsel %vm969, %v1567, %v1758
        %v2002 = vsel %vm969, %v1568, %v1760
        %v2003 = vsel %vm969, %v1570, %v1762
        %v2004 = vsel %vm969, %v1571, %v1764
        %v2005 = vsel %vm1490, %v1973, %v1878
        %v2006 = vsel %vm1490, %v1974, %v1880
        %v2007 = vsel %vm1490, %v1975, %v1882
        %v2008 = vsel %vm1490, %v1976, %v1884
        %v2009 = vsel %vm1490, %v1977, %v1886
        %v2010 = vsel %vm1490, %v1978, %v1888
        %v2011 = vsel %vm1490, %v1979, %v1890
        %v2012 = vsel %vm1490, %v1980, %v1892
        %v2013 = vsel %vm1490, %v1981, %v1894
        %v2014 = vsel %vm1490, %v1982, %v1896
        %v2015 = vsel %vm1490, %v1983, %v1898
        %v2016 = vsel %vm1490, %v1984, %v1900
        %v2017 = vsel %vm1490, %v1985, %v1902
        %v2018 = vsel %vm1490, %v1986, %v1904
        %v2019 = vsel %vm1490, %v1987, %v1906
        %v2020 = vsel %vm1490, %v1988, %v1908
        %v2021 = vsel %vm1490, %v1989, %v1910
        %v2022 = vsel %vm1490, %v1990, %v1912
        %v2023 = vsel %vm1490, %v1991, %v1914
        %v2024 = vsel %vm1490, %v1992, %v1916
        %v2025 = vsel %vm1490, %v1993, %v1918
        %v2026 = vsel %vm1490, %v1994, %v1920
        %v2027 = vsel %vm1490, %v1995, %v1922
        %v2028 = vsel %vm1490, %v1996, %v1924
        %v2029 = vsel %vm1490, %v1997, %v1926
        %v2030 = vsel %vm1490, %v1998, %v1928
        %v2031 = vsel %vm1490, %v1999, %v1930
        %v2032 = vsel %vm1490, %v2000, %v1932
        %v2033 = vsel %vm1490, %v2001, %v1934
        %v2034 = vsel %vm1490, %v2002, %v1936
        %v2035 = vsel %vm1490, %v2003, %v1938
        %v2036 = vsel %vm1490, %v2004, %v1940
        %s2037 = scalar_lea.vmem %s5, 16
        %v2038 = vld [vmem:[%s2037] sm:$0xff]
        %v2039 = vld [vmem:[%s2037 + $0x8] sm:$0xf]
        %vm2040 = vcmask 97280
        %v2042 = vsel %vm2040, %v2005, 0
        %v2045 = vsel %vm2040, %v2006, 0
        %v2048 = vsel %vm2040, %v2007, 0
        %v2051 = vsel %vm2040, %v2008, 0
        %v2054 = vsel %vm2040, %v2009, 0
        %v2057 = vsel %vm2040, %v2010, 0
        %v2060 = vsel %vm2040, %v2011, 0
        %v2063 = vsel %vm2040, %v2012, 0
        %v2066 = vsel %vm2040, %v2013, 0
        %v2069 = vsel %vm2040, %v2014, 0
        %v2072 = vsel %vm2040, %v2015, 0
        %v2075 = vsel %vm2040, %v2016, 0
        %v2078 = vsel %vm2040, %v2017, 0
        %v2081 = vsel %vm2040, %v2018, 0
        %v2084 = vsel %vm2040, %v2019, 0
        %v2087 = vsel %vm2040, %v2020, 0
        %v2090 = vsel %vm2040, %v2021, 0
        %v2093 = vsel %vm2040, %v2022, 0
        %v2096 = vsel %vm2040, %v2023, 0
        %v2099 = vsel %vm2040, %v2024, 0
        %v2102 = vsel %vm2040, %v2025, 0
        %v2105 = vsel %vm2040, %v2026, 0
        %v2108 = vsel %vm2040, %v2027, 0
        %v2111 = vsel %vm2040, %v2028, 0
        %v2114 = vsel %vm2040, %v2029, 0
        %v2117 = vsel %vm2040, %v2030, 0
        %v2120 = vsel %vm2040, %v2031, 0
        %v2123 = vsel %vm2040, %v2032, 0
        %v2126 = vsel %vm2040, %v2033, 0
        %v2129 = vsel %vm2040, %v2034, 0
        %v2132 = vsel %vm2040, %v2035, 0
        %v2135 = vsel %vm2040, %v2036, 0
        %vm2137 = vcmask 1043456
        %v2139 = vsel %vm2137, %v2039, 0
        %2141 = vmatprep.subr.mxu0 0.0
        %2142 = vmatpush1.msra.mxu0 %v2038
        %2143 = vmatprep.subr.mxu0 0.0
        %2144 = vmatpush1.msra.mxu0 %v2139
        %2145 = vmatprep.subr.mxu0 0.0
        %2146 = vmatpush1.msra.mxu0 0.0
        %2147 = vmatprep.subr.mxu0 0.0
        %2148 = vmatpush1.msra.mxu0 0.0
        %2149 = vmatprep.subr.mxu0 0.0
        %2150 = vmatpush1.msra.mxu0 0.0
        %2151 = vmatprep.subr.mxu0 0.0
        %2152 = vmatpush1.msra.mxu0 0.0
        %2153 = vmatprep.subr.mxu0 0.0
        %2154 = vmatpush1.msra.mxu0 0.0
        %2155 = vmatprep.subr.mxu0 0.0
        %2156 = vmatpush1.msra.mxu0 0.0
        %2157 = vmatprep.subr.mxu0 0.0
        %2158 = vmatpush1.msra.mxu0 0.0
        %2159 = vmatprep.subr.mxu0 0.0
        %2160 = vmatpush1.msra.mxu0 0.0
        %2161 = vmatprep.subr.mxu0 0.0
        %2162 = vmatpush1.msra.mxu0 0.0
        %2163 = vmatprep.subr.mxu0 0.0
        %2164 = vmatpush1.msra.mxu0 0.0
        %2165 = vmatprep.subr.mxu0 0.0
        %2166 = vmatpush1.msra.mxu0 0.0
        %2167 = vmatprep.subr.mxu0 0.0
        %2168 = vmatpush1.msra.mxu0 0.0
        %2169 = vmatprep.subr.mxu0 0.0
        %2170 = vmatpush1.msra.mxu0 0.0
        %2171 = vmatprep.subr.mxu0 0.0
        %2172 = vmatpush1.msra.mxu0 0.0
        %2173 = vmatprep.subr.mxu0 0.0
        %2174 = vmatpush1.msra.mxu0 0.0
        %2175 = vmatprep.subr.mxu0 0.0
        %2176 = vmatpush1.msra.mxu0 0.0
        %2177 = vmatprep.subr.mxu0 0.0
        %2178 = vmatpush1.msra.mxu0 0.0
        %2179 = vmatprep.subr.mxu0 0.0
        %2180 = vmatpush1.msra.mxu0 0.0
        %2181 = vmatprep.subr.mxu0 0.0
        %2182 = vmatpush1.msra.mxu0 0.0
        %2183 = vmatprep.subr.mxu0 0.0
        %2184 = vmatpush1.msra.mxu0 0.0
        %2185 = vmatprep.subr.mxu0 0.0
        %2186 = vmatpush1.msra.mxu0 0.0
        %2187 = vmatprep.subr.mxu0 0.0
        %2188 = vmatpush1.msra.mxu0 0.0
        %2189 = vmatprep.subr.mxu0 0.0
        %2190 = vmatpush1.msra.mxu0 0.0
        %2191 = vmatprep.subr.mxu0 0.0
        %2192 = vmatpush1.msra.mxu0 0.0
        %2193 = vmatprep.subr.mxu0 0.0
        %2194 = vmatpush1.msra.mxu0 0.0
        %2195 = vmatprep.subr.mxu0 0.0
        %2196 = vmatpush1.msra.mxu0 0.0
        %2197 = vmatprep.subr.mxu0 0.0
        %2198 = vmatpush1.msra.mxu0 0.0
        %2199 = vmatprep.subr.mxu0 0.0
        %2200 = vmatpush1.msra.mxu0 0.0
        %2201 = vmatprep.subr.mxu0 0.0
        %2202 = vmatpush1.msra.mxu0 0.0
        %2203 = vmatprep.subr.mxu0 0.0
        %2204 = vmatpush1.msra.mxu0 0.0
        %2205 = vmatprep.mubr.f32.mxu0 0.0
        %2206 = vmatmul.mubr.f32.gmra.mrb[0].mxu0 %v2042
        %v2207 = vpop.f32.mrb[0].mxu0
        %v2208 = vadd.f32 0.0, %v2207
        %v2209 = vpop.f32.mrb[0].mxu0
        %2210 = vmatprep.mubr.f32.mxu0 0.0
        %2211 = vmatmul.mubr.f32.gmra.mrb[0].mxu0 %v2045
        %v2212 = vpop.f32.mrb[0].mxu0
        %v2213 = vadd.f32 0.0, %v2212
        %v2214 = vpop.f32.mrb[0].mxu0
        %2215 = vmatprep.mubr.f32.mxu0 0.0
        %2216 = vmatmul.mubr.f32.gmra.mrb[0].mxu0 %v2048
        %v2217 = vpop.f32.mrb[0].mxu0
        %v2218 = vadd.f32 0.0, %v2217
        %v2219 = vpop.f32.mrb[0].mxu0
        %2220 = vmatprep.mubr.f32.mxu0 0.0
        %2221 = vmatmul.mubr.f32.gmra.mrb[0].mxu0 %v2051
        %v2222 = vpop.f32.mrb[0].mxu0
        %v2223 = vadd.f32 0.0, %v2222
        %v2224 = vpop.f32.mrb[0].mxu0
        %2225 = vmatprep.mubr.f32.mxu0 0.0
        %2226 = vmatmul.mubr.f32.gmra.mrb[0].mxu0 %v2054
        %v2227 = vpop.f32.mrb[0].mxu0
        %v2228 = vadd.f32 0.0, %v2227
        %v2229 = vpop.f32.mrb[0].mxu0
        %2230 = vmatprep.mubr.f32.mxu0 0.0
        %2231 = vmatmul.mubr.f32.gmra.mrb[0].mxu0 %v2057
        %v2232 = vpop.f32.mrb[0].mxu0
        %v2233 = vadd.f32 0.0, %v2232
        %v2234 = vpop.f32.mrb[0].mxu0
        %2235 = vmatprep.mubr.f32.mxu0 0.0
        %2236 = vmatmul.mubr.f32.gmra.mrb[0].mxu0 %v2060
        %v2237 = vpop.f32.mrb[0].mxu0
        %v2238 = vadd.f32 0.0, %v2237
        %v2239 = vpop.f32.mrb[0].mxu0
        %2240 = vmatprep.mubr.f32.mxu0 0.0
        %2241 = vmatmul.mubr.f32.gmra.mrb[0].mxu0 %v2063
        %v2242 = vpop.f32.mrb[0].mxu0
        %v2243 = vadd.f32 0.0, %v2242
        %v2244 = vpop.f32.mrb[0].mxu0
        %2245 = vmatprep.mubr.f32.mxu0 0.0
        %2246 = vmatmul.mubr.f32.gmra.mrb[0].mxu0 %v2066
        %v2247 = vpop.f32.mrb[0].mxu0
        %v2248 = vadd.f32 0.0, %v2247
        %v2249 = vpop.f32.mrb[0].mxu0
        %2250 = vmatprep.mubr.f32.mxu0 0.0
        %2251 = vmatmul.mubr.f32.gmra.mrb[0].mxu0 %v2069
        %v2252 = vpop.f32.mrb[0].mxu0
        %v2253 = vadd.f32 0.0, %v2252
        %v2254 = vpop.f32.mrb[0].mxu0
        %2255 = vmatprep.mubr.f32.mxu0 0.0
        %2256 = vmatmul.mubr.f32.gmra.mrb[0].mxu0 %v2072
        %v2257 = vpop.f32.mrb[0].mxu0
        %v2258 = vadd.f32 0.0, %v2257
        %v2259 = vpop.f32.mrb[0].mxu0
        %2260 = vmatprep.mubr.f32.mxu0 0.0
        %2261 = vmatmul.mubr.f32.gmra.mrb[0].mxu0 %v2075
        %v2262 = vpop.f32.mrb[0].mxu0
        %v2263 = vadd.f32 0.0, %v2262
        %v2264 = vpop.f32.mrb[0].mxu0
        %2265 = vmatprep.mubr.f32.mxu0 0.0
        %2266 = vmatmul.mubr.f32.gmra.mrb[0].mxu0 %v2078
        %v2267 = vpop.f32.mrb[0].mxu0
        %v2268 = vadd.f32 0.0, %v2267
        %v2269 = vpop.f32.mrb[0].mxu0
        %2270 = vmatprep.mubr.f32.mxu0 0.0
        %2271 = vmatmul.mubr.f32.gmra.mrb[0].mxu0 %v2081
        %v2272 = vpop.f32.mrb[0].mxu0
        %v2273 = vadd.f32 0.0, %v2272
        %v2274 = vpop.f32.mrb[0].mxu0
        %2275 = vmatprep.mubr.f32.mxu0 0.0
        %2276 = vmatmul.mubr.f32.gmra.mrb[0].mxu0 %v2084
        %v2277 = vpop.f32.mrb[0].mxu0
        %v2278 = vadd.f32 0.0, %v2277
        %v2279 = vpop.f32.mrb[0].mxu0
        %2280 = vmatprep.mubr.f32.mxu0 0.0
        %2281 = vmatmul.mubr.f32.gmra.mrb[0].mxu0 %v2087
        %v2282 = vpop.f32.mrb[0].mxu0
        %v2283 = vadd.f32 0.0, %v2282
        %v2284 = vpop.f32.mrb[0].mxu0
        %2285 = vmatprep.mubr.f32.mxu0 0.0
        %2286 = vmatmul.mubr.f32.gmra.mrb[0].mxu0 %v2090
        %v2287 = vpop.f32.mrb[0].mxu0
        %v2288 = vadd.f32 0.0, %v2287
        %v2289 = vpop.f32.mrb[0].mxu0
        %2290 = vmatprep.mubr.f32.mxu0 0.0
        %2291 = vmatmul.mubr.f32.gmra.mrb[0].mxu0 %v2093
        %v2292 = vpop.f32.mrb[0].mxu0
        %v2293 = vadd.f32 0.0, %v2292
        %v2294 = vpop.f32.mrb[0].mxu0
        %2295 = vmatprep.mubr.f32.mxu0 0.0
        %2296 = vmatmul.mubr.f32.gmra.mrb[0].mxu0 %v2096
        %v2297 = vpop.f32.mrb[0].mxu0
        %v2298 = vadd.f32 0.0, %v2297
        %v2299 = vpop.f32.mrb[0].mxu0
        %2300 = vmatprep.mubr.f32.mxu0 0.0
        %2301 = vmatmul.mubr.f32.gmra.mrb[0].mxu0 %v2099
        %v2302 = vpop.f32.mrb[0].mxu0
        %v2303 = vadd.f32 0.0, %v2302
        %v2304 = vpop.f32.mrb[0].mxu0
        %2305 = vmatprep.mubr.f32.mxu0 0.0
        %2306 = vmatmul.mubr.f32.gmra.mrb[0].mxu0 %v2102
        %v2307 = vpop.f32.mrb[0].mxu0
        %v2308 = vadd.f32 0.0, %v2307
        %v2309 = vpop.f32.mrb[0].mxu0
        %2310 = vmatprep.mubr.f32.mxu0 0.0
        %2311 = vmatmul.mubr.f32.gmra.mrb[0].mxu0 %v2105
        %v2312 = vpop.f32.mrb[0].mxu0
        %v2313 = vadd.f32 0.0, %v2312
        %v2314 = vpop.f32.mrb[0].mxu0
        %2315 = vmatprep.mubr.f32.mxu0 0.0
        %2316 = vmatmul.mubr.f32.gmra.mrb[0].mxu0 %v2108
        %v2317 = vpop.f32.mrb[0].mxu0
        %v2318 = vadd.f32 0.0, %v2317
        %v2319 = vpop.f32.mrb[0].mxu0
        %2320 = vmatprep.mubr.f32.mxu0 0.0
        %2321 = vmatmul.mubr.f32.gmra.mrb[0].mxu0 %v2111
        %v2322 = vpop.f32.mrb[0].mxu0
        %v2323 = vadd.f32 0.0, %v2322
        %v2324 = vpop.f32.mrb[0].mxu0
        %2325 = vmatprep.mubr.f32.mxu0 0.0
        %2326 = vmatmul.mubr.f32.gmra.mrb[0].mxu0 %v2114
        %v2327 = vpop.f32.mrb[0].mxu0
        %v2328 = vadd.f32 0.0, %v2327
        %v2329 = vpop.f32.mrb[0].mxu0
        %2330 = vmatprep.mubr.f32.mxu0 0.0
        %2331 = vmatmul.mubr.f32.gmra.mrb[0].mxu0 %v2117
        %v2332 = vpop.f32.mrb[0].mxu0
        %v2333 = vadd.f32 0.0, %v2332
        %v2334 = vpop.f32.mrb[0].mxu0
        %2335 = vmatprep.mubr.f32.mxu0 0.0
        %2336 = vmatmul.mubr.f32.gmra.mrb[0].mxu0 %v2120
        %v2337 = vpop.f32.mrb[0].mxu0
        %v2338 = vadd.f32 0.0, %v2337
        %v2339 = vpop.f32.mrb[0].mxu0
        %2340 = vmatprep.mubr.f32.mxu0 0.0
        %2341 = vmatmul.mubr.f32.gmra.mrb[0].mxu0 %v2123
        %v2342 = vpop.f32.mrb[0].mxu0
        %v2343 = vadd.f32 0.0, %v2342
        %v2344 = vpop.f32.mrb[0].mxu0
        %2345 = vmatprep.mubr.f32.mxu0 0.0
        %2346 = vmatmul.mubr.f32.gmra.mrb[0].mxu0 %v2126
        %v2347 = vpop.f32.mrb[0].mxu0
        %v2348 = vadd.f32 0.0, %v2347
        %v2349 = vpop.f32.mrb[0].mxu0
        %2350 = vmatprep.mubr.f32.mxu0 0.0
        %2351 = vmatmul.mubr.f32.gmra.mrb[0].mxu0 %v2129
        %v2352 = vpop.f32.mrb[0].mxu0
        %v2353 = vadd.f32 0.0, %v2352
        %v2354 = vpop.f32.mrb[0].mxu0
        %2355 = vmatprep.mubr.f32.mxu0 0.0
        %2356 = vmatmul.mubr.f32.gmra.mrb[0].mxu0 %v2132
        %v2357 = vpop.f32.mrb[0].mxu0
        %v2358 = vadd.f32 0.0, %v2357
        %v2359 = vpop.f32.mrb[0].mxu0
        %2360 = vmatprep.mubr.f32.mxu0 0.0
        %2361 = vmatmul.mubr.f32.gmra.mrb[0].mxu0 %v2135
        %v2362 = vpop.f32.mrb[0].mxu0
        %v2363 = vadd.f32 0.0, %v2362
        %v2364 = vpop.f32.mrb[0].mxu0
        %2365 = vdwg.mxu0
        %v2367 = vsel %vm2040, %v1491, 0
        %v2370 = vsel %vm2040, %v1492, 0
        %v2373 = vsel %vm2040, %v1493, 0
        %v2376 = vsel %vm2040, %v1494, 0
        %v2379 = vsel %vm2040, %v1495, 0
        %v2382 = vsel %vm2040, %v1496, 0
        %v2385 = vsel %vm2040, %v1497, 0
        %v2388 = vsel %vm2040, %v1498, 0
        %v2391 = vsel %vm2040, %v1499, 0
        %v2394 = vsel %vm2040, %v1500, 0
        %v2397 = vsel %vm2040, %v1501, 0
        %v2400 = vsel %vm2040, %v1502, 0
        %v2403 = vsel %vm2040, %v1503, 0
        %v2406 = vsel %vm2040, %v1504, 0
        %v2409 = vsel %vm2040, %v1505, 0
        %v2412 = vsel %vm2040, %v1506, 0
        %v2415 = vsel %vm2040, %v1507, 0
        %v2418 = vsel %vm2040, %v1508, 0
        %v2421 = vsel %vm2040, %v1509, 0
        %v2424 = vsel %vm2040, %v1510, 0
        %v2427 = vsel %vm2040, %v1511, 0
        %v2430 = vsel %vm2040, %v1512, 0
        %v2433 = vsel %vm2040, %v1513, 0
        %v2436 = vsel %vm2040, %v1514, 0
        %v2439 = vsel %vm2040, %v1515, 0
        %v2442 = vsel %vm2040, %v1516, 0
        %v2445 = vsel %vm2040, %v1517, 0
        %v2448 = vsel %vm2040, %v1518, 0
        %v2451 = vsel %vm2040, %v1519, 0
        %v2454 = vsel %vm2040, %v1520, 0
        %v2457 = vsel %vm2040, %v1521, 0
        %v2460 = vsel %vm2040, %v1522, 0
        %v2463 = vsel %vm2137, %v1524, 0
        %2465 = vmatprep.subr.mxu0 0.0
        %2466 = vmatpush1.msra.mxu0 %v1523
        %2467 = vmatprep.subr.mxu0 0.0
        %2468 = vmatpush1.msra.mxu0 %v2463
        %2469 = vmatprep.subr.mxu0 0.0
        %2470 = vmatpush1.msra.mxu0 0.0
        %2471 = vmatprep.subr.mxu0 0.0
        %2472 = vmatpush1.msra.mxu0 0.0
        %2473 = vmatprep.subr.mxu0 0.0
        %2474 = vmatpush1.msra.mxu0 0.0
        %2475 = vmatprep.subr.mxu0 0.0
        %2476 = vmatpush1.msra.mxu0 0.0
        %2477 = vmatprep.subr.mxu0 0.0
        %2478 = vmatpush1.msra.mxu0 0.0
        %2479 = vmatprep.subr.mxu0 0.0
        %2480 = vmatpush1.msra.mxu0 0.0
        %2481 = vmatprep.subr.mxu0 0.0
        %2482 = vmatpush1.msra.mxu0 0.0
        %2483 = vmatprep.subr.mxu0 0.0
        %2484 = vmatpush1.msra.mxu0 0.0
        %2485 = vmatprep.subr.mxu0 0.0
        %2486 = vmatpush1.msra.mxu0 0.0
        %2487 = vmatprep.subr.mxu0 0.0
        %2488 = vmatpush1.msra.mxu0 0.0
        %2489 = vmatprep.subr.mxu0 0.0
        %2490 = vmatpush1.msra.mxu0 0.0
        %2491 = vmatprep.subr.mxu0 0.0
        %2492 = vmatpush1.msra.mxu0 0.0
        %2493 = vmatprep.subr.mxu0 0.0
        %2494 = vmatpush1.msra.mxu0 0.0
        %2495 = vmatprep.subr.mxu0 0.0
        %2496 = vmatpush1.msra.mxu0 0.0
        %2497 = vmatprep.subr.mxu0 0.0
        %2498 = vmatpush1.msra.mxu0 0.0
        %2499 = vmatprep.subr.mxu0 0.0
        %2500 = vmatpush1.msra.mxu0 0.0
        %2501 = vmatprep.subr.mxu0 0.0
        %2502 = vmatpush1.msra.mxu0 0.0
        %2503 = vmatprep.subr.mxu0 0.0
        %2504 = vmatpush1.msra.mxu0 0.0
        %2505 = vmatprep.subr.mxu0 0.0
        %2506 = vmatpush1.msra.mxu0 0.0
        %2507 = vmatprep.subr.mxu0 0.0
        %2508 = vmatpush1.msra.mxu0 0.0
        %2509 = vmatprep.subr.mxu0 0.0
        %2510 = vmatpush1.msra.mxu0 0.0
        %2511 = vmatprep.subr.mxu0 0.0
        %2512 = vmatpush1.msra.mxu0 0.0
        %2513 = vmatprep.subr.mxu0 0.0
        %2514 = vmatpush1.msra.mxu0 0.0
        %2515 = vmatprep.subr.mxu0 0.0
        %2516 = vmatpush1.msra.mxu0 0.0
        %2517 = vmatprep.subr.mxu0 0.0
        %2518 = vmatpush1.msra.mxu0 0.0
        %2519 = vmatprep.subr.mxu0 0.0
        %2520 = vmatpush1.msra.mxu0 0.0
        %2521 = vmatprep.subr.mxu0 0.0
        %2522 = vmatpush1.msra.mxu0 0.0
        %2523 = vmatprep.subr.mxu0 0.0
        %2524 = vmatpush1.msra.mxu0 0.0
        %2525 = vmatprep.subr.mxu0 0.0
        %2526 = vmatpush1.msra.mxu0 0.0
        %2527 = vmatprep.subr.mxu0 0.0
        %2528 = vmatpush1.msra.mxu0 0.0
        %2529 = vmatprep.mubr.f32.mxu0 0.0
        %2530 = vmatmul.mubr.f32.gmra.mrb[0].mxu0 %v2367
        %v2531 = vpop.f32.mrb[0].mxu0
        %v2532 = vadd.f32 %v2208, %v2531
        %v2533 = vpop.f32.mrb[0].mxu0
        %2534 = vmatprep.mubr.f32.mxu0 0.0
        %2535 = vmatmul.mubr.f32.gmra.mrb[0].mxu0 %v2370
        %v2536 = vpop.f32.mrb[0].mxu0
        %v2537 = vadd.f32 %v2213, %v2536
        %v2538 = vpop.f32.mrb[0].mxu0
        %2539 = vmatprep.mubr.f32.mxu0 0.0
        %2540 = vmatmul.mubr.f32.gmra.mrb[0].mxu0 %v2373
        %v2541 = vpop.f32.mrb[0].mxu0
        %v2542 = vadd.f32 %v2218, %v2541
        %v2543 = vpop.f32.mrb[0].mxu0
        %2544 = vmatprep.mubr.f32.mxu0 0.0
        %2545 = vmatmul.mubr.f32.gmra.mrb[0].mxu0 %v2376
        %v2546 = vpop.f32.mrb[0].mxu0
        %v2547 = vadd.f32 %v2223, %v2546
        %v2548 = vpop.f32.mrb[0].mxu0
        %2549 = vmatprep.mubr.f32.mxu0 0.0
        %2550 = vmatmul.mubr.f32.gmra.mrb[0].mxu0 %v2379
        %v2551 = vpop.f32.mrb[0].mxu0
        %v2552 = vadd.f32 %v2228, %v2551
        %v2553 = vpop.f32.mrb[0].mxu0
        %2554 = vmatprep.mubr.f32.mxu0 0.0
        %2555 = vmatmul.mubr.f32.gmra.mrb[0].mxu0 %v2382
        %v2556 = vpop.f32.mrb[0].mxu0
        %v2557 = vadd.f32 %v2233, %v2556
        %v2558 = vpop.f32.mrb[0].mxu0
        %2559 = vmatprep.mubr.f32.mxu0 0.0
        %2560 = vmatmul.mubr.f32.gmra.mrb[0].mxu0 %v2385
        %v2561 = vpop.f32.mrb[0].mxu0
        %v2562 = vadd.f32 %v2238, %v2561
        %v2563 = vpop.f32.mrb[0].mxu0
        %2564 = vmatprep.mubr.f32.mxu0 0.0
        %2565 = vmatmul.mubr.f32.gmra.mrb[0].mxu0 %v2388
        %v2566 = vpop.f32.mrb[0].mxu0
        %v2567 = vadd.f32 %v2243, %v2566
        %v2568 = vpop.f32.mrb[0].mxu0
        %2569 = vmatprep.mubr.f32.mxu0 0.0
        %2570 = vmatmul.mubr.f32.gmra.mrb[0].mxu0 %v2391
        %v2571 = vpop.f32.mrb[0].mxu0
        %v2572 = vadd.f32 %v2248, %v2571
        %v2573 = vpop.f32.mrb[0].mxu0
        %2574 = vmatprep.mubr.f32.mxu0 0.0
        %2575 = vmatmul.mubr.f32.gmra.mrb[0].mxu0 %v2394
        %v2576 = vpop.f32.mrb[0].mxu0
        %v2577 = vadd.f32 %v2253, %v2576
        %v2578 = vpop.f32.mrb[0].mxu0
        %2579 = vmatprep.mubr.f32.mxu0 0.0
        %2580 = vmatmul.mubr.f32.gmra.mrb[0].mxu0 %v2397
        %v2581 = vpop.f32.mrb[0].mxu0
        %v2582 = vadd.f32 %v2258, %v2581
        %v2583 = vpop.f32.mrb[0].mxu0
        %2584 = vmatprep.mubr.f32.mxu0 0.0
        %2585 = vmatmul.mubr.f32.gmra.mrb[0].mxu0 %v2400
        %v2586 = vpop.f32.mrb[0].mxu0
        %v2587 = vadd.f32 %v2263, %v2586
        %v2588 = vpop.f32.mrb[0].mxu0
        %2589 = vmatprep.mubr.f32.mxu0 0.0
        %2590 = vmatmul.mubr.f32.gmra.mrb[0].mxu0 %v2403
        %v2591 = vpop.f32.mrb[0].mxu0
        %v2592 = vadd.f32 %v2268, %v2591
        %v2593 = vpop.f32.mrb[0].mxu0
        %2594 = vmatprep.mubr.f32.mxu0 0.0
        %2595 = vmatmul.mubr.f32.gmra.mrb[0].mxu0 %v2406
        %v2596 = vpop.f32.mrb[0].mxu0
        %v2597 = vadd.f32 %v2273, %v2596
        %v2598 = vpop.f32.mrb[0].mxu0
        %2599 = vmatprep.mubr.f32.mxu0 0.0
        %2600 = vmatmul.mubr.f32.gmra.mrb[0].mxu0 %v2409
        %v2601 = vpop.f32.mrb[0].mxu0
        %v2602 = vadd.f32 %v2278, %v2601
        %v2603 = vpop.f32.mrb[0].mxu0
        %2604 = vmatprep.mubr.f32.mxu0 0.0
        %2605 = vmatmul.mubr.f32.gmra.mrb[0].mxu0 %v2412
        %v2606 = vpop.f32.mrb[0].mxu0
        %v2607 = vadd.f32 %v2283, %v2606
        %v2608 = vpop.f32.mrb[0].mxu0
        %2609 = vmatprep.mubr.f32.mxu0 0.0
        %2610 = vmatmul.mubr.f32.gmra.mrb[0].mxu0 %v2415
        %v2611 = vpop.f32.mrb[0].mxu0
        %v2612 = vadd.f32 %v2288, %v2611
        %v2613 = vpop.f32.mrb[0].mxu0
        %2614 = vmatprep.mubr.f32.mxu0 0.0
        %2615 = vmatmul.mubr.f32.gmra.mrb[0].mxu0 %v2418
        %v2616 = vpop.f32.mrb[0].mxu0
        %v2617 = vadd.f32 %v2293, %v2616
        %v2618 = vpop.f32.mrb[0].mxu0
        %2619 = vmatprep.mubr.f32.mxu0 0.0
        %2620 = vmatmul.mubr.f32.gmra.mrb[0].mxu0 %v2421
        %v2621 = vpop.f32.mrb[0].mxu0
        %v2622 = vadd.f32 %v2298, %v2621
        %v2623 = vpop.f32.mrb[0].mxu0
        %2624 = vmatprep.mubr.f32.mxu0 0.0
        %2625 = vmatmul.mubr.f32.gmra.mrb[0].mxu0 %v2424
        %v2626 = vpop.f32.mrb[0].mxu0
        %v2627 = vadd.f32 %v2303, %v2626
        %v2628 = vpop.f32.mrb[0].mxu0
        %2629 = vmatprep.mubr.f32.mxu0 0.0
        %2630 = vmatmul.mubr.f32.gmra.mrb[0].mxu0 %v2427
        %v2631 = vpop.f32.mrb[0].mxu0
        %v2632 = vadd.f32 %v2308, %v2631
        %v2633 = vpop.f32.mrb[0].mxu0
        %2634 = vmatprep.mubr.f32.mxu0 0.0
        %2635 = vmatmul.mubr.f32.gmra.mrb[0].mxu0 %v2430
        %v2636 = vpop.f32.mrb[0].mxu0
        %v2637 = vadd.f32 %v2313, %v2636
        %v2638 = vpop.f32.mrb[0].mxu0
        %2639 = vmatprep.mubr.f32.mxu0 0.0
        %2640 = vmatmul.mubr.f32.gmra.mrb[0].mxu0 %v2433
        %v2641 = vpop.f32.mrb[0].mxu0
        %v2642 = vadd.f32 %v2318, %v2641
        %v2643 = vpop.f32.mrb[0].mxu0
        %2644 = vmatprep.mubr.f32.mxu0 0.0
        %2645 = vmatmul.mubr.f32.gmra.mrb[0].mxu0 %v2436
        %v2646 = vpop.f32.mrb[0].mxu0
        %v2647 = vadd.f32 %v2323, %v2646
        %v2648 = vpop.f32.mrb[0].mxu0
        %2649 = vmatprep.mubr.f32.mxu0 0.0
        %2650 = vmatmul.mubr.f32.gmra.mrb[0].mxu0 %v2439
        %v2651 = vpop.f32.mrb[0].mxu0
        %v2652 = vadd.f32 %v2328, %v2651
        %v2653 = vpop.f32.mrb[0].mxu0
        %2654 = vmatprep.mubr.f32.mxu0 0.0
        %2655 = vmatmul.mubr.f32.gmra.mrb[0].mxu0 %v2442
        %v2656 = vpop.f32.mrb[0].mxu0
        %v2657 = vadd.f32 %v2333, %v2656
        %v2658 = vpop.f32.mrb[0].mxu0
        %2659 = vmatprep.mubr.f32.mxu0 0.0
        %2660 = vmatmul.mubr.f32.gmra.mrb[0].mxu0 %v2445
        %v2661 = vpop.f32.mrb[0].mxu0
        %v2662 = vadd.f32 %v2338, %v2661
        %v2663 = vpop.f32.mrb[0].mxu0
        %2664 = vmatprep.mubr.f32.mxu0 0.0
        %2665 = vmatmul.mubr.f32.gmra.mrb[0].mxu0 %v2448
        %v2666 = vpop.f32.mrb[0].mxu0
        %v2667 = vadd.f32 %v2343, %v2666
        %v2668 = vpop.f32.mrb[0].mxu0
        %2669 = vmatprep.mubr.f32.mxu0 0.0
        %2670 = vmatmul.mubr.f32.gmra.mrb[0].mxu0 %v2451
        %v2671 = vpop.f32.mrb[0].mxu0
        %v2672 = vadd.f32 %v2348, %v2671
        %v2673 = vpop.f32.mrb[0].mxu0
        %2674 = vmatprep.mubr.f32.mxu0 0.0
        %2675 = vmatmul.mubr.f32.gmra.mrb[0].mxu0 %v2454
        %v2676 = vpop.f32.mrb[0].mxu0
        %v2677 = vadd.f32 %v2353, %v2676
        %v2678 = vpop.f32.mrb[0].mxu0
        %2679 = vmatprep.mubr.f32.mxu0 0.0
        %2680 = vmatmul.mubr.f32.gmra.mrb[0].mxu0 %v2457
        %v2681 = vpop.f32.mrb[0].mxu0
        %v2682 = vadd.f32 %v2358, %v2681
        %v2683 = vpop.f32.mrb[0].mxu0
        %2684 = vmatprep.mubr.f32.mxu0 0.0
        %2685 = vmatmul.mubr.f32.gmra.mrb[0].mxu0 %v2460
        %v2686 = vpop.f32.mrb[0].mxu0
        %v2687 = vadd.f32 %v2363, %v2686
        %v2688 = vpop.f32.mrb[0].mxu0
        %2689 = vdwg.mxu0
        %s2690 = scalar_lea.vmem [#allocation2], 48
        %v2691 = vld [vmem:[%s2690] sm:$0xff]
        %v2692 = vld [vmem:[%s2690 + $0x8] sm:$0xff]
        %v2693 = vld [vmem:[%s2690 + $0x10] sm:$0x3]
        %v2694 = vld [vmem:[%s2690 + $0x18] sm:$0xff]
        %v2695 = vld [vmem:[%s2690 + $0x20] sm:$0xff]
        %v2696 = vld [vmem:[%s2690 + $0x28] sm:$0x3]
        %v2697 = vld [vmem:[%s2690 + $0x30] sm:$0xff]
        %v2698 = vld [vmem:[%s2690 + $0x38] sm:$0xff]
        %v2699 = vld [vmem:[%s2690 + $0x40] sm:$0x3]
        %v2700 = vld [vmem:[%s2690 + $0x48] sm:$0xff]
        %v2701 = vld [vmem:[%s2690 + $0x50] sm:$0xff]
        %v2702 = vld [vmem:[%s2690 + $0x58] sm:$0x3]
        %v2703 = vld [vmem:[%s2690 + $0x60] sm:$0xff]
        %v2704 = vld [vmem:[%s2690 + $0x68] sm:$0xff]
        %v2705 = vld [vmem:[%s2690 + $0x70] sm:$0x3]
        %v2706 = vld [vmem:[%s2690 + $0x78] sm:$0xff]
        %v2707 = vld [vmem:[%s2690 + $0x80] sm:$0xff]
        %v2708 = vld [vmem:[%s2690 + $0x88] sm:$0x3]
        %v2709 = vld [vmem:[%s2690 + $0x90] sm:$0xff]
        %v2710 = vld [vmem:[%s2690 + $0x98] sm:$0xff]
        %v2711 = vld [vmem:[%s2690 + $0xa0] sm:$0x3]
        %v2712 = vld [vmem:[%s2690 + $0xa8] sm:$0xff]
        %v2713 = vld [vmem:[%s2690 + $0xb0] sm:$0xff]
        %v2714 = vld [vmem:[%s2690 + $0xb8] sm:$0x3]
        %v2715 = vld [vmem:[%s2690 + $0xc0] sm:$0xff]
        %v2716 = vld [vmem:[%s2690 + $0xc8] sm:$0xff]
        %v2717 = vld [vmem:[%s2690 + $0xd0] sm:$0x3]
        %v2718 = vld [vmem:[%s2690 + $0xd8] sm:$0xff]
        %v2719 = vld [vmem:[%s2690 + $0xe0] sm:$0xff]
        %v2720 = vld [vmem:[%s2690 + $0xe8] sm:$0x3]
        %v2721 = vld [vmem:[%s2690 + $0xf0] sm:$0xff]
        %v2722 = vld [vmem:[%s2690 + $0xf8] sm:$0xff]
        %v2723 = vld [vmem:[%s2690 + $0x100] sm:$0x3]
        %v2724 = vld [vmem:[%s2690 + $0x108] sm:$0xff]
        %v2725 = vld [vmem:[%s2690 + $0x110] sm:$0xff]
        %v2726 = vld [vmem:[%s2690 + $0x118] sm:$0x3]
        %v2727 = vld [vmem:[%s2690 + $0x120] sm:$0xff]
        %v2728 = vld [vmem:[%s2690 + $0x128] sm:$0xff]
        %v2729 = vld [vmem:[%s2690 + $0x130] sm:$0x3]
        %v2730 = vld [vmem:[%s2690 + $0x138] sm:$0xff]
        %v2731 = vld [vmem:[%s2690 + $0x140] sm:$0xff]
        %v2732 = vld [vmem:[%s2690 + $0x148] sm:$0x3]
        %v2733 = vld [vmem:[%s2690 + $0x150] sm:$0xff]
        %v2734 = vld [vmem:[%s2690 + $0x158] sm:$0xff]
        %v2735 = vld [vmem:[%s2690 + $0x160] sm:$0x3]
        %v2736 = vld [vmem:[%s2690 + $0x168] sm:$0xff]
        %v2737 = vld [vmem:[%s2690 + $0x170] sm:$0xff]
        %v2738 = vld [vmem:[%s2690 + $0x178] sm:$0x3]
        %v2787 = vrot.slane %v2691, 1
        %v2788 = vrot.slane %v2692, 1
        %v2789 = vsel %vm1104, %v2787, %v2788
        %v2790 = vrot.slane %v2693, 1
        %v2791 = vsel %vm1104, %v2788, %v2790
        %v2792 = vrot.slane %v2694, 1
        %v2793 = vrot.slane %v2695, 1
        %v2794 = vsel %vm1104, %v2792, %v2793
        %v2795 = vrot.slane %v2696, 1
        %v2796 = vsel %vm1104, %v2793, %v2795
        %v2797 = vrot.slane %v2697, 1
        %v2798 = vrot.slane %v2698, 1
        %v2799 = vsel %vm1104, %v2797, %v2798
        %v2800 = vrot.slane %v2699, 1
        %v2801 = vsel %vm1104, %v2798, %v2800
        %v2802 = vrot.slane %v2700, 1
        %v2803 = vrot.slane %v2701, 1
        %v2804 = vsel %vm1104, %v2802, %v2803
        %v2805 = vrot.slane %v2702, 1
        %v2806 = vsel %vm1104, %v2803, %v2805
        %v2807 = vrot.slane %v2703, 1
        %v2808 = vrot.slane %v2704, 1
        %v2809 = vsel %vm1104, %v2807, %v2808
        %v2810 = vrot.slane %v2705, 1
        %v2811 = vsel %vm1104, %v2808, %v2810
        %v2812 = vrot.slane %v2706, 1
        %v2813 = vrot.slane %v2707, 1
        %v2814 = vsel %vm1104, %v2812, %v2813
        %v2815 = vrot.slane %v2708, 1
        %v2816 = vsel %vm1104, %v2813, %v2815
        %v2817 = vrot.slane %v2709, 1
        %v2818 = vrot.slane %v2710, 1
        %v2819 = vsel %vm1104, %v2817, %v2818
        %v2820 = vrot.slane %v2711, 1
        %v2821 = vsel %vm1104, %v2818, %v2820
        %v2822 = vrot.slane %v2712, 1
        %v2823 = vrot.slane %v2713, 1
        %v2824 = vsel %vm1104, %v2822, %v2823
        %v2825 = vrot.slane %v2714, 1
        %v2826 = vsel %vm1104, %v2823, %v2825
        %v2827 = vrot.slane %v2715, 1
        %v2828 = vrot.slane %v2716, 1
        %v2829 = vsel %vm1104, %v2827, %v2828
        %v2830 = vrot.slane %v2717, 1
        %v2831 = vsel %vm1104, %v2828, %v2830
        %v2832 = vrot.slane %v2718, 1
        %v2833 = vrot.slane %v2719, 1
        %v2834 = vsel %vm1104, %v2832, %v2833
        %v2835 = vrot.slane %v2720, 1
        %v2836 = vsel %vm1104, %v2833, %v2835
        %v2837 = vrot.slane %v2721, 1
        %v2838 = vrot.slane %v2722, 1
        %v2839 = vsel %vm1104, %v2837, %v2838
        %v2840 = vrot.slane %v2723, 1
        %v2841 = vsel %vm1104, %v2838, %v2840
        %v2842 = vrot.slane %v2724, 1
        %v2843 = vrot.slane %v2725, 1
        %v2844 = vsel %vm1104, %v2842, %v2843
        %v2845 = vrot.slane %v2726, 1
        %v2846 = vsel %vm1104, %v2843, %v2845
        %v2847 = vrot.slane %v2727, 1
        %v2848 = vrot.slane %v2728, 1
        %v2849 = vsel %vm1104, %v2847, %v2848
        %v2850 = vrot.slane %v2729, 1
        %v2851 = vsel %vm1104, %v2848, %v2850
        %v2852 = vrot.slane %v2730, 1
        %v2853 = vrot.slane %v2731, 1
        %v2854 = vsel %vm1104, %v2852, %v2853
        %v2855 = vrot.slane %v2732, 1
        %v2856 = vsel %vm1104, %v2853, %v2855
        %v2857 = vrot.slane %v2733, 1
        %v2858 = vrot.slane %v2734, 1
        %v2859 = vsel %vm1104, %v2857, %v2858
        %v2860 = vrot.slane %v2735, 1
        %v2861 = vsel %vm1104, %v2858, %v2860
        %v2862 = vrot.slane %v2736, 1
        %v2863 = vrot.slane %v2737, 1
        %v2864 = vsel %vm1104, %v2862, %v2863
        %v2865 = vrot.slane %v2738, 1
        %v2866 = vsel %vm1104, %v2863, %v2865
        %2867 = vrot.lane.b32.xlu0 %v2789, 4
        %v2868 = vpop.permute.xlu0 %2867
        %2869 = vrot.lane.b32.xlu0 %v2791, 4
        %v2870 = vpop.permute.xlu0 %2869
        %2871 = vrot.lane.b32.xlu0 %v2794, 4
        %v2872 = vpop.permute.xlu0 %2871
        %2873 = vrot.lane.b32.xlu0 %v2796, 4
        %v2874 = vpop.permute.xlu0 %2873
        %2875 = vrot.lane.b32.xlu0 %v2799, 4
        %v2876 = vpop.permute.xlu0 %2875
        %2877 = vrot.lane.b32.xlu0 %v2801, 4
        %v2878 = vpop.permute.xlu0 %2877
        %2879 = vrot.lane.b32.xlu0 %v2804, 4
        %v2880 = vpop.permute.xlu0 %2879
        %2881 = vrot.lane.b32.xlu0 %v2806, 4
        %v2882 = vpop.permute.xlu0 %2881
        %2883 = vrot.lane.b32.xlu0 %v2809, 4
        %v2884 = vpop.permute.xlu0 %2883
        %2885 = vrot.lane.b32.xlu0 %v2811, 4
        %v2886 = vpop.permute.xlu0 %2885
        %2887 = vrot.lane.b32.xlu0 %v2814, 4
        %v2888 = vpop.permute.xlu0 %2887
        %2889 = vrot.lane.b32.xlu0 %v2816, 4
        %v2890 = vpop.permute.xlu0 %2889
        %2891 = vrot.lane.b32.xlu0 %v2819, 4
        %v2892 = vpop.permute.xlu0 %2891
        %2893 = vrot.lane.b32.xlu0 %v2821, 4
        %v2894 = vpop.permute.xlu0 %2893
        %2895 = vrot.lane.b32.xlu0 %v2824, 4
        %v2896 = vpop.permute.xlu0 %2895
        %2897 = vrot.lane.b32.xlu0 %v2826, 4
        %v2898 = vpop.permute.xlu0 %2897
        %2899 = vrot.lane.b32.xlu0 %v2829, 4
        %v2900 = vpop.permute.xlu0 %2899
        %2901 = vrot.lane.b32.xlu0 %v2831, 4
        %v2902 = vpop.permute.xlu0 %2901
        %2903 = vrot.lane.b32.xlu0 %v2834, 4
        %v2904 = vpop.permute.xlu0 %2903
        %2905 = vrot.lane.b32.xlu0 %v2836, 4
        %v2906 = vpop.permute.xlu0 %2905
        %2907 = vrot.lane.b32.xlu0 %v2839, 4
        %v2908 = vpop.permute.xlu0 %2907
        %2909 = vrot.lane.b32.xlu0 %v2841, 4
        %v2910 = vpop.permute.xlu0 %2909
        %2911 = vrot.lane.b32.xlu0 %v2844, 4
        %v2912 = vpop.permute.xlu0 %2911
        %2913 = vrot.lane.b32.xlu0 %v2846, 4
        %v2914 = vpop.permute.xlu0 %2913
        %2915 = vrot.lane.b32.xlu0 %v2849, 4
        %v2916 = vpop.permute.xlu0 %2915
        %2917 = vrot.lane.b32.xlu0 %v2851, 4
        %v2918 = vpop.permute.xlu0 %2917
        %2919 = vrot.lane.b32.xlu0 %v2854, 4
        %v2920 = vpop.permute.xlu0 %2919
        %2921 = vrot.lane.b32.xlu0 %v2856, 4
        %v2922 = vpop.permute.xlu0 %2921
        %2923 = vrot.lane.b32.xlu0 %v2859, 4
        %v2924 = vpop.permute.xlu0 %2923
        %2925 = vrot.lane.b32.xlu0 %v2861, 4
        %v2926 = vpop.permute.xlu0 %2925
        %2927 = vrot.lane.b32.xlu0 %v2864, 4
        %v2928 = vpop.permute.xlu0 %2927
        %2929 = vrot.lane.b32.xlu0 %v2866, 4
        %v2930 = vpop.permute.xlu0 %2929
        %v2963 = vrot.slane %v2691, 2
        %v2964 = vrot.slane %v2692, 2
        %v2965 = vsel %vm1281, %v2963, %v2964
        %v2966 = vrot.slane %v2693, 2
        %v2967 = vsel %vm1281, %v2964, %v2966
        %v2968 = vrot.slane %v2694, 2
        %v2969 = vrot.slane %v2695, 2
        %v2970 = vsel %vm1281, %v2968, %v2969
        %v2971 = vrot.slane %v2696, 2
        %v2972 = vsel %vm1281, %v2969, %v2971
        %v2973 = vrot.slane %v2697, 2
        %v2974 = vrot.slane %v2698, 2
        %v2975 = vsel %vm1281, %v2973, %v2974
        %v2976 = vrot.slane %v2699, 2
        %v2977 = vsel %vm1281, %v2974, %v2976
        %v2978 = vrot.slane %v2700, 2
        %v2979 = vrot.slane %v2701, 2
        %v2980 = vsel %vm1281, %v2978, %v2979
        %v2981 = vrot.slane %v2702, 2
        %v2982 = vsel %vm1281, %v2979, %v2981
        %v2983 = vrot.slane %v2703, 2
        %v2984 = vrot.slane %v2704, 2
        %v2985 = vsel %vm1281, %v2983, %v2984
        %v2986 = vrot.slane %v2705, 2
        %v2987 = vsel %vm1281, %v2984, %v2986
        %v2988 = vrot.slane %v2706, 2
        %v2989 = vrot.slane %v2707, 2
        %v2990 = vsel %vm1281, %v2988, %v2989
        %v2991 = vrot.slane %v2708, 2
        %v2992 = vsel %vm1281, %v2989, %v2991
        %v2993 = vrot.slane %v2709, 2
        %v2994 = vrot.slane %v2710, 2
        %v2995 = vsel %vm1281, %v2993, %v2994
        %v2996 = vrot.slane %v2711, 2
        %v2997 = vsel %vm1281, %v2994, %v2996
        %v2998 = vrot.slane %v2712, 2
        %v2999 = vrot.slane %v2713, 2
        %v3000 = vsel %vm1281, %v2998, %v2999
        %v3001 = vrot.slane %v2714, 2
        %v3002 = vsel %vm1281, %v2999, %v3001
        %v3003 = vrot.slane %v2715, 2
        %v3004 = vrot.slane %v2716, 2
        %v3005 = vsel %vm1281, %v3003, %v3004
        %v3006 = vrot.slane %v2717, 2
        %v3007 = vsel %vm1281, %v3004, %v3006
        %v3008 = vrot.slane %v2718, 2
        %v3009 = vrot.slane %v2719, 2
        %v3010 = vsel %vm1281, %v3008, %v3009
        %v3011 = vrot.slane %v2720, 2
        %v3012 = vsel %vm1281, %v3009, %v3011
        %v3013 = vrot.slane %v2721, 2
        %v3014 = vrot.slane %v2722, 2
        %v3015 = vsel %vm1281, %v3013, %v3014
        %v3016 = vrot.slane %v2723, 2
        %v3017 = vsel %vm1281, %v3014, %v3016
        %v3018 = vrot.slane %v2724, 2
        %v3019 = vrot.slane %v2725, 2
        %v3020 = vsel %vm1281, %v3018, %v3019
        %v3021 = vrot.slane %v2726, 2
        %v3022 = vsel %vm1281, %v3019, %v3021
        %v3023 = vrot.slane %v2727, 2
        %v3024 = vrot.slane %v2728, 2
        %v3025 = vsel %vm1281, %v3023, %v3024
        %v3026 = vrot.slane %v2729, 2
        %v3027 = vsel %vm1281, %v3024, %v3026
        %v3028 = vrot.slane %v2730, 2
        %v3029 = vrot.slane %v2731, 2
        %v3030 = vsel %vm1281, %v3028, %v3029
        %v3031 = vrot.slane %v2732, 2
        %v3032 = vsel %vm1281, %v3029, %v3031
        %v3033 = vrot.slane %v2733, 2
        %v3034 = vrot.slane %v2734, 2
        %v3035 = vsel %vm1281, %v3033, %v3034
        %v3036 = vrot.slane %v2735, 2
        %v3037 = vsel %vm1281, %v3034, %v3036
        %v3038 = vrot.slane %v2736, 2
        %v3039 = vrot.slane %v2737, 2
        %v3040 = vsel %vm1281, %v3038, %v3039
        %v3041 = vrot.slane %v2738, 2
        %v3042 = vsel %vm1281, %v3039, %v3041
        %3043 = vrot.lane.b32.xlu0 %v2965, 8
        %v3044 = vpop.permute.xlu0 %3043
        %3045 = vrot.lane.b32.xlu0 %v2967, 8
        %v3046 = vpop.permute.xlu0 %3045
        %3047 = vrot.lane.b32.xlu0 %v2970, 8
        %v3048 = vpop.permute.xlu0 %3047
        %3049 = vrot.lane.b32.xlu0 %v2972, 8
        %v3050 = vpop.permute.xlu0 %3049
        %3051 = vrot.lane.b32.xlu0 %v2975, 8
        %v3052 = vpop.permute.xlu0 %3051
        %3053 = vrot.lane.b32.xlu0 %v2977, 8
        %v3054 = vpop.permute.xlu0 %3053
        %3055 = vrot.lane.b32.xlu0 %v2980, 8
        %v3056 = vpop.permute.xlu0 %3055
        %3057 = vrot.lane.b32.xlu0 %v2982, 8
        %v3058 = vpop.permute.xlu0 %3057
        %3059 = vrot.lane.b32.xlu0 %v2985, 8
        %v3060 = vpop.permute.xlu0 %3059
        %3061 = vrot.lane.b32.xlu0 %v2987, 8
        %v3062 = vpop.permute.xlu0 %3061
        %3063 = vrot.lane.b32.xlu0 %v2990, 8
        %v3064 = vpop.permute.xlu0 %3063
        %3065 = vrot.lane.b32.xlu0 %v2992, 8
        %v3066 = vpop.permute.xlu0 %3065
        %3067 = vrot.lane.b32.xlu0 %v2995, 8
        %v3068 = vpop.permute.xlu0 %3067
        %3069 = vrot.lane.b32.xlu0 %v2997, 8
        %v3070 = vpop.permute.xlu0 %3069
        %3071 = vrot.lane.b32.xlu0 %v3000, 8
        %v3072 = vpop.permute.xlu0 %3071
        %3073 = vrot.lane.b32.xlu0 %v3002, 8
        %v3074 = vpop.permute.xlu0 %3073
        %3075 = vrot.lane.b32.xlu0 %v3005, 8
        %v3076 = vpop.permute.xlu0 %3075
        %3077 = vrot.lane.b32.xlu0 %v3007, 8
        %v3078 = vpop.permute.xlu0 %3077
        %3079 = vrot.lane.b32.xlu0 %v3010, 8
        %v3080 = vpop.permute.xlu0 %3079
        %3081 = vrot.lane.b32.xlu0 %v3012, 8
        %v3082 = vpop.permute.xlu0 %3081
        %3083 = vrot.lane.b32.xlu0 %v3015, 8
        %v3084 = vpop.permute.xlu0 %3083
        %3085 = vrot.lane.b32.xlu0 %v3017, 8
        %v3086 = vpop.permute.xlu0 %3085
        %3087 = vrot.lane.b32.xlu0 %v3020, 8
        %v3088 = vpop.permute.xlu0 %3087
        %3089 = vrot.lane.b32.xlu0 %v3022, 8
        %v3090 = vpop.permute.xlu0 %3089
        %3091 = vrot.lane.b32.xlu0 %v3025, 8
        %v3092 = vpop.permute.xlu0 %3091
        %3093 = vrot.lane.b32.xlu0 %v3027, 8
        %v3094 = vpop.permute.xlu0 %3093
        %3095 = vrot.lane.b32.xlu0 %v3030, 8
        %v3096 = vpop.permute.xlu0 %3095
        %3097 = vrot.lane.b32.xlu0 %v3032, 8
        %v3098 = vpop.permute.xlu0 %3097
        %3099 = vrot.lane.b32.xlu0 %v3035, 8
        %v3100 = vpop.permute.xlu0 %3099
        %3101 = vrot.lane.b32.xlu0 %v3037, 8
        %v3102 = vpop.permute.xlu0 %3101
        %3103 = vrot.lane.b32.xlu0 %v3040, 8
        %v3104 = vpop.permute.xlu0 %3103
        %3105 = vrot.lane.b32.xlu0 %v3042, 8
        %v3106 = vpop.permute.xlu0 %3105
        %v3139 = vsel %vm969, %v2691, %v2868
        %v3140 = vsel %vm969, %v2692, %v2870
        %v3141 = vsel %vm969, %v2694, %v2872
        %v3142 = vsel %vm969, %v2695, %v2874
        %v3143 = vsel %vm969, %v2697, %v2876
        %v3144 = vsel %vm969, %v2698, %v2878
        %v3145 = vsel %vm969, %v2700, %v2880
        %v3146 = vsel %vm969, %v2701, %v2882
        %v3147 = vsel %vm969, %v2703, %v2884
        %v3148 = vsel %vm969, %v2704, %v2886
        %v3149 = vsel %vm969, %v2706, %v2888
        %v3150 = vsel %vm969, %v2707, %v2890
        %v3151 = vsel %vm969, %v2709, %v2892
        %v3152 = vsel %vm969, %v2710, %v2894
        %v3153 = vsel %vm969, %v2712, %v2896
        %v3154 = vsel %vm969, %v2713, %v2898
        %v3155 = vsel %vm969, %v2715, %v2900
        %v3156 = vsel %vm969, %v2716, %v2902
        %v3157 = vsel %vm969, %v2718, %v2904
        %v3158 = vsel %vm969, %v2719, %v2906
        %v3159 = vsel %vm969, %v2721, %v2908
        %v3160 = vsel %vm969, %v2722, %v2910
        %v3161 = vsel %vm969, %v2724, %v2912
        %v3162 = vsel %vm969, %v2725, %v2914
        %v3163 = vsel %vm969, %v2727, %v2916
        %v3164 = vsel %vm969, %v2728, %v2918
        %v3165 = vsel %vm969, %v2730, %v2920
        %v3166 = vsel %vm969, %v2731, %v2922
        %v3167 = vsel %vm969, %v2733, %v2924
        %v3168 = vsel %vm969, %v2734, %v2926
        %v3169 = vsel %vm969, %v2736, %v2928
        %v3170 = vsel %vm969, %v2737, %v2930
        %v3171 = vsel %vm1490, %v3139, %v3044
        %v3172 = vsel %vm1490, %v3140, %v3046
        %v3173 = vsel %vm1490, %v3141, %v3048
        %v3174 = vsel %vm1490, %v3142, %v3050
        %v3175 = vsel %vm1490, %v3143, %v3052
        %v3176 = vsel %vm1490, %v3144, %v3054
        %v3177 = vsel %vm1490, %v3145, %v3056
        %v3178 = vsel %vm1490, %v3146, %v3058
        %v3179 = vsel %vm1490, %v3147, %v3060
        %v3180 = vsel %vm1490, %v3148, %v3062
        %v3181 = vsel %vm1490, %v3149, %v3064
        %v3182 = vsel %vm1490, %v3150, %v3066
        %v3183 = vsel %vm1490, %v3151, %v3068
        %v3184 = vsel %vm1490, %v3152, %v3070
        %v3185 = vsel %vm1490, %v3153, %v3072
        %v3186 = vsel %vm1490, %v3154, %v3074
        %v3187 = vsel %vm1490, %v3155, %v3076
        %v3188 = vsel %vm1490, %v3156, %v3078
        %v3189 = vsel %vm1490, %v3157, %v3080
        %v3190 = vsel %vm1490, %v3158, %v3082
        %v3191 = vsel %vm1490, %v3159, %v3084
        %v3192 = vsel %vm1490, %v3160, %v3086
        %v3193 = vsel %vm1490, %v3161, %v3088
        %v3194 = vsel %vm1490, %v3162, %v3090
        %v3195 = vsel %vm1490, %v3163, %v3092
        %v3196 = vsel %vm1490, %v3164, %v3094
        %v3197 = vsel %vm1490, %v3165, %v3096
        %v3198 = vsel %vm1490, %v3166, %v3098
        %v3199 = vsel %vm1490, %v3167, %v3100
        %v3200 = vsel %vm1490, %v3168, %v3102
        %v3201 = vsel %vm1490, %v3169, %v3104
        %v3202 = vsel %vm1490, %v3170, %v3106
        %s3203 = scalar_lea.vmem %s5, 32
        %v3204 = vld [vmem:[%s3203] sm:$0xff]
        %v3205 = vld [vmem:[%s3203 + $0x8] sm:$0xf]
        %v3207 = vsel %vm2040, %v3171, 0
        %v3210 = vsel %vm2040, %v3172, 0
        %v3213 = vsel %vm2040, %v3173, 0
        %v3216 = vsel %vm2040, %v3174, 0
        %v3219 = vsel %vm2040, %v3175, 0
        %v3222 = vsel %vm2040, %v3176, 0
        %v3225 = vsel %vm2040, %v3177, 0
        %v3228 = vsel %vm2040, %v3178, 0
        %v3231 = vsel %vm2040, %v3179, 0
        %v3234 = vsel %vm2040, %v3180, 0
        %v3237 = vsel %vm2040, %v3181, 0
        %v3240 = vsel %vm2040, %v3182, 0
        %v3243 = vsel %vm2040, %v3183, 0
        %v3246 = vsel %vm2040, %v3184, 0
        %v3249 = vsel %vm2040, %v3185, 0
        %v3252 = vsel %vm2040, %v3186, 0
        %v3255 = vsel %vm2040, %v3187, 0
        %v3258 = vsel %vm2040, %v3188, 0
        %v3261 = vsel %vm2040, %v3189, 0
        %v3264 = vsel %vm2040, %v3190, 0
        %v3267 = vsel %vm2040, %v3191, 0
        %v3270 = vsel %vm2040, %v3192, 0
        %v3273 = vsel %vm2040, %v3193, 0
        %v3276 = vsel %vm2040, %v3194, 0
        %v3279 = vsel %vm2040, %v3195, 0
        %v3282 = vsel %vm2040, %v3196, 0
        %v3285 = vsel %vm2040, %v3197, 0
        %v3288 = vsel %vm2040, %v3198, 0
        %v3291 = vsel %vm2040, %v3199, 0
        %v3294 = vsel %vm2040, %v3200, 0
        %v3297 = vsel %vm2040, %v3201, 0
        %v3300 = vsel %vm2040, %v3202, 0
        %v3303 = vsel %vm2137, %v3205, 0
        %3305 = vmatprep.subr.mxu0 0.0
        %3306 = vmatpush1.msra.mxu0 %v3204
        %3307 = vmatprep.subr.mxu0 0.0
        %3308 = vmatpush1.msra.mxu0 %v3303
        %3309 = vmatprep.subr.mxu0 0.0
        %3310 = vmatpush1.msra.mxu0 0.0
        %3311 = vmatprep.subr.mxu0 0.0
        %3312 = vmatpush1.msra.mxu0 0.0
        %3313 = vmatprep.subr.mxu0 0.0
        %3314 = vmatpush1.msra.mxu0 0.0
        %3315 = vmatprep.subr.mxu0 0.0
        %3316 = vmatpush1.msra.mxu0 0.0
        %3317 = vmatprep.subr.mxu0 0.0
        %3318 = vmatpush1.msra.mxu0 0.0
        %3319 = vmatprep.subr.mxu0 0.0
        %3320 = vmatpush1.msra.mxu0 0.0
        %3321 = vmatprep.subr.mxu0 0.0
        %3322 = vmatpush1.msra.mxu0 0.0
        %3323 = vmatprep.subr.mxu0 0.0
        %3324 = vmatpush1.msra.mxu0 0.0
        %3325 = vmatprep.subr.mxu0 0.0
        %3326 = vmatpush1.msra.mxu0 0.0
        %3327 = vmatprep.subr.mxu0 0.0
        %3328 = vmatpush1.msra.mxu0 0.0
        %3329 = vmatprep.subr.mxu0 0.0
        %3330 = vmatpush1.msra.mxu0 0.0
        %3331 = vmatprep.subr.mxu0 0.0
        %3332 = vmatpush1.msra.mxu0 0.0
        %3333 = vmatprep.subr.mxu0 0.0
        %3334 = vmatpush1.msra.mxu0 0.0
        %3335 = vmatprep.subr.mxu0 0.0
        %3336 = vmatpush1.msra.mxu0 0.0
        %3337 = vmatprep.subr.mxu0 0.0
        %3338 = vmatpush1.msra.mxu0 0.0
        %3339 = vmatprep.subr.mxu0 0.0
        %3340 = vmatpush1.msra.mxu0 0.0
        %3341 = vmatprep.subr.mxu0 0.0
        %3342 = vmatpush1.msra.mxu0 0.0
        %3343 = vmatprep.subr.mxu0 0.0
        %3344 = vmatpush1.msra.mxu0 0.0
        %3345 = vmatprep.subr.mxu0 0.0
        %3346 = vmatpush1.msra.mxu0 0.0
        %3347 = vmatprep.subr.mxu0 0.0
        %3348 = vmatpush1.msra.mxu0 0.0
        %3349 = vmatprep.subr.mxu0 0.0
        %3350 = vmatpush1.msra.mxu0 0.0
        %3351 = vmatprep.subr.mxu0 0.0
        %3352 = vmatpush1.msra.mxu0 0.0
        %3353 = vmatprep.subr.mxu0 0.0
        %3354 = vmatpush1.msra.mxu0 0.0
        %3355 = vmatprep.subr.mxu0 0.0
        %3356 = vmatpush1.msra.mxu0 0.0
        %3357 = vmatprep.subr.mxu0 0.0
        %3358 = vmatpush1.msra.mxu0 0.0
        %3359 = vmatprep.subr.mxu0 0.0
        %3360 = vmatpush1.msra.mxu0 0.0
        %3361 = vmatprep.subr.mxu0 0.0
        %3362 = vmatpush1.msra.mxu0 0.0
        %3363 = vmatprep.subr.mxu0 0.0
        %3364 = vmatpush1.msra.mxu0 0.0
        %3365 = vmatprep.subr.mxu0 0.0
        %3366 = vmatpush1.msra.mxu0 0.0
        %3367 = vmatprep.subr.mxu0 0.0
        %3368 = vmatpush1.msra.mxu0 0.0
        %3369 = vmatprep.mubr.f32.mxu0 0.0
        %3370 = vmatmul.mubr.f32.gmra.mrb[0].mxu0 %v3207
        %v3371 = vpop.f32.mrb[0].mxu0
        %v3372 = vadd.f32 0.0, %v3371
        %v3373 = vpop.f32.mrb[0].mxu0
        %3374 = vmatprep.mubr.f32.mxu0 0.0
        %3375 = vmatmul.mubr.f32.gmra.mrb[0].mxu0 %v3210
        %v3376 = vpop.f32.mrb[0].mxu0
        %v3377 = vadd.f32 0.0, %v3376
        %v3378 = vpop.f32.mrb[0].mxu0
        %3379 = vmatprep.mubr.f32.mxu0 0.0
        %3380 = vmatmul.mubr.f32.gmra.mrb[0].mxu0 %v3213
        %v3381 = vpop.f32.mrb[0].mxu0
        %v3382 = vadd.f32 0.0, %v3381
        %v3383 = vpop.f32.mrb[0].mxu0
        %3384 = vmatprep.mubr.f32.mxu0 0.0
        %3385 = vmatmul.mubr.f32.gmra.mrb[0].mxu0 %v3216
        %v3386 = vpop.f32.mrb[0].mxu0
        %v3387 = vadd.f32 0.0, %v3386
        %v3388 = vpop.f32.mrb[0].mxu0
        %3389 = vmatprep.mubr.f32.mxu0 0.0
        %3390 = vmatmul.mubr.f32.gmra.mrb[0].mxu0 %v3219
        %v3391 = vpop.f32.mrb[0].mxu0
        %v3392 = vadd.f32 0.0, %v3391
        %v3393 = vpop.f32.mrb[0].mxu0
        %3394 = vmatprep.mubr.f32.mxu0 0.0
        %3395 = vmatmul.mubr.f32.gmra.mrb[0].mxu0 %v3222
        %v3396 = vpop.f32.mrb[0].mxu0
        %v3397 = vadd.f32 0.0, %v3396
        %v3398 = vpop.f32.mrb[0].mxu0
        %3399 = vmatprep.mubr.f32.mxu0 0.0
        %3400 = vmatmul.mubr.f32.gmra.mrb[0].mxu0 %v3225
        %v3401 = vpop.f32.mrb[0].mxu0
        %v3402 = vadd.f32 0.0, %v3401
        %v3403 = vpop.f32.mrb[0].mxu0
        %3404 = vmatprep.mubr.f32.mxu0 0.0
        %3405 = vmatmul.mubr.f32.gmra.mrb[0].mxu0 %v3228
        %v3406 = vpop.f32.mrb[0].mxu0
        %v3407 = vadd.f32 0.0, %v3406
        %v3408 = vpop.f32.mrb[0].mxu0
        %3409 = vmatprep.mubr.f32.mxu0 0.0
        %3410 = vmatmul.mubr.f32.gmra.mrb[0].mxu0 %v3231
        %v3411 = vpop.f32.mrb[0].mxu0
        %v3412 = vadd.f32 0.0, %v3411
        %v3413 = vpop.f32.mrb[0].mxu0
        %3414 = vmatprep.mubr.f32.mxu0 0.0
        %3415 = vmatmul.mubr.f32.gmra.mrb[0].mxu0 %v3234
        %v3416 = vpop.f32.mrb[0].mxu0
        %v3417 = vadd.f32 0.0, %v3416
        %v3418 = vpop.f32.mrb[0].mxu0
        %3419 = vmatprep.mubr.f32.mxu0 0.0
        %3420 = vmatmul.mubr.f32.gmra.mrb[0].mxu0 %v3237
        %v3421 = vpop.f32.mrb[0].mxu0
        %v3422 = vadd.f32 0.0, %v3421
        %v3423 = vpop.f32.mrb[0].mxu0
        %3424 = vmatprep.mubr.f32.mxu0 0.0
        %3425 = vmatmul.mubr.f32.gmra.mrb[0].mxu0 %v3240
        %v3426 = vpop.f32.mrb[0].mxu0
        %v3427 = vadd.f32 0.0, %v3426
        %v3428 = vpop.f32.mrb[0].mxu0
        %3429 = vmatprep.mubr.f32.mxu0 0.0
        %3430 = vmatmul.mubr.f32.gmra.mrb[0].mxu0 %v3243
        %v3431 = vpop.f32.mrb[0].mxu0
        %v3432 = vadd.f32 0.0, %v3431
        %v3433 = vpop.f32.mrb[0].mxu0
        %3434 = vmatprep.mubr.f32.mxu0 0.0
        %3435 = vmatmul.mubr.f32.gmra.mrb[0].mxu0 %v3246
        %v3436 = vpop.f32.mrb[0].mxu0
        %v3437 = vadd.f32 0.0, %v3436
        %v3438 = vpop.f32.mrb[0].mxu0
        %3439 = vmatprep.mubr.f32.mxu0 0.0
        %3440 = vmatmul.mubr.f32.gmra.mrb[0].mxu0 %v3249
        %v3441 = vpop.f32.mrb[0].mxu0
        %v3442 = vadd.f32 0.0, %v3441
        %v3443 = vpop.f32.mrb[0].mxu0
        %3444 = vmatprep.mubr.f32.mxu0 0.0
        %3445 = vmatmul.mubr.f32.gmra.mrb[0].mxu0 %v3252
        %v3446 = vpop.f32.mrb[0].mxu0
        %v3447 = vadd.f32 0.0, %v3446
        %v3448 = vpop.f32.mrb[0].mxu0
        %3449 = vmatprep.mubr.f32.mxu0 0.0
        %3450 = vmatmul.mubr.f32.gmra.mrb[0].mxu0 %v3255
        %v3451 = vpop.f32.mrb[0].mxu0
        %v3452 = vadd.f32 0.0, %v3451
        %v3453 = vpop.f32.mrb[0].mxu0
        %3454 = vmatprep.mubr.f32.mxu0 0.0
        %3455 = vmatmul.mubr.f32.gmra.mrb[0].mxu0 %v3258
        %v3456 = vpop.f32.mrb[0].mxu0
        %v3457 = vadd.f32 0.0, %v3456
        %v3458 = vpop.f32.mrb[0].mxu0
        %3459 = vmatprep.mubr.f32.mxu0 0.0
        %3460 = vmatmul.mubr.f32.gmra.mrb[0].mxu0 %v3261
        %v3461 = vpop.f32.mrb[0].mxu0
        %v3462 = vadd.f32 0.0, %v3461
        %v3463 = vpop.f32.mrb[0].mxu0
        %3464 = vmatprep.mubr.f32.mxu0 0.0
        %3465 = vmatmul.mubr.f32.gmra.mrb[0].mxu0 %v3264
        %v3466 = vpop.f32.mrb[0].mxu0
        %v3467 = vadd.f32 0.0, %v3466
        %v3468 = vpop.f32.mrb[0].mxu0
        %3469 = vmatprep.mubr.f32.mxu0 0.0
        %3470 = vmatmul.mubr.f32.gmra.mrb[0].mxu0 %v3267
        %v3471 = vpop.f32.mrb[0].mxu0
        %v3472 = vadd.f32 0.0, %v3471
        %v3473 = vpop.f32.mrb[0].mxu0
        %3474 = vmatprep.mubr.f32.mxu0 0.0
        %3475 = vmatmul.mubr.f32.gmra.mrb[0].mxu0 %v3270
        %v3476 = vpop.f32.mrb[0].mxu0
        %v3477 = vadd.f32 0.0, %v3476
        %v3478 = vpop.f32.mrb[0].mxu0
        %3479 = vmatprep.mubr.f32.mxu0 0.0
        %3480 = vmatmul.mubr.f32.gmra.mrb[0].mxu0 %v3273
        %v3481 = vpop.f32.mrb[0].mxu0
        %v3482 = vadd.f32 0.0, %v3481
        %v3483 = vpop.f32.mrb[0].mxu0
        %3484 = vmatprep.mubr.f32.mxu0 0.0
        %3485 = vmatmul.mubr.f32.gmra.mrb[0].mxu0 %v3276
        %v3486 = vpop.f32.mrb[0].mxu0
        %v3487 = vadd.f32 0.0, %v3486
        %v3488 = vpop.f32.mrb[0].mxu0
        %3489 = vmatprep.mubr.f32.mxu0 0.0
        %3490 = vmatmul.mubr.f32.gmra.mrb[0].mxu0 %v3279
        %v3491 = vpop.f32.mrb[0].mxu0
        %v3492 = vadd.f32 0.0, %v3491
        %v3493 = vpop.f32.mrb[0].mxu0
        %3494 = vmatprep.mubr.f32.mxu0 0.0
        %3495 = vmatmul.mubr.f32.gmra.mrb[0].mxu0 %v3282
        %v3496 = vpop.f32.mrb[0].mxu0
        %v3497 = vadd.f32 0.0, %v3496
        %v3498 = vpop.f32.mrb[0].mxu0
        %3499 = vmatprep.mubr.f32.mxu0 0.0
        %3500 = vmatmul.mubr.f32.gmra.mrb[0].mxu0 %v3285
        %v3501 = vpop.f32.mrb[0].mxu0
        %v3502 = vadd.f32 0.0, %v3501
        %v3503 = vpop.f32.mrb[0].mxu0
        %3504 = vmatprep.mubr.f32.mxu0 0.0
        %3505 = vmatmul.mubr.f32.gmra.mrb[0].mxu0 %v3288
        %v3506 = vpop.f32.mrb[0].mxu0
        %v3507 = vadd.f32 0.0, %v3506
        %v3508 = vpop.f32.mrb[0].mxu0
        %3509 = vmatprep.mubr.f32.mxu0 0.0
        %3510 = vmatmul.mubr.f32.gmra.mrb[0].mxu0 %v3291
        %v3511 = vpop.f32.mrb[0].mxu0
        %v3512 = vadd.f32 0.0, %v3511
        %v3513 = vpop.f32.mrb[0].mxu0
        %3514 = vmatprep.mubr.f32.mxu0 0.0
        %3515 = vmatmul.mubr.f32.gmra.mrb[0].mxu0 %v3294
        %v3516 = vpop.f32.mrb[0].mxu0
        %v3517 = vadd.f32 0.0, %v3516
        %v3518 = vpop.f32.mrb[0].mxu0
        %3519 = vmatprep.mubr.f32.mxu0 0.0
        %3520 = vmatmul.mubr.f32.gmra.mrb[0].mxu0 %v3297
        %v3521 = vpop.f32.mrb[0].mxu0
        %v3522 = vadd.f32 0.0, %v3521
        %v3523 = vpop.f32.mrb[0].mxu0
        %3524 = vmatprep.mubr.f32.mxu0 0.0
        %3525 = vmatmul.mubr.f32.gmra.mrb[0].mxu0 %v3300
        %v3526 = vpop.f32.mrb[0].mxu0
        %v3527 = vadd.f32 0.0, %v3526
        %v3528 = vpop.f32.mrb[0].mxu0
        %3529 = vdwg.mxu0
        %v3530 = vadd.f32 %v2532, %v3372
        %v3531 = vadd.f32 %v2537, %v3377
        %v3532 = vadd.f32 %v2542, %v3382
        %v3533 = vadd.f32 %v2547, %v3387
        %v3534 = vadd.f32 %v2552, %v3392
        %v3535 = vadd.f32 %v2557, %v3397
        %v3536 = vadd.f32 %v2562, %v3402
        %v3537 = vadd.f32 %v2567, %v3407
        %v3538 = vadd.f32 %v2572, %v3412
        %v3539 = vadd.f32 %v2577, %v3417
        %v3540 = vadd.f32 %v2582, %v3422
        %v3541 = vadd.f32 %v2587, %v3427
        %v3542 = vadd.f32 %v2592, %v3432
        %v3543 = vadd.f32 %v2597, %v3437
        %v3544 = vadd.f32 %v2602, %v3442
        %v3545 = vadd.f32 %v2607, %v3447
        %v3546 = vadd.f32 %v2612, %v3452
        %v3547 = vadd.f32 %v2617, %v3457
        %v3548 = vadd.f32 %v2622, %v3462
        %v3549 = vadd.f32 %v2627, %v3467
        %v3550 = vadd.f32 %v2632, %v3472
        %v3551 = vadd.f32 %v2637, %v3477
        %v3552 = vadd.f32 %v2642, %v3482
        %v3553 = vadd.f32 %v2647, %v3487
        %v3554 = vadd.f32 %v2652, %v3492
        %v3555 = vadd.f32 %v2657, %v3497
        %v3556 = vadd.f32 %v2662, %v3502
        %v3557 = vadd.f32 %v2667, %v3507
        %v3558 = vadd.f32 %v2672, %v3512
        %v3559 = vadd.f32 %v2677, %v3517
        %v3560 = vadd.f32 %v2682, %v3522
        %v3561 = vadd.f32 %v2687, %v3527
        %v3562 = vld [vmem:[%s6] sm:$0x1]
        %v3564 = vlaneseq
        %v3565 = vshrl.u32 %v3564, 7
        %v3566 = vsub.s32 0, %v3565
        %v3567 = vrot.slane %v3562, %v3566
        %v3569 = vadd.f32 %v3530, %v3567
        %v3570 = vadd.f32 %v3531, %v3567
        %v3571 = vadd.f32 %v3532, %v3567
        %v3572 = vadd.f32 %v3533, %v3567
        %v3573 = vadd.f32 %v3534, %v3567
        %v3574 = vadd.f32 %v3535, %v3567
        %v3575 = vadd.f32 %v3536, %v3567
        %v3576 = vadd.f32 %v3537, %v3567
        %v3577 = vadd.f32 %v3538, %v3567
        %v3578 = vadd.f32 %v3539, %v3567
        %v3579 = vadd.f32 %v3540, %v3567
        %v3580 = vadd.f32 %v3541, %v3567
        %v3581 = vadd.f32 %v3542, %v3567
        %v3582 = vadd.f32 %v3543, %v3567
        %v3583 = vadd.f32 %v3544, %v3567
        %v3584 = vadd.f32 %v3545, %v3567
        %v3585 = vadd.f32 %v3546, %v3567
        %v3586 = vadd.f32 %v3547, %v3567
        %v3587 = vadd.f32 %v3548, %v3567
        %v3588 = vadd.f32 %v3549, %v3567
        %v3589 = vadd.f32 %v3550, %v3567
        %v3590 = vadd.f32 %v3551, %v3567
        %v3591 = vadd.f32 %v3552, %v3567
        %v3592 = vadd.f32 %v3553, %v3567
        %v3593 = vadd.f32 %v3554, %v3567
        %v3594 = vadd.f32 %v3555, %v3567
        %v3595 = vadd.f32 %v3556, %v3567
        %v3596 = vadd.f32 %v3557, %v3567
        %v3597 = vadd.f32 %v3558, %v3567
        %v3598 = vadd.f32 %v3559, %v3567
        %v3599 = vadd.f32 %v3560, %v3567
        %v3600 = vadd.f32 %v3561, %v3567
        %v3601 = vmax.f32 %v3569, 0.0
        %v3602 = vmax.f32 %v3570, 0.0
        %v3603 = vmax.f32 %v3571, 0.0
        %v3604 = vmax.f32 %v3572, 0.0
        %v3605 = vmax.f32 %v3573, 0.0
        %v3606 = vmax.f32 %v3574, 0.0
        %v3607 = vmax.f32 %v3575, 0.0
        %v3608 = vmax.f32 %v3576, 0.0
        %v3609 = vmax.f32 %v3577, 0.0
        %v3610 = vmax.f32 %v3578, 0.0
        %v3611 = vmax.f32 %v3579, 0.0
        %v3612 = vmax.f32 %v3580, 0.0
        %v3613 = vmax.f32 %v3581, 0.0
        %v3614 = vmax.f32 %v3582, 0.0
        %v3615 = vmax.f32 %v3583, 0.0
        %v3616 = vmax.f32 %v3584, 0.0
        %v3617 = vmax.f32 %v3585, 0.0
        %v3618 = vmax.f32 %v3586, 0.0
        %v3619 = vmax.f32 %v3587, 0.0
        %v3620 = vmax.f32 %v3588, 0.0
        %v3621 = vmax.f32 %v3589, 0.0
        %v3622 = vmax.f32 %v3590, 0.0
        %v3623 = vmax.f32 %v3591, 0.0
        %v3624 = vmax.f32 %v3592, 0.0
        %v3625 = vmax.f32 %v3593, 0.0
        %v3626 = vmax.f32 %v3594, 0.0
        %v3627 = vmax.f32 %v3595, 0.0
        %v3628 = vmax.f32 %v3596, 0.0
        %v3629 = vmax.f32 %v3597, 0.0
        %v3630 = vmax.f32 %v3598, 0.0
        %v3631 = vmax.f32 %v3599, 0.0
        %v3632 = vmax.f32 %v3600, 0.0
        %v3633 = vld [vmem:[%s7] sm:$0xf]
        %v3634 = vld [vmem:[%s8] sm:$0x1]
        %v3636 = vlaneseq
        %v3637 = vshrl.u32 %v3636, 7
        %v3638 = vsub.s32 0, %v3637
        %v3639 = vrot.slane %v3634, %v3638
        %v3642 = vsel %vm969, %v3601, 0
        %v3645 = vsel %vm969, %v3602, 0
        %v3648 = vsel %vm969, %v3603, 0
        %v3651 = vsel %vm969, %v3604, 0
        %v3654 = vsel %vm969, %v3605, 0
        %v3657 = vsel %vm969, %v3606, 0
        %v3660 = vsel %vm969, %v3607, 0
        %v3663 = vsel %vm969, %v3608, 0
        %v3666 = vsel %vm969, %v3609, 0
        %v3669 = vsel %vm969, %v3610, 0
        %v3672 = vsel %vm969, %v3611, 0
        %v3675 = vsel %vm969, %v3612, 0
        %v3678 = vsel %vm969, %v3613, 0
        %v3681 = vsel %vm969, %v3614, 0
        %v3684 = vsel %vm969, %v3615, 0
        %v3687 = vsel %vm969, %v3616, 0
        %v3690 = vsel %vm969, %v3617, 0
        %v3693 = vsel %vm969, %v3618, 0
        %v3696 = vsel %vm969, %v3619, 0
        %v3699 = vsel %vm969, %v3620, 0
        %v3702 = vsel %vm969, %v3621, 0
        %v3705 = vsel %vm969, %v3622, 0
        %v3708 = vsel %vm969, %v3623, 0
        %v3711 = vsel %vm969, %v3624, 0
        %v3714 = vsel %vm969, %v3625, 0
        %v3717 = vsel %vm969, %v3626, 0
        %v3720 = vsel %vm969, %v3627, 0
        %v3723 = vsel %vm969, %v3628, 0
        %v3726 = vsel %vm969, %v3629, 0
        %v3729 = vsel %vm969, %v3630, 0
        %v3732 = vsel %vm969, %v3631, 0
        %v3735 = vsel %vm969, %v3632, 0
        %v3738 = vsel %vm2137, %v3633, 0
        %3740 = vmatprep.subr.mxu0 0.0
        %3741 = vmatpush1.msra.mxu0 %v3738
        %3742 = vmatprep.subr.mxu0 0.0
        %3743 = vmatpush1.msra.mxu0 0.0
        %3744 = vmatprep.subr.mxu0 0.0
        %3745 = vmatpush1.msra.mxu0 0.0
        %3746 = vmatprep.subr.mxu0 0.0
        %3747 = vmatpush1.msra.mxu0 0.0
        %3748 = vmatprep.subr.mxu0 0.0
        %3749 = vmatpush1.msra.mxu0 0.0
        %3750 = vmatprep.subr.mxu0 0.0
        %3751 = vmatpush1.msra.mxu0 0.0
        %3752 = vmatprep.subr.mxu0 0.0
        %3753 = vmatpush1.msra.mxu0 0.0
        %3754 = vmatprep.subr.mxu0 0.0
        %3755 = vmatpush1.msra.mxu0 0.0
        %3756 = vmatprep.subr.mxu0 0.0
        %3757 = vmatpush1.msra.mxu0 0.0
        %3758 = vmatprep.subr.mxu0 0.0
        %3759 = vmatpush1.msra.mxu0 0.0
        %3760 = vmatprep.subr.mxu0 0.0
        %3761 = vmatpush1.msra.mxu0 0.0
        %3762 = vmatprep.subr.mxu0 0.0
        %3763 = vmatpush1.msra.mxu0 0.0
        %3764 = vmatprep.subr.mxu0 0.0
        %3765 = vmatpush1.msra.mxu0 0.0
        %3766 = vmatprep.subr.mxu0 0.0
        %3767 = vmatpush1.msra.mxu0 0.0
        %3768 = vmatprep.subr.mxu0 0.0
        %3769 = vmatpush1.msra.mxu0 0.0
        %3770 = vmatprep.subr.mxu0 0.0
        %3771 = vmatpush1.msra.mxu0 0.0
        %3772 = vmatprep.subr.mxu0 0.0
        %3773 = vmatpush1.msra.mxu0 0.0
        %3774 = vmatprep.subr.mxu0 0.0
        %3775 = vmatpush1.msra.mxu0 0.0
        %3776 = vmatprep.subr.mxu0 0.0
        %3777 = vmatpush1.msra.mxu0 0.0
        %3778 = vmatprep.subr.mxu0 0.0
        %3779 = vmatpush1.msra.mxu0 0.0
        %3780 = vmatprep.subr.mxu0 0.0
        %3781 = vmatpush1.msra.mxu0 0.0
        %3782 = vmatprep.subr.mxu0 0.0
        %3783 = vmatpush1.msra.mxu0 0.0
        %3784 = vmatprep.subr.mxu0 0.0
        %3785 = vmatpush1.msra.mxu0 0.0
        %3786 = vmatprep.subr.mxu0 0.0
        %3787 = vmatpush1.msra.mxu0 0.0
        %3788 = vmatprep.subr.mxu0 0.0
        %3789 = vmatpush1.msra.mxu0 0.0
        %3790 = vmatprep.subr.mxu0 0.0
        %3791 = vmatpush1.msra.mxu0 0.0
        %3792 = vmatprep.subr.mxu0 0.0
        %3793 = vmatpush1.msra.mxu0 0.0
        %3794 = vmatprep.subr.mxu0 0.0
        %3795 = vmatpush1.msra.mxu0 0.0
        %3796 = vmatprep.subr.mxu0 0.0
        %3797 = vmatpush1.msra.mxu0 0.0
        %3798 = vmatprep.subr.mxu0 0.0
        %3799 = vmatpush1.msra.mxu0 0.0
        %3800 = vmatprep.subr.mxu0 0.0
        %3801 = vmatpush1.msra.mxu0 0.0
        %3802 = vmatprep.subr.mxu0 0.0
        %3803 = vmatpush1.msra.mxu0 0.0
        %3804 = vmatprep.mubr.f32.mxu0 0.0
        %3805 = vmatmul.mubr.f32.gmra.mrb[0].mxu0 %v3642
        %v3806 = vpop.f32.mrb[0].mxu0
        %v3807 = vadd.f32 %v3639, %v3806
        %v3808 = vpop.f32.mrb[0].mxu0
        %3809 = vmatprep.mubr.f32.mxu0 0.0
        %3810 = vmatmul.mubr.f32.gmra.mrb[0].mxu0 %v3645
        %v3811 = vpop.f32.mrb[0].mxu0
        %v3812 = vadd.f32 %v3639, %v3811
        %v3813 = vpop.f32.mrb[0].mxu0
        %3814 = vmatprep.mubr.f32.mxu0 0.0
        %3815 = vmatmul.mubr.f32.gmra.mrb[0].mxu0 %v3648
        %v3816 = vpop.f32.mrb[0].mxu0
        %v3817 = vadd.f32 %v3639, %v3816
        %v3818 = vpop.f32.mrb[0].mxu0
        %3819 = vmatprep.mubr.f32.mxu0 0.0
        %3820 = vmatmul.mubr.f32.gmra.mrb[0].mxu0 %v3651
        %v3821 = vpop.f32.mrb[0].mxu0
        %v3822 = vadd.f32 %v3639, %v3821
        %v3823 = vpop.f32.mrb[0].mxu0
        %3824 = vmatprep.mubr.f32.mxu0 0.0
        %3825 = vmatmul.mubr.f32.gmra.mrb[0].mxu0 %v3654
        %v3826 = vpop.f32.mrb[0].mxu0
        %v3827 = vadd.f32 %v3639, %v3826
        %v3828 = vpop.f32.mrb[0].mxu0
        %3829 = vmatprep.mubr.f32.mxu0 0.0
        %3830 = vmatmul.mubr.f32.gmra.mrb[0].mxu0 %v3657
        %v3831 = vpop.f32.mrb[0].mxu0
        %v3832 = vadd.f32 %v3639, %v3831
        %v3833 = vpop.f32.mrb[0].mxu0
        %3834 = vmatprep.mubr.f32.mxu0 0.0
        %3835 = vmatmul.mubr.f32.gmra.mrb[0].mxu0 %v3660
        %v3836 = vpop.f32.mrb[0].mxu0
        %v3837 = vadd.f32 %v3639, %v3836
        %v3838 = vpop.f32.mrb[0].mxu0
        %3839 = vmatprep.mubr.f32.mxu0 0.0
        %3840 = vmatmul.mubr.f32.gmra.mrb[0].mxu0 %v3663
        %v3841 = vpop.f32.mrb[0].mxu0
        %v3842 = vadd.f32 %v3639, %v3841
        %v3843 = vpop.f32.mrb[0].mxu0
        %3844 = vmatprep.mubr.f32.mxu0 0.0
        %3845 = vmatmul.mubr.f32.gmra.mrb[0].mxu0 %v3666
        %v3846 = vpop.f32.mrb[0].mxu0
        %v3847 = vadd.f32 %v3639, %v3846
        %v3848 = vpop.f32.mrb[0].mxu0
        %3849 = vmatprep.mubr.f32.mxu0 0.0
        %3850 = vmatmul.mubr.f32.gmra.mrb[0].mxu0 %v3669
        %v3851 = vpop.f32.mrb[0].mxu0
        %v3852 = vadd.f32 %v3639, %v3851
        %v3853 = vpop.f32.mrb[0].mxu0
        %3854 = vmatprep.mubr.f32.mxu0 0.0
        %3855 = vmatmul.mubr.f32.gmra.mrb[0].mxu0 %v3672
        %v3856 = vpop.f32.mrb[0].mxu0
        %v3857 = vadd.f32 %v3639, %v3856
        %v3858 = vpop.f32.mrb[0].mxu0
        %3859 = vmatprep.mubr.f32.mxu0 0.0
        %3860 = vmatmul.mubr.f32.gmra.mrb[0].mxu0 %v3675
        %v3861 = vpop.f32.mrb[0].mxu0
        %v3862 = vadd.f32 %v3639, %v3861
        %v3863 = vpop.f32.mrb[0].mxu0
        %3864 = vmatprep.mubr.f32.mxu0 0.0
        %3865 = vmatmul.mubr.f32.gmra.mrb[0].mxu0 %v3678
        %v3866 = vpop.f32.mrb[0].mxu0
        %v3867 = vadd.f32 %v3639, %v3866
        %v3868 = vpop.f32.mrb[0].mxu0
        %3869 = vmatprep.mubr.f32.mxu0 0.0
        %3870 = vmatmul.mubr.f32.gmra.mrb[0].mxu0 %v3681
        %v3871 = vpop.f32.mrb[0].mxu0
        %v3872 = vadd.f32 %v3639, %v3871
        %v3873 = vpop.f32.mrb[0].mxu0
        %3874 = vmatprep.mubr.f32.mxu0 0.0
        %3875 = vmatmul.mubr.f32.gmra.mrb[0].mxu0 %v3684
        %v3876 = vpop.f32.mrb[0].mxu0
        %v3877 = vadd.f32 %v3639, %v3876
        %v3878 = vpop.f32.mrb[0].mxu0
        %3879 = vmatprep.mubr.f32.mxu0 0.0
        %3880 = vmatmul.mubr.f32.gmra.mrb[0].mxu0 %v3687
        %v3881 = vpop.f32.mrb[0].mxu0
        %v3882 = vadd.f32 %v3639, %v3881
        %v3883 = vpop.f32.mrb[0].mxu0
        %3884 = vmatprep.mubr.f32.mxu0 0.0
        %3885 = vmatmul.mubr.f32.gmra.mrb[0].mxu0 %v3690
        %v3886 = vpop.f32.mrb[0].mxu0
        %v3887 = vadd.f32 %v3639, %v3886
        %v3888 = vpop.f32.mrb[0].mxu0
        %3889 = vmatprep.mubr.f32.mxu0 0.0
        %3890 = vmatmul.mubr.f32.gmra.mrb[0].mxu0 %v3693
        %v3891 = vpop.f32.mrb[0].mxu0
        %v3892 = vadd.f32 %v3639, %v3891
        %v3893 = vpop.f32.mrb[0].mxu0
        %3894 = vmatprep.mubr.f32.mxu0 0.0
        %3895 = vmatmul.mubr.f32.gmra.mrb[0].mxu0 %v3696
        %v3896 = vpop.f32.mrb[0].mxu0
        %v3897 = vadd.f32 %v3639, %v3896
        %v3898 = vpop.f32.mrb[0].mxu0
        %3899 = vmatprep.mubr.f32.mxu0 0.0
        %3900 = vmatmul.mubr.f32.gmra.mrb[0].mxu0 %v3699
        %v3901 = vpop.f32.mrb[0].mxu0
        %v3902 = vadd.f32 %v3639, %v3901
        %v3903 = vpop.f32.mrb[0].mxu0
        %3904 = vmatprep.mubr.f32.mxu0 0.0
        %3905 = vmatmul.mubr.f32.gmra.mrb[0].mxu0 %v3702
        %v3906 = vpop.f32.mrb[0].mxu0
        %v3907 = vadd.f32 %v3639, %v3906
        %v3908 = vpop.f32.mrb[0].mxu0
        %3909 = vmatprep.mubr.f32.mxu0 0.0
        %3910 = vmatmul.mubr.f32.gmra.mrb[0].mxu0 %v3705
        %v3911 = vpop.f32.mrb[0].mxu0
        %v3912 = vadd.f32 %v3639, %v3911
        %v3913 = vpop.f32.mrb[0].mxu0
        %3914 = vmatprep.mubr.f32.mxu0 0.0
        %3915 = vmatmul.mubr.f32.gmra.mrb[0].mxu0 %v3708
        %v3916 = vpop.f32.mrb[0].mxu0
        %v3917 = vadd.f32 %v3639, %v3916
        %v3918 = vpop.f32.mrb[0].mxu0
        %3919 = vmatprep.mubr.f32.mxu0 0.0
        %3920 = vmatmul.mubr.f32.gmra.mrb[0].mxu0 %v3711
        %v3921 = vpop.f32.mrb[0].mxu0
        %v3922 = vadd.f32 %v3639, %v3921
        %v3923 = vpop.f32.mrb[0].mxu0
        %3924 = vmatprep.mubr.f32.mxu0 0.0
        %3925 = vmatmul.mubr.f32.gmra.mrb[0].mxu0 %v3714
        %v3926 = vpop.f32.mrb[0].mxu0
        %v3927 = vadd.f32 %v3639, %v3926
        %v3928 = vpop.f32.mrb[0].mxu0
        %3929 = vmatprep.mubr.f32.mxu0 0.0
        %3930 = vmatmul.mubr.f32.gmra.mrb[0].mxu0 %v3717
        %v3931 = vpop.f32.mrb[0].mxu0
        %v3932 = vadd.f32 %v3639, %v3931
        %v3933 = vpop.f32.mrb[0].mxu0
        %3934 = vmatprep.mubr.f32.mxu0 0.0
        %3935 = vmatmul.mubr.f32.gmra.mrb[0].mxu0 %v3720
        %v3936 = vpop.f32.mrb[0].mxu0
        %v3937 = vadd.f32 %v3639, %v3936
        %v3938 = vpop.f32.mrb[0].mxu0
        %3939 = vmatprep.mubr.f32.mxu0 0.0
        %3940 = vmatmul.mubr.f32.gmra.mrb[0].mxu0 %v3723
        %v3941 = vpop.f32.mrb[0].mxu0
        %v3942 = vadd.f32 %v3639, %v3941
        %v3943 = vpop.f32.mrb[0].mxu0
        %3944 = vmatprep.mubr.f32.mxu0 0.0
        %3945 = vmatmul.mubr.f32.gmra.mrb[0].mxu0 %v3726
        %v3946 = vpop.f32.mrb[0].mxu0
        %v3947 = vadd.f32 %v3639, %v3946
        %v3948 = vpop.f32.mrb[0].mxu0
        %3949 = vmatprep.mubr.f32.mxu0 0.0
        %3950 = vmatmul.mubr.f32.gmra.mrb[0].mxu0 %v3729
        %v3951 = vpop.f32.mrb[0].mxu0
        %v3952 = vadd.f32 %v3639, %v3951
        %v3953 = vpop.f32.mrb[0].mxu0
        %3954 = vmatprep.mubr.f32.mxu0 0.0
        %3955 = vmatmul.mubr.f32.gmra.mrb[0].mxu0 %v3732
        %v3956 = vpop.f32.mrb[0].mxu0
        %v3957 = vadd.f32 %v3639, %v3956
        %v3958 = vpop.f32.mrb[0].mxu0
        %3959 = vmatprep.mubr.f32.mxu0 0.0
        %3960 = vmatmul.mubr.f32.gmra.mrb[0].mxu0 %v3735
        %v3961 = vpop.f32.mrb[0].mxu0
        %v3962 = vadd.f32 %v3639, %v3961
        %v3963 = vpop.f32.mrb[0].mxu0
        %3964 = vdwg.mxu0
        %v3965 = vadd.f32 %v3807, %v490
        %v3966 = vadd.f32 %v3812, %v491
        %v3967 = vadd.f32 %v3817, %v492
        %v3968 = vadd.f32 %v3822, %v493
        %v3969 = vadd.f32 %v3827, %v494
        %v3970 = vadd.f32 %v3832, %v495
        %v3971 = vadd.f32 %v3837, %v496
        %v3972 = vadd.f32 %v3842, %v497
        %v3973 = vadd.f32 %v3847, %v498
        %v3974 = vadd.f32 %v3852, %v499
        %v3975 = vadd.f32 %v3857, %v500
        %v3976 = vadd.f32 %v3862, %v501
        %v3977 = vadd.f32 %v3867, %v502
        %v3978 = vadd.f32 %v3872, %v503
        %v3979 = vadd.f32 %v3877, %v504
        %v3980 = vadd.f32 %v3882, %v505
        %v3981 = vadd.f32 %v3887, %v506
        %v3982 = vadd.f32 %v3892, %v507
        %v3983 = vadd.f32 %v3897, %v508
        %v3984 = vadd.f32 %v3902, %v509
        %v3985 = vadd.f32 %v3907, %v510
        %v3986 = vadd.f32 %v3912, %v511
        %v3987 = vadd.f32 %v3917, %v512
        %v3988 = vadd.f32 %v3922, %v513
        %v3989 = vadd.f32 %v3927, %v514
        %v3990 = vadd.f32 %v3932, %v515
        %v3991 = vadd.f32 %v3937, %v516
        %v3992 = vadd.f32 %v3942, %v517
        %v3993 = vadd.f32 %v3947, %v518
        %v3994 = vadd.f32 %v3952, %v519
        %v3995 = vadd.f32 %v3957, %v520
        %v3996 = vadd.f32 %v3962, %v521
        %v3997 = vmax.f32 %v3965, 0.0
        %v3998 = vmax.f32 %v3966, 0.0
        %v3999 = vmax.f32 %v3967, 0.0
        %v4000 = vmax.f32 %v3968, 0.0
        %v4001 = vmax.f32 %v3969, 0.0
        %v4002 = vmax.f32 %v3970, 0.0
        %v4003 = vmax.f32 %v3971, 0.0
        %v4004 = vmax.f32 %v3972, 0.0
        %v4005 = vmax.f32 %v3973, 0.0
        %v4006 = vmax.f32 %v3974, 0.0
        %v4007 = vmax.f32 %v3975, 0.0
        %v4008 = vmax.f32 %v3976, 0.0
        %v4009 = vmax.f32 %v3977, 0.0
        %v4010 = vmax.f32 %v3978, 0.0
        %v4011 = vmax.f32 %v3979, 0.0
        %v4012 = vmax.f32 %v3980, 0.0
        %v4013 = vmax.f32 %v3981, 0.0
        %v4014 = vmax.f32 %v3982, 0.0
        %v4015 = vmax.f32 %v3983, 0.0
        %v4016 = vmax.f32 %v3984, 0.0
        %v4017 = vmax.f32 %v3985, 0.0
        %v4018 = vmax.f32 %v3986, 0.0
        %v4019 = vmax.f32 %v3987, 0.0
        %v4020 = vmax.f32 %v3988, 0.0
        %v4021 = vmax.f32 %v3989, 0.0
        %v4022 = vmax.f32 %v3990, 0.0
        %v4023 = vmax.f32 %v3991, 0.0
        %v4024 = vmax.f32 %v3992, 0.0
        %v4025 = vmax.f32 %v3993, 0.0
        %v4026 = vmax.f32 %v3994, 0.0
        %v4027 = vmax.f32 %v3995, 0.0
        %v4028 = vmax.f32 %v3996, 0.0
        %4029 = vst.msk [vmem:[%s478] sm:$0xff] %vm535, %v3997
        %4030 = vst.msk [vmem:[%s478 + $0x8] sm:$0xff] %vm535, %v3998
        %4031 = vst.msk [vmem:[%s478 + $0x10] sm:$0xff] %vm535, %v3999
        %4032 = vst.msk [vmem:[%s478 + $0x18] sm:$0xff] %vm535, %v4000
        %4033 = vst.msk [vmem:[%s478 + $0x20] sm:$0xff] %vm535, %v4001
        %4034 = vst.msk [vmem:[%s478 + $0x28] sm:$0xff] %vm535, %v4002
        %4035 = vst.msk [vmem:[%s478 + $0x30] sm:$0xff] %vm535, %v4003
        %4036 = vst.msk [vmem:[%s478 + $0x38] sm:$0xff] %vm535, %v4004
        %4037 = vst.msk [vmem:[%s478 + $0x40] sm:$0xff] %vm535, %v4005
        %4038 = vst.msk [vmem:[%s478 + $0x48] sm:$0xff] %vm535, %v4006
        %4039 = vst.msk [vmem:[%s478 + $0x50] sm:$0xff] %vm535, %v4007
        %4040 = vst.msk [vmem:[%s478 + $0x58] sm:$0xff] %vm535, %v4008
        %4041 = vst.msk [vmem:[%s478 + $0x60] sm:$0xff] %vm535, %v4009
        %4042 = vst.msk [vmem:[%s478 + $0x68] sm:$0xff] %vm535, %v4010
        %4043 = vst.msk [vmem:[%s478 + $0x70] sm:$0xff] %vm535, %v4011
        %4044 = vst.msk [vmem:[%s478 + $0x78] sm:$0xff] %vm535, %v4012
        %4045 = vst.msk [vmem:[%s478 + $0x80] sm:$0xff] %vm535, %v4013
        %4046 = vst.msk [vmem:[%s478 + $0x88] sm:$0xff] %vm535, %v4014
        %4047 = vst.msk [vmem:[%s478 + $0x90] sm:$0xff] %vm535, %v4015
        %4048 = vst.msk [vmem:[%s478 + $0x98] sm:$0xff] %vm535, %v4016
        %4049 = vst.msk [vmem:[%s478 + $0xa0] sm:$0xff] %vm535, %v4017
        %4050 = vst.msk [vmem:[%s478 + $0xa8] sm:$0xff] %vm535, %v4018
        %4051 = vst.msk [vmem:[%s478 + $0xb0] sm:$0xff] %vm535, %v4019
        %4052 = vst.msk [vmem:[%s478 + $0xb8] sm:$0xff] %vm535, %v4020
        %4053 = vst.msk [vmem:[%s478 + $0xc0] sm:$0xff] %vm535, %v4021
        %4054 = vst.msk [vmem:[%s478 + $0xc8] sm:$0xff] %vm535, %v4022
        %4055 = vst.msk [vmem:[%s478 + $0xd0] sm:$0xff] %vm535, %v4023
        %4056 = vst.msk [vmem:[%s478 + $0xd8] sm:$0xff] %vm535, %v4024
        %4057 = vst.msk [vmem:[%s478 + $0xe0] sm:$0xff] %vm535, %v4025
        %4058 = vst.msk [vmem:[%s478 + $0xe8] sm:$0xff] %vm535, %v4026
        %4059 = vst.msk [vmem:[%s478 + $0xf0] sm:$0xff] %vm535, %v4027
        %4060 = vst.msk [vmem:[%s478 + $0xf8] sm:$0xff] %vm535, %v4028
        %s4061 = sand.u32 %s277, 1
        %s4062 = scalar_lea.sflag [#allocation5], %s4061
        %s4063 = sand.u32 %s277, 1
        %s4064 = smul.addr %s4063, 256
        %s4065 = scalar_lea.vmem [#allocation9], %s4064
        // Predicated region
        $region69: #{tpu_custom_call.1} parent=55 // pred_check
          %p4066 = pneg %p287
        $region70: #{tpu_custom_call.1} parent=55 // pred_check_branch
          %4068 = sbr.rel (%p4066) target = $region72
        $region71: #{tpu_custom_call.1} parent=55 // pred_region
          %s4069 = smul.u32 16, %s34
          %s4071 = ssub.s32 4096, 4096
          %4072 = vsyncadd %s4062, %s4071
          %s4073 = smul.addr %s4069, 2
          %s4074 = smul.addr %s33, 32
          %s4075 = sadd.s32 %s4073, %s4074
          %s4076 = smul.addr %s4075, 128
          %s4077 = scalar_lea.hbm %s9, %s4076
          %s4078 = sshll.u32 %s4065, 4
          %s4079 = int_to_ptr.vmem [resolvable:$true] %s4078
          %4084 = dma.vmem_to_hbm [thread:$0]  %s4079, 4096, %s4077, %s4062, 128, 128, 8
        $region72: #{tpu_custom_call.1} parent=55 // pred_fallthru
          _
      $region56: #{tpu_custom_call.1} parent=5 // pred_fallthru
        _
      %p4085 = scmp.le.s32.totalorder 2, %s24
      // Predicated region
      $region73: #{tpu_custom_call.1} parent=5 // pred_check
        %p4086 = pneg %p4085
      $region74: #{tpu_custom_call.1} parent=5 // pred_check_branch
        %4088 = sbr.rel (%p4086) target = $region76
      $region75: #{tpu_custom_call.1} parent=5 // pred_region
        %s4089 = ssub.s32 %s24, 2
        // Predicated region
        $region77: #{tpu_custom_call.1} parent=75 // pred_check
          %p4090 = pneg %p293
        $region78: #{tpu_custom_call.1} parent=75 // pred_check_branch
          %4092 = sbr.rel (%p4090) target = $region80
        $region79: #{tpu_custom_call.1} parent=75 // pred_region
          %s4093 = sand.u32 %s278, 1
          %s4094 = scalar_lea.sflag [#allocation5], %s4093
          %s4095 = sand.u32 %s278, 1
          %s4096 = smul.addr %s4095, 256
          %s4097 = scalar_lea.vmem [#allocation9], %s4096
          %4098 = dma.done %s4094, 4096
        $region80: #{tpu_custom_call.1} parent=75 // pred_fallthru
          _
      $region76: #{tpu_custom_call.1} parent=5 // pred_fallthru
        _
    $region6: #{tpu_custom_call.1} parent=1 // loop_footer
      %s28 = sadd.s32 1, %s24
    $region7: #{tpu_custom_call.1} parent=1 // loop_footer_branch
      %23 = sbr.rel target = $region3
    $region8: #{tpu_custom_call.1} parent=1 // loop_exit
      _
    %4099 = vsyncpa [#allocation4], 1
    %s4100 = scalar_lea.sflag [#allocation4], 1
    %4101 = vsyncpa %s4100, 1
    %4102 = vsyncpa [#allocation7], 1
    %s4103 = scalar_lea.sflag [#allocation7], 1
    %4104 = vsyncpa %s4103, 1
    %4105 = vsyncpa [#allocation5], 1
    %s4106 = scalar_lea.sflag [#allocation5], 1
    %4107 = vsyncpa %s4106, 1

</llo_original>
